<compile_context>
chip_gen: v6e
topology: v6e:2x2x1
jax: 0.10.0
libtpu: 0.0.40
codegen_flags: <defaults>
</compile_context>

<pallas_src>
import math

import jax
import jax.numpy as jnp
from jax import lax
from jax.experimental import pallas as pl
from jax.experimental.pallas import tpu as pltpu

HEADS = 8
LN_EPS = 1e-5
FF_DIM = 2048          # nn.TransformerEncoderLayer default dim_feedforward
NEG_BIG = -1e30        # finite "minus infinity" for the key-padding bias

WEIGHT_NAMES = ("wqkv", "bqkv", "wo", "bo",
                "w1", "b1", "w2", "b2",
                "g1", "be1", "g2", "be2")


# ----------------------------------------------------------------------------
# Kernel: ONE encoder layer for ONE sequence.  Grid = (batch, layer); the output
# block (act_ref) is revisited across the layer axis and carries the activation.
# ----------------------------------------------------------------------------
def _trans_encoder_layer_kernel(x_ref, vmask_ref,
                                wqkv_ref, bqkv_ref, wo_ref, bo_ref,
                                w1_ref, b1_ref, w2_ref, b2_ref,
                                g1_ref, be1_ref, g2_ref, be2_ref,
                                act_ref, o_scr):
    """Per-grid-step shapes:
      x_ref    (n, d) f32     input sequence (loaded once per batch element)
      vmask_ref(1, n) f32     1.0 = valid key, 0.0 = padded
      wqkv     (d, 3d) bf16   fused QKV projection (attn scale folded into q cols)
      bqkv     (1, 3d) f32
      wo       (d, d) bf16    output projection;  bo (1, d) f32
      w1 (d, FF) bf16, b1 (1, FF) f32, w2 (FF, d) bf16, b2 (1, d) f32
      g1/be1/g2/be2 (1, d) f32  LayerNorm affine
      act_ref  (n, d) f32     OUTPUT block, revisited across the layer axis
      o_scr    (n, d) f32     VMEM scratch: merged per-head PV results
    """
    n, d = x_ref.shape
    heads = HEADS
    dh = d // heads
    l = pl.program_id(1)

    # First layer of this batch element: load the input into the carried activation.
    @pl.when(l == 0)
    def _load_input():
        act_ref[...] = x_ref[...]

    xm = act_ref[...]                                               # (n, d) f32

    # Key-padding bias, kept at (1, n) and broadcast implicitly into the scores.
    bias = jnp.where(vmask_ref[...] > 0.0, 0.0, jnp.float32(NEG_BIG))   # (1, n)

    # ---------------- fused, lane-dense QKV projection (MXU, bf16 in / f32 acc) ----
    qkv = jnp.dot(xm.astype(jnp.bfloat16), wqkv_ref[...],
                  preferred_element_type=jnp.float32) + bqkv_ref[...]   # (n, 3d)

    # ---------------- per-head scores / softmax / PV; heads merged into o_scr ------
    for h in range(heads):                                   # static unroll (8)
        qh = qkv[:, h * dh:(h + 1) * dh].astype(jnp.bfloat16)            # (n, dh)
        kh = qkv[:, d + h * dh:d + (h + 1) * dh].astype(jnp.bfloat16)    # (n, dh)
        vh = qkv[:, 2 * d + h * dh:2 * d + (h + 1) * dh].astype(jnp.bfloat16)
        s = jnp.dot(qh, kh.T, preferred_element_type=jnp.float32) + bias  # (n, n)
        m = jnp.max(s, axis=-1, keepdims=True)
        e = jnp.exp(s - m)
        p = e * pl.reciprocal(jnp.sum(e, axis=-1, keepdims=True), approx=True)
        o_scr[:, h * dh:(h + 1) * dh] = jnp.dot(
            p.astype(jnp.bfloat16), vh, preferred_element_type=jnp.float32)

    # ---------------- merge-heads + output projection: ONE dense (n,D)@(D,D) -------
    attn_out = jnp.dot(o_scr[...].astype(jnp.bfloat16), wo_ref[...],
                       preferred_element_type=jnp.float32) + bo_ref[...]

    def layer_norm(y, g, b):
        mu = jnp.mean(y, axis=-1, keepdims=True)
        yc = y - mu
        var = jnp.mean(yc * yc, axis=-1, keepdims=True)
        return yc * lax.rsqrt(var + LN_EPS) * g + b

    # Post-norm residual blocks (PyTorch norm_first=False); dropout = identity (eval).
    x1 = layer_norm(xm + attn_out, g1_ref[...], be1_ref[...])
    hid = jnp.maximum(
        jnp.dot(x1.astype(jnp.bfloat16), w1_ref[...],
                preferred_element_type=jnp.float32) + b1_ref[...], 0.0)
    ff = jnp.dot(hid.astype(jnp.bfloat16), w2_ref[...],
                 preferred_element_type=jnp.float32) + b2_ref[...]
    act_ref[...] = layer_norm(x1 + ff, g2_ref[...], be2_ref[...])


# ----------------------------------------------------------------------------
# Wrapper
# ----------------------------------------------------------------------------
def trans_encoder_forward(x, lgt, params):
    """x: (N, B, D) seq-first float32 (matches the PyTorch module); lgt: (B,) lengths.

    Returns (N, B, D) float32 — the TransformerEncoder output.
    """
    n, b, d = x.shape
    assert d % HEADS == 0, "d_model must be divisible by nhead=8"

    # (N,B,D) -> (B,N,D) so blocks are full in their last two dims.
    # TODO(synk): at very large N*B*D this HBM transpose could be folded into the kernel.
    xb = jnp.transpose(x, (1, 0, 2))                              # (B, N, D)

    # get_mask(): positions >= lgt[i] are padded keys.  Here 1.0 = valid key.
    vmask = (jnp.arange(n)[None, :] < lgt[:, None]).astype(jnp.float32)
    vmask = vmask[:, None, :]                                     # (B, 1, N)

    weights = [params[name] for name in WEIGHT_NAMES]
    num_layers = weights[0].shape[0]
    ff = params["w1"].shape[2]

    # Megacore: only shard the batch axis across TensorCores when each sequence has
    # enough work to pay for streaming the weights to both cores (perf-review v7x note).
    batch_sem = "parallel" if (b > 1 and n * d >= 128 * 128) else "arbitrary"

    # VMEM budget from the actual per-layer bytes (weights are streamed one layer at a
    # time and double-buffered), plus activation working set and slack.  Stays well
    # under v7x's 64 MiB for realistic D/L because only ~2 layers are ever resident.
    per_layer_w_bytes = sum(math.prod(w.shape[1:]) * w.dtype.itemsize for w in weights)
    act_work_bytes = 4 * n * (3 * d + ff + 8 * d) + 8 * n * n
    vmem_limit = 3 * per_layer_w_bytes + 4 * act_work_bytes + (4 << 20)
    vmem_limit = int(min(max(vmem_limit, 16 << 20), 100 << 20))

    in_specs = [
        pl.BlockSpec((None, n, d), lambda i, l: (i, 0, 0)),       # x   (resident per i)
        pl.BlockSpec((None, 1, n), lambda i, l: (i, 0, 0)),       # valid-key mask
    ] + [
        pl.BlockSpec((None,) + tuple(w.shape[1:]), lambda i, l: (l, 0, 0))
        for w in weights                                          # stream layer l
    ]
    out_spec = pl.BlockSpec((None, n, d), lambda i, l: (i, 0, 0))  # carried activation

    grid_spec = pltpu.PrefetchScalarGridSpec(
        num_scalar_prefetch=0,
        grid=(b, num_layers),                 # layer (carried) axis last
        in_specs=in_specs,
        out_specs=out_spec,
        scratch_shapes=[pltpu.VMEM((n, d), jnp.float32)],          # merged-heads slab
    )

    out = pl.pallas_call(
        _trans_encoder_layer_kernel,
        out_shape=jax.ShapeDtypeStruct((b, n, d), jnp.float32),
        grid_spec=grid_spec,
        compiler_params=pltpu.CompilerParams(
            dimension_semantics=(batch_sem, "arbitrary"),
            vmem_limit_bytes=vmem_limit),
    )(xb, vmask, *weights)

    return jnp.transpose(out, (1, 0, 2))                           # back to (N, B, D)


# ----------------------------------------------------------------------------
# Deterministic synthetic parameters, pre-arranged in kernel layout
# ----------------------------------------------------------------------------
def init_params(key, dim, num_layers, heads=HEADS, ff=FF_DIM):
    """torch layout -> kernel layout (host-side):
      in_proj_weight (3D, D) -> fused wqkv (L, D, 3D) bf16, x @ w convention, with the
                                1/sqrt(dh) attention scale folded into the q columns;
      out_proj.weight (D, D) -> wo (L, D, D) bf16;
      linear1/linear2        -> transposed, bf16 (dominant HBM bytes), f32 biases."""
    assert dim % heads == 0
    dh = dim // heads
    q_scale = float(dh) ** -0.5

    def lin(k, out_d, in_d):
        k1, k2 = jax.random.split(k)
        w = jax.random.normal(k1, (out_d, in_d), jnp.float32) * 0.05
        b = jax.random.normal(k2, (out_d,), jnp.float32) * 0.05
        return w, b

    acc = {name: [] for name in WEIGHT_NAMES}
    layer_keys = jax.random.split(key, num_layers)
    for l in range(num_layers):
        lk = jax.random.split(layer_keys[l], 4)
        wqkv_t, bqkv_t = lin(lk[0], 3 * dim, dim)     # torch in_proj_weight / bias
        wo_t, bo_t = lin(lk[1], dim, dim)             # out_proj
        w1_t, b1_t = lin(lk[2], ff, dim)              # linear1
        w2_t, b2_t = lin(lk[3], dim, ff)              # linear2

        wqkv = jnp.transpose(wqkv_t)                  # (D, 3D)  for x @ w
        bqkv = bqkv_t[None, :]                        # (1, 3D)
        scale_cols = jnp.concatenate(                 # fold 1/sqrt(dh) into q columns
            [jnp.full((dim,), q_scale, jnp.float32),
             jnp.ones((2 * dim,), jnp.float32)])
        wqkv = wqkv * scale_cols[None, :]
        bqkv = bqkv * scale_cols[None, :]

        acc["wqkv"].append(wqkv.astype(jnp.bfloat16))
        acc["bqkv"].append(bqkv)
        acc["wo"].append(jnp.transpose(wo_t).astype(jnp.bfloat16))
        acc["bo"].append(bo_t[None, :])
        acc["w1"].append(jnp.transpose(w1_t).astype(jnp.bfloat16))
        acc["b1"].append(b1_t[None, :])
        acc["w2"].append(jnp.transpose(w2_t).astype(jnp.bfloat16))
        acc["b2"].append(b2_t[None, :])
        acc["g1"].append(jnp.ones((1, dim), jnp.float32))
        acc["be1"].append(jnp.zeros((1, dim), jnp.float32))
        acc["g2"].append(jnp.ones((1, dim), jnp.float32))
        acc["be2"].append(jnp.zeros((1, dim), jnp.float32))

    return {name: jnp.stack(vals, axis=0) for name, vals in acc.items()}


# ----------------------------------------------------------------------------
if __name__ == "__main__":
    dim, num_layers = 32, 2
    seq_len, batch = 8, 2

    root = jax.random.PRNGKey(0)
    kp, kx = jax.random.split(root)
    params = init_params(kp, dim, num_layers)

    x = jax.random.normal(kx, (seq_len, batch, dim), jnp.float32)   # (N, B, D)
    lgt = jnp.array([seq_len, 5], jnp.int32)                        # valid lengths

    fwd = jax.jit(trans_encoder_forward)
    out = fwd(x, lgt, params)
    jax.block_until_ready(out)
    assert out.shape == (seq_len, batch, dim)
    assert bool(jnp.all(jnp.isfinite(out)))
    print("KERNEL_OK")
</pallas_src>

<mosaic_0001>
module attributes {stable_mosaic.version = 11 : i64} {
  func.func @_trans_encoder_layer_kernel(%arg0: i32, %arg1: i32, %arg2: memref<1x8x32xf32, #tpu.memory_space<vmem>>, %arg3: memref<1x1x8xf32, #tpu.memory_space<vmem>>, %arg4: memref<1x32x96xbf16, #tpu.memory_space<vmem>>, %arg5: memref<1x1x96xf32, #tpu.memory_space<vmem>>, %arg6: memref<1x32x32xbf16, #tpu.memory_space<vmem>>, %arg7: memref<1x1x32xf32, #tpu.memory_space<vmem>>, %arg8: memref<1x32x2048xbf16, #tpu.memory_space<vmem>>, %arg9: memref<1x1x2048xf32, #tpu.memory_space<vmem>>, %arg10: memref<1x2048x32xbf16, #tpu.memory_space<vmem>>, %arg11: memref<1x1x32xf32, #tpu.memory_space<vmem>>, %arg12: memref<1x1x32xf32, #tpu.memory_space<vmem>>, %arg13: memref<1x1x32xf32, #tpu.memory_space<vmem>>, %arg14: memref<1x1x32xf32, #tpu.memory_space<vmem>>, %arg15: memref<1x1x32xf32, #tpu.memory_space<vmem>>, %arg16: memref<1x8x32xf32, #tpu.memory_space<vmem>>, %arg17: memref<8x32xf32, #tpu.memory_space<vmem>>) attributes {dimension_semantics = [#tpu.dimension_semantics<arbitrary>, #tpu.dimension_semantics<arbitrary>], iteration_bounds = array<i64: 2, 2>, scalar_prefetch = 0 : i64, scratch_operands = 1 : i64, tpu.core_type = #tpu.core_type<tc>, window_params = [{transform_indices = @transform_0, window_bounds = array<i64: 1, 8, 32>}, {transform_indices = @transform_1, window_bounds = array<i64: 1, 1, 8>}, {transform_indices = @transform_2, window_bounds = array<i64: 1, 32, 96>}, {transform_indices = @transform_3, window_bounds = array<i64: 1, 1, 96>}, {transform_indices = @transform_4, window_bounds = array<i64: 1, 32, 32>}, {transform_indices = @transform_5, window_bounds = array<i64: 1, 1, 32>}, {transform_indices = @transform_6, window_bounds = array<i64: 1, 32, 2048>}, {transform_indices = @transform_7, window_bounds = array<i64: 1, 1, 2048>}, {transform_indices = @transform_8, window_bounds = array<i64: 1, 2048, 32>}, {transform_indices = @transform_9, window_bounds = array<i64: 1, 1, 32>}, {transform_indices = @transform_10, window_bounds = array<i64: 1, 1, 32>}, {transform_indices = @transform_11, window_bounds = array<i64: 1, 1, 32>}, {transform_indices = @transform_12, window_bounds = array<i64: 1, 1, 32>}, {transform_indices = @transform_13, window_bounds = array<i64: 1, 1, 32>}, {transform_indices = @transform_14, window_bounds = array<i64: 1, 8, 32>}]} {
    %c0_i32 = arith.constant 0 : i32
    %0 = arith.cmpi eq, %arg1, %c0_i32 : i32
    %1 = arith.extui %0 : i1 to i32
    %c0_i32_0 = arith.constant 0 : i32
    %2 = arith.cmpi ne, %1, %c0_i32_0 : i32
    scf.if %2 {
      %c0_105 = arith.constant 0 : index
      %c0_106 = arith.constant 0 : index
      %c0_107 = arith.constant 0 : index
      %284 = vector.load %arg2[%c0_105, %c0_106, %c0_107] : memref<1x8x32xf32, #tpu.memory_space<vmem>>, vector<1x8x32xf32>
      %285 = vector.shape_cast %284 : vector<1x8x32xf32> to vector<8x32xf32>
      %c0_108 = arith.constant 0 : index
      %c0_109 = arith.constant 0 : index
      %c0_110 = arith.constant 0 : index
      %286 = vector.load %arg16[%c0_108, %c0_109, %c0_110] : memref<1x8x32xf32, #tpu.memory_space<vmem>>, vector<1x8x32xf32>
      %287 = vector.shape_cast %286 : vector<1x8x32xf32> to vector<8x32xf32>
      %288 = vector.shape_cast %285 : vector<8x32xf32> to vector<1x8x32xf32>
      tpu.vector_store %arg16[%c0_108, %c0_109, %c0_110], %288 {strides = array<i32>} : memref<1x8x32xf32, #tpu.memory_space<vmem>>, vector<1x8x32xf32>,
    } else {
    }
    %c0 = arith.constant 0 : index
    %c0_1 = arith.constant 0 : index
    %c0_2 = arith.constant 0 : index
    %3 = vector.load %arg16[%c0, %c0_1, %c0_2] : memref<1x8x32xf32, #tpu.memory_space<vmem>>, vector<1x8x32xf32>
    %4 = vector.shape_cast %3 : vector<1x8x32xf32> to vector<8x32xf32>
    %c0_3 = arith.constant 0 : index
    %c0_4 = arith.constant 0 : index
    %c0_5 = arith.constant 0 : index
    %5 = vector.load %arg3[%c0_3, %c0_4, %c0_5] : memref<1x1x8xf32, #tpu.memory_space<vmem>>, vector<1x1x8xf32>
    %6 = vector.shape_cast %5 : vector<1x1x8xf32> to vector<1x8xf32>
    %cst = arith.constant 0.000000e+00 : f32
    %7 = vector.broadcast %cst : f32 to vector<1x8xf32>
    %8 = arith.cmpf ogt, %6, %7 : vector<1x8xf32>
    %cst_6 = arith.constant 0.000000e+00 : f32
    %cst_7 = arith.constant -1.000000e+30 : f32
    %9 = vector.broadcast %cst_6 : f32 to vector<1x8xf32>
    %10 = vector.broadcast %cst_7 : f32 to vector<1x8xf32>
    %11 = arith.select %8, %9, %10 : vector<1x8xi1>, vector<1x8xf32>
    %12 = arith.truncf %4 : vector<8x32xf32> to vector<8x32xbf16>
    %c0_8 = arith.constant 0 : index
    %c0_9 = arith.constant 0 : index
    %c0_10 = arith.constant 0 : index
    %13 = vector.load %arg4[%c0_8, %c0_9, %c0_10] : memref<1x32x96xbf16, #tpu.memory_space<vmem>>, vector<1x32x96xbf16>
    %14 = vector.shape_cast %13 : vector<1x32x96xbf16> to vector<32x96xbf16>
    %cst_11 = arith.constant dense<0.000000e+00> : vector<8x96xf32>
    %15 = tpu.matmul %12, %14, %cst_11 {dimension_numbers = #tpu.dot_dimension_numbers<[1], [0], [0], [1], [0, 0, 1, 1], [], []>} : vector<8x32xbf16>, vector<32x96xbf16>, vector<8x96xf32> -> vector<8x96xf32>
    %c0_12 = arith.constant 0 : index
    %c0_13 = arith.constant 0 : index
    %c0_14 = arith.constant 0 : index
    %16 = vector.load %arg5[%c0_12, %c0_13, %c0_14] : memref<1x1x96xf32, #tpu.memory_space<vmem>>, vector<1x1x96xf32>
    %17 = vector.shape_cast %16 : vector<1x1x96xf32> to vector<1x96xf32>
    %18 = vector.broadcast %17 : vector<1x96xf32> to vector<8x96xf32>
    %19 = arith.addf %15, %18 : vector<8x96xf32>
    %20 = vector.extract_strided_slice %19 {offsets = [0, 0], sizes = [8, 4], strides = [1, 1]} : vector<8x96xf32> to vector<8x4xf32>
    %21 = arith.truncf %20 : vector<8x4xf32> to vector<8x4xbf16>
    %22 = vector.extract_strided_slice %19 {offsets = [0, 32], sizes = [8, 4], strides = [1, 1]} : vector<8x96xf32> to vector<8x4xf32>
    %23 = arith.truncf %22 : vector<8x4xf32> to vector<8x4xbf16>
    %24 = vector.extract_strided_slice %19 {offsets = [0, 64], sizes = [8, 4], strides = [1, 1]} : vector<8x96xf32> to vector<8x4xf32>
    %25 = arith.truncf %24 : vector<8x4xf32> to vector<8x4xbf16>
    %26 = tpu.transpose %23, [1, 0] : vector<8x4xbf16> -> vector<4x8xbf16>
    %cst_15 = arith.constant dense<0.000000e+00> : vector<8x8xf32>
    %27 = tpu.matmul %21, %26, %cst_15 {dimension_numbers = #tpu.dot_dimension_numbers<[1], [0], [0], [1], [0, 0, 1, 1], [], []>} : vector<8x4xbf16>, vector<4x8xbf16>, vector<8x8xf32> -> vector<8x8xf32>
    %28 = vector.broadcast %11 : vector<1x8xf32> to vector<8x8xf32>
    %29 = arith.addf %27, %28 : vector<8x8xf32>
    %cst_16 = arith.constant dense<0xFF800000> : vector<8xf32>
    %30 = vector.multi_reduction <maximumf>, %29, %cst_16 [1] : vector<8x8xf32> to vector<8xf32>
    %31 = vector.shape_cast %30 : vector<8xf32> to vector<8x1xf32>
    %32 = vector.broadcast %31 : vector<8x1xf32> to vector<8x8xf32>
    %33 = arith.subf %29, %32 : vector<8x8xf32>
    %34 = math.exp %33 : vector<8x8xf32>
    %cst_17 = arith.constant dense<0.000000e+00> : vector<8xf32>
    %35 = vector.multi_reduction <add>, %34, %cst_17 [1] : vector<8x8xf32> to vector<8xf32>
    %36 = vector.shape_cast %35 : vector<8xf32> to vector<8x1xf32>
    %37 = tpu.reciprocal %36 {approx = true} : vector<8x1xf32> -> vector<8x1xf32>
    %38 = vector.broadcast %37 : vector<8x1xf32> to vector<8x8xf32>
    %39 = arith.mulf %34, %38 : vector<8x8xf32>
    %40 = arith.truncf %39 : vector<8x8xf32> to vector<8x8xbf16>
    %cst_18 = arith.constant dense<0.000000e+00> : vector<8x4xf32>
    %41 = tpu.matmul %40, %25, %cst_18 {dimension_numbers = #tpu.dot_dimension_numbers<[1], [0], [0], [1], [0, 0, 1, 1], [], []>} : vector<8x8xbf16>, vector<8x4xbf16>, vector<8x4xf32> -> vector<8x4xf32>
    %c0_19 = arith.constant 0 : index
    %c0_20 = arith.constant 0 : index
    %42 = vector.load %arg17[%c0_19, %c0_20] : memref<8x32xf32, #tpu.memory_space<vmem>>, vector<8x4xf32>
    tpu.vector_store %arg17[%c0_19, %c0_20], %41 {strides = array<i32>} : memref<8x32xf32, #tpu.memory_space<vmem>>, vector<8x4xf32>,
    %43 = vector.extract_strided_slice %19 {offsets = [0, 4], sizes = [8, 4], strides = [1, 1]} : vector<8x96xf32> to vector<8x4xf32>
    %44 = arith.truncf %43 : vector<8x4xf32> to vector<8x4xbf16>
    %45 = vector.extract_strided_slice %19 {offsets = [0, 36], sizes = [8, 4], strides = [1, 1]} : vector<8x96xf32> to vector<8x4xf32>
    %46 = arith.truncf %45 : vector<8x4xf32> to vector<8x4xbf16>
    %47 = vector.extract_strided_slice %19 {offsets = [0, 68], sizes = [8, 4], strides = [1, 1]} : vector<8x96xf32> to vector<8x4xf32>
    %48 = arith.truncf %47 : vector<8x4xf32> to vector<8x4xbf16>
    %49 = tpu.transpose %46, [1, 0] : vector<8x4xbf16> -> vector<4x8xbf16>
    %cst_21 = arith.constant dense<0.000000e+00> : vector<8x8xf32>
    %50 = tpu.matmul %44, %49, %cst_21 {dimension_numbers = #tpu.dot_dimension_numbers<[1], [0], [0], [1], [0, 0, 1, 1], [], []>} : vector<8x4xbf16>, vector<4x8xbf16>, vector<8x8xf32> -> vector<8x8xf32>
    %51 = vector.broadcast %11 : vector<1x8xf32> to vector<8x8xf32>
    %52 = arith.addf %50, %51 : vector<8x8xf32>
    %cst_22 = arith.constant dense<0xFF800000> : vector<8xf32>
    %53 = vector.multi_reduction <maximumf>, %52, %cst_22 [1] : vector<8x8xf32> to vector<8xf32>
    %54 = vector.shape_cast %53 : vector<8xf32> to vector<8x1xf32>
    %55 = vector.broadcast %54 : vector<8x1xf32> to vector<8x8xf32>
    %56 = arith.subf %52, %55 : vector<8x8xf32>
    %57 = math.exp %56 : vector<8x8xf32>
    %cst_23 = arith.constant dense<0.000000e+00> : vector<8xf32>
    %58 = vector.multi_reduction <add>, %57, %cst_23 [1] : vector<8x8xf32> to vector<8xf32>
    %59 = vector.shape_cast %58 : vector<8xf32> to vector<8x1xf32>
    %60 = tpu.reciprocal %59 {approx = true} : vector<8x1xf32> -> vector<8x1xf32>
    %61 = vector.broadcast %60 : vector<8x1xf32> to vector<8x8xf32>
    %62 = arith.mulf %57, %61 : vector<8x8xf32>
    %63 = arith.truncf %62 : vector<8x8xf32> to vector<8x8xbf16>
    %cst_24 = arith.constant dense<0.000000e+00> : vector<8x4xf32>
    %64 = tpu.matmul %63, %48, %cst_24 {dimension_numbers = #tpu.dot_dimension_numbers<[1], [0], [0], [1], [0, 0, 1, 1], [], []>} : vector<8x8xbf16>, vector<8x4xbf16>, vector<8x4xf32> -> vector<8x4xf32>
    %c0_25 = arith.constant 0 : index
    %c4 = arith.constant 4 : index
    %65 = vector.load %arg17[%c0_25, %c4] : memref<8x32xf32, #tpu.memory_space<vmem>>, vector<8x4xf32>
    tpu.vector_store %arg17[%c0_25, %c4], %64 {strides = array<i32>} : memref<8x32xf32, #tpu.memory_space<vmem>>, vector<8x4xf32>,
    %66 = vector.extract_strided_slice %19 {offsets = [0, 8], sizes = [8, 4], strides = [1, 1]} : vector<8x96xf32> to vector<8x4xf32>
    %67 = arith.truncf %66 : vector<8x4xf32> to vector<8x4xbf16>
    %68 = vector.extract_strided_slice %19 {offsets = [0, 40], sizes = [8, 4], strides = [1, 1]} : vector<8x96xf32> to vector<8x4xf32>
    %69 = arith.truncf %68 : vector<8x4xf32> to vector<8x4xbf16>
    %70 = vector.extract_strided_slice %19 {offsets = [0, 72], sizes = [8, 4], strides = [1, 1]} : vector<8x96xf32> to vector<8x4xf32>
    %71 = arith.truncf %70 : vector<8x4xf32> to vector<8x4xbf16>
    %72 = tpu.transpose %69, [1, 0] : vector<8x4xbf16> -> vector<4x8xbf16>
    %cst_26 = arith.constant dense<0.000000e+00> : vector<8x8xf32>
    %73 = tpu.matmul %67, %72, %cst_26 {dimension_numbers = #tpu.dot_dimension_numbers<[1], [0], [0], [1], [0, 0, 1, 1], [], []>} : vector<8x4xbf16>, vector<4x8xbf16>, vector<8x8xf32> -> vector<8x8xf32>
    %74 = vector.broadcast %11 : vector<1x8xf32> to vector<8x8xf32>
    %75 = arith.addf %73, %74 : vector<8x8xf32>
    %cst_27 = arith.constant dense<0xFF800000> : vector<8xf32>
    %76 = vector.multi_reduction <maximumf>, %75, %cst_27 [1] : vector<8x8xf32> to vector<8xf32>
    %77 = vector.shape_cast %76 : vector<8xf32> to vector<8x1xf32>
    %78 = vector.broadcast %77 : vector<8x1xf32> to vector<8x8xf32>
    %79 = arith.subf %75, %78 : vector<8x8xf32>
    %80 = math.exp %79 : vector<8x8xf32>
    %cst_28 = arith.constant dense<0.000000e+00> : vector<8xf32>
    %81 = vector.multi_reduction <add>, %80, %cst_28 [1] : vector<8x8xf32> to vector<8xf32>
    %82 = vector.shape_cast %81 : vector<8xf32> to vector<8x1xf32>
    %83 = tpu.reciprocal %82 {approx = true} : vector<8x1xf32> -> vector<8x1xf32>
    %84 = vector.broadcast %83 : vector<8x1xf32> to vector<8x8xf32>
    %85 = arith.mulf %80, %84 : vector<8x8xf32>
    %86 = arith.truncf %85 : vector<8x8xf32> to vector<8x8xbf16>
    %cst_29 = arith.constant dense<0.000000e+00> : vector<8x4xf32>
    %87 = tpu.matmul %86, %71, %cst_29 {dimension_numbers = #tpu.dot_dimension_numbers<[1], [0], [0], [1], [0, 0, 1, 1], [], []>} : vector<8x8xbf16>, vector<8x4xbf16>, vector<8x4xf32> -> vector<8x4xf32>
    %c0_30 = arith.constant 0 : index
    %c8 = arith.constant 8 : index
    %88 = vector.load %arg17[%c0_30, %c8] : memref<8x32xf32, #tpu.memory_space<vmem>>, vector<8x4xf32>
    tpu.vector_store %arg17[%c0_30, %c8], %87 {strides = array<i32>} : memref<8x32xf32, #tpu.memory_space<vmem>>, vector<8x4xf32>,
    %89 = vector.extract_strided_slice %19 {offsets = [0, 12], sizes = [8, 4], strides = [1, 1]} : vector<8x96xf32> to vector<8x4xf32>
    %90 = arith.truncf %89 : vector<8x4xf32> to vector<8x4xbf16>
    %91 = vector.extract_strided_slice %19 {offsets = [0, 44], sizes = [8, 4], strides = [1, 1]} : vector<8x96xf32> to vector<8x4xf32>
    %92 = arith.truncf %91 : vector<8x4xf32> to vector<8x4xbf16>
    %93 = vector.extract_strided_slice %19 {offsets = [0, 76], sizes = [8, 4], strides = [1, 1]} : vector<8x96xf32> to vector<8x4xf32>
    %94 = arith.truncf %93 : vector<8x4xf32> to vector<8x4xbf16>
    %95 = tpu.transpose %92, [1, 0] : vector<8x4xbf16> -> vector<4x8xbf16>
    %cst_31 = arith.constant dense<0.000000e+00> : vector<8x8xf32>
    %96 = tpu.matmul %90, %95, %cst_31 {dimension_numbers = #tpu.dot_dimension_numbers<[1], [0], [0], [1], [0, 0, 1, 1], [], []>} : vector<8x4xbf16>, vector<4x8xbf16>, vector<8x8xf32> -> vector<8x8xf32>
    %97 = vector.broadcast %11 : vector<1x8xf32> to vector<8x8xf32>
    %98 = arith.addf %96, %97 : vector<8x8xf32>
    %cst_32 = arith.constant dense<0xFF800000> : vector<8xf32>
    %99 = vector.multi_reduction <maximumf>, %98, %cst_32 [1] : vector<8x8xf32> to vector<8xf32>
    %100 = vector.shape_cast %99 : vector<8xf32> to vector<8x1xf32>
    %101 = vector.broadcast %100 : vector<8x1xf32> to vector<8x8xf32>
    %102 = arith.subf %98, %101 : vector<8x8xf32>
    %103 = math.exp %102 : vector<8x8xf32>
    %cst_33 = arith.constant dense<0.000000e+00> : vector<8xf32>
    %104 = vector.multi_reduction <add>, %103, %cst_33 [1] : vector<8x8xf32> to vector<8xf32>
    %105 = vector.shape_cast %104 : vector<8xf32> to vector<8x1xf32>
    %106 = tpu.reciprocal %105 {approx = true} : vector<8x1xf32> -> vector<8x1xf32>
    %107 = vector.broadcast %106 : vector<8x1xf32> to vector<8x8xf32>
    %108 = arith.mulf %103, %107 : vector<8x8xf32>
    %109 = arith.truncf %108 : vector<8x8xf32> to vector<8x8xbf16>
    %cst_34 = arith.constant dense<0.000000e+00> : vector<8x4xf32>
    %110 = tpu.matmul %109, %94, %cst_34 {dimension_numbers = #tpu.dot_dimension_numbers<[1], [0], [0], [1], [0, 0, 1, 1], [], []>} : vector<8x8xbf16>, vector<8x4xbf16>, vector<8x4xf32> -> vector<8x4xf32>
    %c0_35 = arith.constant 0 : index
    %c12 = arith.constant 12 : index
    %111 = vector.load %arg17[%c0_35, %c12] : memref<8x32xf32, #tpu.memory_space<vmem>>, vector<8x4xf32>
    tpu.vector_store %arg17[%c0_35, %c12], %110 {strides = array<i32>} : memref<8x32xf32, #tpu.memory_space<vmem>>, vector<8x4xf32>,
    %112 = vector.extract_strided_slice %19 {offsets = [0, 16], sizes = [8, 4], strides = [1, 1]} : vector<8x96xf32> to vector<8x4xf32>
    %113 = arith.truncf %112 : vector<8x4xf32> to vector<8x4xbf16>
    %114 = vector.extract_strided_slice %19 {offsets = [0, 48], sizes = [8, 4], strides = [1, 1]} : vector<8x96xf32> to vector<8x4xf32>
    %115 = arith.truncf %114 : vector<8x4xf32> to vector<8x4xbf16>
    %116 = vector.extract_strided_slice %19 {offsets = [0, 80], sizes = [8, 4], strides = [1, 1]} : vector<8x96xf32> to vector<8x4xf32>
    %117 = arith.truncf %116 : vector<8x4xf32> to vector<8x4xbf16>
    %118 = tpu.transpose %115, [1, 0] : vector<8x4xbf16> -> vector<4x8xbf16>
    %cst_36 = arith.constant dense<0.000000e+00> : vector<8x8xf32>
    %119 = tpu.matmul %113, %118, %cst_36 {dimension_numbers = #tpu.dot_dimension_numbers<[1], [0], [0], [1], [0, 0, 1, 1], [], []>} : vector<8x4xbf16>, vector<4x8xbf16>, vector<8x8xf32> -> vector<8x8xf32>
    %120 = vector.broadcast %11 : vector<1x8xf32> to vector<8x8xf32>
    %121 = arith.addf %119, %120 : vector<8x8xf32>
    %cst_37 = arith.constant dense<0xFF800000> : vector<8xf32>
    %122 = vector.multi_reduction <maximumf>, %121, %cst_37 [1] : vector<8x8xf32> to vector<8xf32>
    %123 = vector.shape_cast %122 : vector<8xf32> to vector<8x1xf32>
    %124 = vector.broadcast %123 : vector<8x1xf32> to vector<8x8xf32>
    %125 = arith.subf %121, %124 : vector<8x8xf32>
    %126 = math.exp %125 : vector<8x8xf32>
    %cst_38 = arith.constant dense<0.000000e+00> : vector<8xf32>
    %127 = vector.multi_reduction <add>, %126, %cst_38 [1] : vector<8x8xf32> to vector<8xf32>
    %128 = vector.shape_cast %127 : vector<8xf32> to vector<8x1xf32>
    %129 = tpu.reciprocal %128 {approx = true} : vector<8x1xf32> -> vector<8x1xf32>
    %130 = vector.broadcast %129 : vector<8x1xf32> to vector<8x8xf32>
    %131 = arith.mulf %126, %130 : vector<8x8xf32>
    %132 = arith.truncf %131 : vector<8x8xf32> to vector<8x8xbf16>
    %cst_39 = arith.constant dense<0.000000e+00> : vector<8x4xf32>
    %133 = tpu.matmul %132, %117, %cst_39 {dimension_numbers = #tpu.dot_dimension_numbers<[1], [0], [0], [1], [0, 0, 1, 1], [], []>} : vector<8x8xbf16>, vector<8x4xbf16>, vector<8x4xf32> -> vector<8x4xf32>
    %c0_40 = arith.constant 0 : index
    %c16 = arith.constant 16 : index
    %134 = vector.load %arg17[%c0_40, %c16] : memref<8x32xf32, #tpu.memory_space<vmem>>, vector<8x4xf32>
    tpu.vector_store %arg17[%c0_40, %c16], %133 {strides = array<i32>} : memref<8x32xf32, #tpu.memory_space<vmem>>, vector<8x4xf32>,
    %135 = vector.extract_strided_slice %19 {offsets = [0, 20], sizes = [8, 4], strides = [1, 1]} : vector<8x96xf32> to vector<8x4xf32>
    %136 = arith.truncf %135 : vector<8x4xf32> to vector<8x4xbf16>
    %137 = vector.extract_strided_slice %19 {offsets = [0, 52], sizes = [8, 4], strides = [1, 1]} : vector<8x96xf32> to vector<8x4xf32>
    %138 = arith.truncf %137 : vector<8x4xf32> to vector<8x4xbf16>
    %139 = vector.extract_strided_slice %19 {offsets = [0, 84], sizes = [8, 4], strides = [1, 1]} : vector<8x96xf32> to vector<8x4xf32>
    %140 = arith.truncf %139 : vector<8x4xf32> to vector<8x4xbf16>
    %141 = tpu.transpose %138, [1, 0] : vector<8x4xbf16> -> vector<4x8xbf16>
    %cst_41 = arith.constant dense<0.000000e+00> : vector<8x8xf32>
    %142 = tpu.matmul %136, %141, %cst_41 {dimension_numbers = #tpu.dot_dimension_numbers<[1], [0], [0], [1], [0, 0, 1, 1], [], []>} : vector<8x4xbf16>, vector<4x8xbf16>, vector<8x8xf32> -> vector<8x8xf32>
    %143 = vector.broadcast %11 : vector<1x8xf32> to vector<8x8xf32>
    %144 = arith.addf %142, %143 : vector<8x8xf32>
    %cst_42 = arith.constant dense<0xFF800000> : vector<8xf32>
    %145 = vector.multi_reduction <maximumf>, %144, %cst_42 [1] : vector<8x8xf32> to vector<8xf32>
    %146 = vector.shape_cast %145 : vector<8xf32> to vector<8x1xf32>
    %147 = vector.broadcast %146 : vector<8x1xf32> to vector<8x8xf32>
    %148 = arith.subf %144, %147 : vector<8x8xf32>
    %149 = math.exp %148 : vector<8x8xf32>
    %cst_43 = arith.constant dense<0.000000e+00> : vector<8xf32>
    %150 = vector.multi_reduction <add>, %149, %cst_43 [1] : vector<8x8xf32> to vector<8xf32>
    %151 = vector.shape_cast %150 : vector<8xf32> to vector<8x1xf32>
    %152 = tpu.reciprocal %151 {approx = true} : vector<8x1xf32> -> vector<8x1xf32>
    %153 = vector.broadcast %152 : vector<8x1xf32> to vector<8x8xf32>
    %154 = arith.mulf %149, %153 : vector<8x8xf32>
    %155 = arith.truncf %154 : vector<8x8xf32> to vector<8x8xbf16>
    %cst_44 = arith.constant dense<0.000000e+00> : vector<8x4xf32>
    %156 = tpu.matmul %155, %140, %cst_44 {dimension_numbers = #tpu.dot_dimension_numbers<[1], [0], [0], [1], [0, 0, 1, 1], [], []>} : vector<8x8xbf16>, vector<8x4xbf16>, vector<8x4xf32> -> vector<8x4xf32>
    %c0_45 = arith.constant 0 : index
    %c20 = arith.constant 20 : index
    %157 = vector.load %arg17[%c0_45, %c20] : memref<8x32xf32, #tpu.memory_space<vmem>>, vector<8x4xf32>
    tpu.vector_store %arg17[%c0_45, %c20], %156 {strides = array<i32>} : memref<8x32xf32, #tpu.memory_space<vmem>>, vector<8x4xf32>,
    %158 = vector.extract_strided_slice %19 {offsets = [0, 24], sizes = [8, 4], strides = [1, 1]} : vector<8x96xf32> to vector<8x4xf32>
    %159 = arith.truncf %158 : vector<8x4xf32> to vector<8x4xbf16>
    %160 = vector.extract_strided_slice %19 {offsets = [0, 56], sizes = [8, 4], strides = [1, 1]} : vector<8x96xf32> to vector<8x4xf32>
    %161 = arith.truncf %160 : vector<8x4xf32> to vector<8x4xbf16>
    %162 = vector.extract_strided_slice %19 {offsets = [0, 88], sizes = [8, 4], strides = [1, 1]} : vector<8x96xf32> to vector<8x4xf32>
    %163 = arith.truncf %162 : vector<8x4xf32> to vector<8x4xbf16>
    %164 = tpu.transpose %161, [1, 0] : vector<8x4xbf16> -> vector<4x8xbf16>
    %cst_46 = arith.constant dense<0.000000e+00> : vector<8x8xf32>
    %165 = tpu.matmul %159, %164, %cst_46 {dimension_numbers = #tpu.dot_dimension_numbers<[1], [0], [0], [1], [0, 0, 1, 1], [], []>} : vector<8x4xbf16>, vector<4x8xbf16>, vector<8x8xf32> -> vector<8x8xf32>
    %166 = vector.broadcast %11 : vector<1x8xf32> to vector<8x8xf32>
    %167 = arith.addf %165, %166 : vector<8x8xf32>
    %cst_47 = arith.constant dense<0xFF800000> : vector<8xf32>
    %168 = vector.multi_reduction <maximumf>, %167, %cst_47 [1] : vector<8x8xf32> to vector<8xf32>
    %169 = vector.shape_cast %168 : vector<8xf32> to vector<8x1xf32>
    %170 = vector.broadcast %169 : vector<8x1xf32> to vector<8x8xf32>
    %171 = arith.subf %167, %170 : vector<8x8xf32>
    %172 = math.exp %171 : vector<8x8xf32>
    %cst_48 = arith.constant dense<0.000000e+00> : vector<8xf32>
    %173 = vector.multi_reduction <add>, %172, %cst_48 [1] : vector<8x8xf32> to vector<8xf32>
    %174 = vector.shape_cast %173 : vector<8xf32> to vector<8x1xf32>
    %175 = tpu.reciprocal %174 {approx = true} : vector<8x1xf32> -> vector<8x1xf32>
    %176 = vector.broadcast %175 : vector<8x1xf32> to vector<8x8xf32>
    %177 = arith.mulf %172, %176 : vector<8x8xf32>
    %178 = arith.truncf %177 : vector<8x8xf32> to vector<8x8xbf16>
    %cst_49 = arith.constant dense<0.000000e+00> : vector<8x4xf32>
    %179 = tpu.matmul %178, %163, %cst_49 {dimension_numbers = #tpu.dot_dimension_numbers<[1], [0], [0], [1], [0, 0, 1, 1], [], []>} : vector<8x8xbf16>, vector<8x4xbf16>, vector<8x4xf32> -> vector<8x4xf32>
    %c0_50 = arith.constant 0 : index
    %c24 = arith.constant 24 : index
    %180 = vector.load %arg17[%c0_50, %c24] : memref<8x32xf32, #tpu.memory_space<vmem>>, vector<8x4xf32>
    tpu.vector_store %arg17[%c0_50, %c24], %179 {strides = array<i32>} : memref<8x32xf32, #tpu.memory_space<vmem>>, vector<8x4xf32>,
    %181 = vector.extract_strided_slice %19 {offsets = [0, 28], sizes = [8, 4], strides = [1, 1]} : vector<8x96xf32> to vector<8x4xf32>
    %182 = arith.truncf %181 : vector<8x4xf32> to vector<8x4xbf16>
    %183 = vector.extract_strided_slice %19 {offsets = [0, 60], sizes = [8, 4], strides = [1, 1]} : vector<8x96xf32> to vector<8x4xf32>
    %184 = arith.truncf %183 : vector<8x4xf32> to vector<8x4xbf16>
    %185 = vector.extract_strided_slice %19 {offsets = [0, 92], sizes = [8, 4], strides = [1, 1]} : vector<8x96xf32> to vector<8x4xf32>
    %186 = arith.truncf %185 : vector<8x4xf32> to vector<8x4xbf16>
    %187 = tpu.transpose %184, [1, 0] : vector<8x4xbf16> -> vector<4x8xbf16>
    %cst_51 = arith.constant dense<0.000000e+00> : vector<8x8xf32>
    %188 = tpu.matmul %182, %187, %cst_51 {dimension_numbers = #tpu.dot_dimension_numbers<[1], [0], [0], [1], [0, 0, 1, 1], [], []>} : vector<8x4xbf16>, vector<4x8xbf16>, vector<8x8xf32> -> vector<8x8xf32>
    %189 = vector.broadcast %11 : vector<1x8xf32> to vector<8x8xf32>
    %190 = arith.addf %188, %189 : vector<8x8xf32>
    %cst_52 = arith.constant dense<0xFF800000> : vector<8xf32>
    %191 = vector.multi_reduction <maximumf>, %190, %cst_52 [1] : vector<8x8xf32> to vector<8xf32>
    %192 = vector.shape_cast %191 : vector<8xf32> to vector<8x1xf32>
    %193 = vector.broadcast %192 : vector<8x1xf32> to vector<8x8xf32>
    %194 = arith.subf %190, %193 : vector<8x8xf32>
    %195 = math.exp %194 : vector<8x8xf32>
    %cst_53 = arith.constant dense<0.000000e+00> : vector<8xf32>
    %196 = vector.multi_reduction <add>, %195, %cst_53 [1] : vector<8x8xf32> to vector<8xf32>
    %197 = vector.shape_cast %196 : vector<8xf32> to vector<8x1xf32>
    %198 = tpu.reciprocal %197 {approx = true} : vector<8x1xf32> -> vector<8x1xf32>
    %199 = vector.broadcast %198 : vector<8x1xf32> to vector<8x8xf32>
    %200 = arith.mulf %195, %199 : vector<8x8xf32>
    %201 = arith.truncf %200 : vector<8x8xf32> to vector<8x8xbf16>
    %cst_54 = arith.constant dense<0.000000e+00> : vector<8x4xf32>
    %202 = tpu.matmul %201, %186, %cst_54 {dimension_numbers = #tpu.dot_dimension_numbers<[1], [0], [0], [1], [0, 0, 1, 1], [], []>} : vector<8x8xbf16>, vector<8x4xbf16>, vector<8x4xf32> -> vector<8x4xf32>
    %c0_55 = arith.constant 0 : index
    %c28 = arith.constant 28 : index
    %203 = vector.load %arg17[%c0_55, %c28] : memref<8x32xf32, #tpu.memory_space<vmem>>, vector<8x4xf32>
    tpu.vector_store %arg17[%c0_55, %c28], %202 {strides = array<i32>} : memref<8x32xf32, #tpu.memory_space<vmem>>, vector<8x4xf32>,
    %c0_56 = arith.constant 0 : index
    %c0_57 = arith.constant 0 : index
    %204 = vector.load %arg17[%c0_56, %c0_57] : memref<8x32xf32, #tpu.memory_space<vmem>>, vector<8x32xf32>
    %205 = arith.truncf %204 : vector<8x32xf32> to vector<8x32xbf16>
    %c0_58 = arith.constant 0 : index
    %c0_59 = arith.constant 0 : index
    %c0_60 = arith.constant 0 : index
    %206 = vector.load %arg6[%c0_58, %c0_59, %c0_60] : memref<1x32x32xbf16, #tpu.memory_space<vmem>>, vector<1x32x32xbf16>
    %207 = vector.shape_cast %206 : vector<1x32x32xbf16> to vector<32x32xbf16>
    %cst_61 = arith.constant dense<0.000000e+00> : vector<8x32xf32>
    %208 = tpu.matmul %205, %207, %cst_61 {dimension_numbers = #tpu.dot_dimension_numbers<[1], [0], [0], [1], [0, 0, 1, 1], [], []>} : vector<8x32xbf16>, vector<32x32xbf16>, vector<8x32xf32> -> vector<8x32xf32>
    %c0_62 = arith.constant 0 : index
    %c0_63 = arith.constant 0 : index
    %c0_64 = arith.constant 0 : index
    %209 = vector.load %arg7[%c0_62, %c0_63, %c0_64] : memref<1x1x32xf32, #tpu.memory_space<vmem>>, vector<1x1x32xf32>
    %210 = vector.shape_cast %209 : vector<1x1x32xf32> to vector<1x32xf32>
    %211 = vector.broadcast %210 : vector<1x32xf32> to vector<8x32xf32>
    %212 = arith.addf %208, %211 : vector<8x32xf32>
    %213 = arith.addf %4, %212 : vector<8x32xf32>
    %c0_65 = arith.constant 0 : index
    %c0_66 = arith.constant 0 : index
    %c0_67 = arith.constant 0 : index
    %214 = vector.load %arg12[%c0_65, %c0_66, %c0_67] : memref<1x1x32xf32, #tpu.memory_space<vmem>>, vector<1x1x32xf32>
    %215 = vector.shape_cast %214 : vector<1x1x32xf32> to vector<1x32xf32>
    %c0_68 = arith.constant 0 : index
    %c0_69 = arith.constant 0 : index
    %c0_70 = arith.constant 0 : index
    %216 = vector.load %arg13[%c0_68, %c0_69, %c0_70] : memref<1x1x32xf32, #tpu.memory_space<vmem>>, vector<1x1x32xf32>
    %217 = vector.shape_cast %216 : vector<1x1x32xf32> to vector<1x32xf32>
    %cst_71 = arith.constant dense<0.000000e+00> : vector<8xf32>
    %218 = vector.multi_reduction <add>, %213, %cst_71 [1] : vector<8x32xf32> to vector<8xf32>
    %219 = vector.shape_cast %218 : vector<8xf32> to vector<8x1xf32>
    %cst_72 = arith.constant 3.200000e+01 : f32
    %220 = vector.broadcast %cst_72 : f32 to vector<8x1xf32>
    %221 = arith.divf %219, %220 : vector<8x1xf32>
    %222 = vector.broadcast %221 : vector<8x1xf32> to vector<8x32xf32>
    %223 = arith.subf %213, %222 : vector<8x32xf32>
    %224 = arith.mulf %223, %223 : vector<8x32xf32>
    %cst_73 = arith.constant dense<0.000000e+00> : vector<8xf32>
    %225 = vector.multi_reduction <add>, %224, %cst_73 [1] : vector<8x32xf32> to vector<8xf32>
    %226 = vector.shape_cast %225 : vector<8xf32> to vector<8x1xf32>
    %cst_74 = arith.constant 3.200000e+01 : f32
    %227 = vector.broadcast %cst_74 : f32 to vector<8x1xf32>
    %228 = arith.divf %226, %227 : vector<8x1xf32>
    %cst_75 = arith.constant 9.99999974E-6 : f32
    %229 = vector.broadcast %cst_75 : f32 to vector<8x1xf32>
    %230 = arith.addf %228, %229 : vector<8x1xf32>
    %231 = math.rsqrt %230 : vector<8x1xf32>
    %232 = vector.broadcast %231 : vector<8x1xf32> to vector<8x32xf32>
    %233 = arith.mulf %223, %232 : vector<8x32xf32>
    %234 = vector.broadcast %215 : vector<1x32xf32> to vector<8x32xf32>
    %235 = arith.mulf %233, %234 : vector<8x32xf32>
    %236 = vector.broadcast %217 : vector<1x32xf32> to vector<8x32xf32>
    %237 = arith.addf %235, %236 : vector<8x32xf32>
    %238 = arith.truncf %237 : vector<8x32xf32> to vector<8x32xbf16>
    %c0_76 = arith.constant 0 : index
    %c0_77 = arith.constant 0 : index
    %c0_78 = arith.constant 0 : index
    %239 = vector.load %arg8[%c0_76, %c0_77, %c0_78] : memref<1x32x2048xbf16, #tpu.memory_space<vmem>>, vector<1x32x2048xbf16>
    %240 = vector.shape_cast %239 : vector<1x32x2048xbf16> to vector<32x2048xbf16>
    %cst_79 = arith.constant dense<0.000000e+00> : vector<8x2048xf32>
    %241 = tpu.matmul %238, %240, %cst_79 {dimension_numbers = #tpu.dot_dimension_numbers<[1], [0], [0], [1], [0, 0, 1, 1], [], []>} : vector<8x32xbf16>, vector<32x2048xbf16>, vector<8x2048xf32> -> vector<8x2048xf32>
    %c0_80 = arith.constant 0 : index
    %c0_81 = arith.constant 0 : index
    %c0_82 = arith.constant 0 : index
    %242 = vector.load %arg9[%c0_80, %c0_81, %c0_82] : memref<1x1x2048xf32, #tpu.memory_space<vmem>>, vector<1x1x2048xf32>
    %243 = vector.shape_cast %242 : vector<1x1x2048xf32> to vector<1x2048xf32>
    %244 = vector.broadcast %243 : vector<1x2048xf32> to vector<8x2048xf32>
    %245 = arith.addf %241, %244 : vector<8x2048xf32>
    %cst_83 = arith.constant 0.000000e+00 : f32
    %246 = vector.broadcast %cst_83 : f32 to vector<8x2048xf32>
    %247 = arith.maximumf %245, %246 : vector<8x2048xf32>
    %248 = arith.truncf %247 : vector<8x2048xf32> to vector<8x2048xbf16>
    %c0_84 = arith.constant 0 : index
    %c0_85 = arith.constant 0 : index
    %c0_86 = arith.constant 0 : index
    %249 = vector.load %arg10[%c0_84, %c0_85, %c0_86] : memref<1x2048x32xbf16, #tpu.memory_space<vmem>>, vector<1x2048x32xbf16>
    %250 = vector.shape_cast %249 : vector<1x2048x32xbf16> to vector<2048x32xbf16>
    %cst_87 = arith.constant dense<0.000000e+00> : vector<8x32xf32>
    %251 = tpu.matmul %248, %250, %cst_87 {dimension_numbers = #tpu.dot_dimension_numbers<[1], [0], [0], [1], [0, 0, 1, 1], [], []>} : vector<8x2048xbf16>, vector<2048x32xbf16>, vector<8x32xf32> -> vector<8x32xf32>
    %c0_88 = arith.constant 0 : index
    %c0_89 = arith.constant 0 : index
    %c0_90 = arith.constant 0 : index
    %252 = vector.load %arg11[%c0_88, %c0_89, %c0_90] : memref<1x1x32xf32, #tpu.memory_space<vmem>>, vector<1x1x32xf32>
    %253 = vector.shape_cast %252 : vector<1x1x32xf32> to vector<1x32xf32>
    %254 = vector.broadcast %253 : vector<1x32xf32> to vector<8x32xf32>
    %255 = arith.addf %251, %254 : vector<8x32xf32>
    %256 = arith.addf %237, %255 : vector<8x32xf32>
    %c0_91 = arith.constant 0 : index
    %c0_92 = arith.constant 0 : index
    %c0_93 = arith.constant 0 : index
    %257 = vector.load %arg14[%c0_91, %c0_92, %c0_93] : memref<1x1x32xf32, #tpu.memory_space<vmem>>, vector<1x1x32xf32>
    %258 = vector.shape_cast %257 : vector<1x1x32xf32> to vector<1x32xf32>
    %c0_94 = arith.constant 0 : index
    %c0_95 = arith.constant 0 : index
    %c0_96 = arith.constant 0 : index
    %259 = vector.load %arg15[%c0_94, %c0_95, %c0_96] : memref<1x1x32xf32, #tpu.memory_space<vmem>>, vector<1x1x32xf32>
    %260 = vector.shape_cast %259 : vector<1x1x32xf32> to vector<1x32xf32>
    %cst_97 = arith.constant dense<0.000000e+00> : vector<8xf32>
    %261 = vector.multi_reduction <add>, %256, %cst_97 [1] : vector<8x32xf32> to vector<8xf32>
    %262 = vector.shape_cast %261 : vector<8xf32> to vector<8x1xf32>
    %cst_98 = arith.constant 3.200000e+01 : f32
    %263 = vector.broadcast %cst_98 : f32 to vector<8x1xf32>
    %264 = arith.divf %262, %263 : vector<8x1xf32>
    %265 = vector.broadcast %264 : vector<8x1xf32> to vector<8x32xf32>
    %266 = arith.subf %256, %265 : vector<8x32xf32>
    %267 = arith.mulf %266, %266 : vector<8x32xf32>
    %cst_99 = arith.constant dense<0.000000e+00> : vector<8xf32>
    %268 = vector.multi_reduction <add>, %267, %cst_99 [1] : vector<8x32xf32> to vector<8xf32>
    %269 = vector.shape_cast %268 : vector<8xf32> to vector<8x1xf32>
    %cst_100 = arith.constant 3.200000e+01 : f32
    %270 = vector.broadcast %cst_100 : f32 to vector<8x1xf32>
    %271 = arith.divf %269, %270 : vector<8x1xf32>
    %cst_101 = arith.constant 9.99999974E-6 : f32
    %272 = vector.broadcast %cst_101 : f32 to vector<8x1xf32>
    %273 = arith.addf %271, %272 : vector<8x1xf32>
    %274 = math.rsqrt %273 : vector<8x1xf32>
    %275 = vector.broadcast %274 : vector<8x1xf32> to vector<8x32xf32>
    %276 = arith.mulf %266, %275 : vector<8x32xf32>
    %277 = vector.broadcast %258 : vector<1x32xf32> to vector<8x32xf32>
    %278 = arith.mulf %276, %277 : vector<8x32xf32>
    %279 = vector.broadcast %260 : vector<1x32xf32> to vector<8x32xf32>
    %280 = arith.addf %278, %279 : vector<8x32xf32>
    %c0_102 = arith.constant 0 : index
    %c0_103 = arith.constant 0 : index
    %c0_104 = arith.constant 0 : index
    %281 = vector.load %arg16[%c0_102, %c0_103, %c0_104] : memref<1x8x32xf32, #tpu.memory_space<vmem>>, vector<1x8x32xf32>
    %282 = vector.shape_cast %281 : vector<1x8x32xf32> to vector<8x32xf32>
    %283 = vector.shape_cast %280 : vector<8x32xf32> to vector<1x8x32xf32>
    tpu.vector_store %arg16[%c0_102, %c0_103, %c0_104], %283 {strides = array<i32>} : memref<1x8x32xf32, #tpu.memory_space<vmem>>, vector<1x8x32xf32>,
    return
  }
  func.func @transform_0(%arg0: i32, %arg1: i32) -> (i32, i32, i32) {
    %c0_i32 = arith.constant 0 : i32
    %c0_i32_0 = arith.constant 0 : i32
    %c0_i32_1 = arith.constant 0 : i32
    return %arg0, %c0_i32, %c0_i32_0 : i32, i32, i32
  }
  func.func @transform_1(%arg0: i32, %arg1: i32) -> (i32, i32, i32) {
    %c0_i32 = arith.constant 0 : i32
    %c0_i32_0 = arith.constant 0 : i32
    %c0_i32_1 = arith.constant 0 : i32
    return %arg0, %c0_i32, %c0_i32_0 : i32, i32, i32
  }
  func.func @transform_2(%arg0: i32, %arg1: i32) -> (i32, i32, i32) {
    %c0_i32 = arith.constant 0 : i32
    %c0_i32_0 = arith.constant 0 : i32
    %c0_i32_1 = arith.constant 0 : i32
    return %arg1, %c0_i32, %c0_i32_0 : i32, i32, i32
  }
  func.func @transform_3(%arg0: i32, %arg1: i32) -> (i32, i32, i32) {
    %c0_i32 = arith.constant 0 : i32
    %c0_i32_0 = arith.constant 0 : i32
    %c0_i32_1 = arith.constant 0 : i32
    return %arg1, %c0_i32, %c0_i32_0 : i32, i32, i32
  }
  func.func @transform_4(%arg0: i32, %arg1: i32) -> (i32, i32, i32) {
    %c0_i32 = arith.constant 0 : i32
    %c0_i32_0 = arith.constant 0 : i32
    %c0_i32_1 = arith.constant 0 : i32
    return %arg1, %c0_i32, %c0_i32_0 : i32, i32, i32
  }
  func.func @transform_5(%arg0: i32, %arg1: i32) -> (i32, i32, i32) {
    %c0_i32 = arith.constant 0 : i32
    %c0_i32_0 = arith.constant 0 : i32
    %c0_i32_1 = arith.constant 0 : i32
    return %arg1, %c0_i32, %c0_i32_0 : i32, i32, i32
  }
  func.func @transform_6(%arg0: i32, %arg1: i32) -> (i32, i32, i32) {
    %c0_i32 = arith.constant 0 : i32
    %c0_i32_0 = arith.constant 0 : i32
    %c0_i32_1 = arith.constant 0 : i32
    return %arg1, %c0_i32, %c0_i32_0 : i32, i32, i32
  }
  func.func @transform_7(%arg0: i32, %arg1: i32) -> (i32, i32, i32) {
    %c0_i32 = arith.constant 0 : i32
    %c0_i32_0 = arith.constant 0 : i32
    %c0_i32_1 = arith.constant 0 : i32
    return %arg1, %c0_i32, %c0_i32_0 : i32, i32, i32
  }
  func.func @transform_8(%arg0: i32, %arg1: i32) -> (i32, i32, i32) {
    %c0_i32 = arith.constant 0 : i32
    %c0_i32_0 = arith.constant 0 : i32
    %c0_i32_1 = arith.constant 0 : i32
    return %arg1, %c0_i32, %c0_i32_0 : i32, i32, i32
  }
  func.func @transform_9(%arg0: i32, %arg1: i32) -> (i32, i32, i32) {
    %c0_i32 = arith.constant 0 : i32
    %c0_i32_0 = arith.constant 0 : i32
    %c0_i32_1 = arith.constant 0 : i32
    return %arg1, %c0_i32, %c0_i32_0 : i32, i32, i32
  }
  func.func @transform_10(%arg0: i32, %arg1: i32) -> (i32, i32, i32) {
    %c0_i32 = arith.constant 0 : i32
    %c0_i32_0 = arith.constant 0 : i32
    %c0_i32_1 = arith.constant 0 : i32
    return %arg1, %c0_i32, %c0_i32_0 : i32, i32, i32
  }
  func.func @transform_11(%arg0: i32, %arg1: i32) -> (i32, i32, i32) {
    %c0_i32 = arith.constant 0 : i32
    %c0_i32_0 = arith.constant 0 : i32
    %c0_i32_1 = arith.constant 0 : i32
    return %arg1, %c0_i32, %c0_i32_0 : i32, i32, i32
  }
  func.func @transform_12(%arg0: i32, %arg1: i32) -> (i32, i32, i32) {
    %c0_i32 = arith.constant 0 : i32
    %c0_i32_0 = arith.constant 0 : i32
    %c0_i32_1 = arith.constant 0 : i32
    return %arg1, %c0_i32, %c0_i32_0 : i32, i32, i32
  }
  func.func @transform_13(%arg0: i32, %arg1: i32) -> (i32, i32, i32) {
    %c0_i32 = arith.constant 0 : i32
    %c0_i32_0 = arith.constant 0 : i32
    %c0_i32_1 = arith.constant 0 : i32
    return %arg1, %c0_i32, %c0_i32_0 : i32, i32, i32
  }
  func.func @transform_14(%arg0: i32, %arg1: i32) -> (i32, i32, i32) {
    %c0_i32 = arith.constant 0 : i32
    %c0_i32_0 = arith.constant 0 : i32
    %c0_i32_1 = arith.constant 0 : i32
    return %arg0, %c0_i32, %c0_i32_0 : i32, i32, i32
  }
}

</mosaic_0001>

<llo_original>
// kernel: trans_encoder_forward.1
$region0: #{trans_encoder_forward.1}
  #allocation0 [shape = 'u32[]', space=smem, size = 0x4, offset = 0x4, fixed_abs, tag = 'smem constant byte address 0x4 - core index']
  #allocation1 [shape = 'u32[144,128]{1,0:T(1,128)}', space=vmem, size = 0x12000, scoped, tag = 'internal scratch']
  #allocation2 [shape = 'f32[8,32]{1,0:T(8,128)}', space=vmem, size = 0x1000, scoped, tag = 'scratch operand']
  %s0 = inlined_call_operand.vmem [shape: f32[2,8,32], index: 0, kind: input, shape index: {}]
  %s1 = inlined_call_operand.vmem [shape: f32[2,1,8], index: 1, kind: input, shape index: {}]
  %s2 = inlined_call_operand.vmem [shape: bf16[2,32,96], index: 2, kind: input, shape index: {}]
  %s3 = inlined_call_operand.vmem [shape: f32[2,1,96], index: 3, kind: input, shape index: {}]
  %s4 = inlined_call_operand.vmem [shape: bf16[2,32,32], index: 4, kind: input, shape index: {}]
  %s5 = inlined_call_operand.vmem [shape: f32[2,1,32], index: 5, kind: input, shape index: {}]
  %s6 = inlined_call_operand.vmem [shape: bf16[2,32,2048], index: 6, kind: input, shape index: {}]
  %s7 = inlined_call_operand.vmem [shape: f32[2,1,2048], index: 7, kind: input, shape index: {}]
  %s8 = inlined_call_operand.vmem [shape: bf16[2,2048,32], index: 8, kind: input, shape index: {}]
  %s9 = inlined_call_operand.vmem [shape: f32[2,1,32], index: 9, kind: input, shape index: {}]
  %s10 = inlined_call_operand.vmem [shape: f32[2,1,32], index: 10, kind: input, shape index: {}]
  %s11 = inlined_call_operand.vmem [shape: f32[2,1,32], index: 11, kind: input, shape index: {}]
  %s12 = inlined_call_operand.vmem [shape: f32[2,1,32], index: 12, kind: input, shape index: {}]
  %s13 = inlined_call_operand.vmem [shape: f32[2,1,32], index: 13, kind: input, shape index: {}]
  %s14 = inlined_call_operand.vmem [shape: f32[2,8,32], index: 14, kind: output, shape index: {}]
  %s15 = sld [smem:[#allocation0]]
  $region93: #{trans_encoder_forward.1} parent=0
    _
  %s17 = ssub.s32 1, %s15
  %s18 = scalar_select 0, %s17, %s15
  loop: start=0, step=1, limit=6
  $region2: #{trans_encoder_forward.1} parent=0 // loop_pre_header
    _
  $region3: #{trans_encoder_forward.1} parent=0 // loop_header
    %s20 = sphi 0, %s24
    %p21 = scmp.ge.s32.totalorder %s20, 6
    %s27 = sphi 0, %s39
    %s28 = sphi 0, %s35
    %s29 = sphi 0, %s27
    %s30 = sphi 0, %s28
    %s31 = sphi 0, %s29
    %s32 = sphi 0, %s30
    %s42 = sphi 0, %s44
    %s45 = sphi 0, %s42
    %s46 = sphi 0, %s45
    %s62 = sphi 0, %s46
    %s68 = sphi 0, %s70
    %s71 = sphi 0, %s68
    %s72 = sphi 0, %s71
    %s88 = sphi 0, %s72
    %s94 = sphi 0, %s96
    %s97 = sphi 0, %s94
    %s98 = sphi 0, %s97
    %s114 = sphi 0, %s98
    %s120 = sphi 0, %s122
    %s123 = sphi 0, %s120
    %s124 = sphi 0, %s123
    %s140 = sphi 0, %s124
    %s146 = sphi 0, %s148
    %s149 = sphi 0, %s146
    %s150 = sphi 0, %s149
    %s166 = sphi 0, %s150
    %s172 = sphi 0, %s174
    %s175 = sphi 0, %s172
    %s176 = sphi 0, %s175
    %s192 = sphi 0, %s176
    %s198 = sphi 0, %s200
    %s201 = sphi 0, %s198
    %s202 = sphi 0, %s201
    %s218 = sphi 0, %s202
    %s224 = sphi 0, %s226
    %s227 = sphi 0, %s224
    %s228 = sphi 0, %s227
    %s244 = sphi 0, %s228
    %s250 = sphi 0, %s252
    %s253 = sphi 0, %s250
    %s254 = sphi 0, %s253
    %s270 = sphi 0, %s254
    %s276 = sphi 0, %s278
    %s279 = sphi 0, %s276
    %s280 = sphi 0, %s279
    %s296 = sphi 0, %s280
    %s302 = sphi 0, %s304
    %s305 = sphi 0, %s302
    %s306 = sphi 0, %s305
    %s322 = sphi 0, %s306
    %s328 = sphi 0, %s330
    %s331 = sphi 0, %s328
    %s332 = sphi 0, %s331
    %s348 = sphi 0, %s332
    %s354 = sphi 0, %s356
    %s357 = sphi 0, %s354
    %s358 = sphi 0, %s357
    %s374 = sphi 0, %s358
    %s380 = sphi 0, %s382
    %s383 = sphi 0, %s380
    %s384 = sphi 0, %s383
    %s400 = sphi 0, %s384
    %s406 = sphi 0, %s408
    %s409 = sphi 0, %s406
    %s410 = sphi 0, %s409
    %s426 = sphi 0, %s410
  $region4: #{trans_encoder_forward.1} parent=0 // loop_header_branch
    %23 = sbr.rel (%p21) target = $region8
  $region5: #{trans_encoder_forward.1} parent=0 // loop_body
    %s25 = ssub.s32 %s20, 1
    %s26 = ssub.s32 %s20, 2
    %s33 = sadd.s32 1, %s28
    %p34 = scmp.ge.s32.totalorder %s33, 2
    %s35 = scalar_select %p34, 0, %s33
    %s36 = sadd.s32 1, %s27
    %s37 = scalar_select %p34, %s36, %s27
    %p38 = scmp.ge.s32.totalorder %s37, 2
    %s39 = scalar_select %p38, 0, %s37
    %s40 = ssub.s32 %s27, %s39
    %p41 = scmp.eq.s32.totalorder %s40, 0
    %s43 = sadd.s32 %s42, 1
    %s44 = scalar_select %p41, %s42, %s43
    %p47 = pneg %p41
    %p48 = scmp.eq.s32.totalorder %s20, 3
    %p49 = por %p47, %p48
    %p50 = scmp.ne.s32.totalorder %s42, %s45
    %p51 = scmp.eq.s32.totalorder %s20, 0
    %p52 = por %p50, %p51
    %p53 = scmp.ne.s32.totalorder %s42, %s45
    %p54 = scmp.eq.s32.totalorder %s25, 3
    %p55 = por %p53, %p54
    %p56 = scmp.ne.s32.totalorder %s45, %s46
    %p57 = scmp.eq.s32.totalorder %s25, 0
    %p58 = por %p56, %p57
    %p59 = scmp.ne.s32.totalorder %s45, %s46
    %p60 = scmp.eq.s32.totalorder %s26, 3
    %p61 = por %p59, %p60
    %p63 = scmp.ne.s32.totalorder %s46, %s62
    %p64 = scmp.eq.s32.totalorder %s26, 0
    %p65 = por %p63, %p64
    %s66 = ssub.s32 %s27, %s39
    %p67 = scmp.eq.s32.totalorder %s66, 0
    %s69 = sadd.s32 %s68, 1
    %s70 = scalar_select %p67, %s68, %s69
    %p73 = pneg %p67
    %p74 = scmp.eq.s32.totalorder %s20, 3
    %p75 = por %p73, %p74
    %p76 = scmp.ne.s32.totalorder %s68, %s71
    %p77 = scmp.eq.s32.totalorder %s20, 0
    %p78 = por %p76, %p77
    %p79 = scmp.ne.s32.totalorder %s68, %s71
    %p80 = scmp.eq.s32.totalorder %s25, 3
    %p81 = por %p79, %p80
    %p82 = scmp.ne.s32.totalorder %s71, %s72
    %p83 = scmp.eq.s32.totalorder %s25, 0
    %p84 = por %p82, %p83
    %p85 = scmp.ne.s32.totalorder %s71, %s72
    %p86 = scmp.eq.s32.totalorder %s26, 3
    %p87 = por %p85, %p86
    %p89 = scmp.ne.s32.totalorder %s72, %s88
    %p90 = scmp.eq.s32.totalorder %s26, 0
    %p91 = por %p89, %p90
    %s92 = ssub.s32 %s28, %s35
    %p93 = scmp.eq.s32.totalorder %s92, 0
    %s95 = sadd.s32 %s94, 1
    %s96 = scalar_select %p93, %s94, %s95
    %p99 = pneg %p93
    %p100 = scmp.eq.s32.totalorder %s20, 3
    %p101 = por %p99, %p100
    %p102 = scmp.ne.s32.totalorder %s94, %s97
    %p103 = scmp.eq.s32.totalorder %s20, 0
    %p104 = por %p102, %p103
    %p105 = scmp.ne.s32.totalorder %s94, %s97
    %p106 = scmp.eq.s32.totalorder %s25, 3
    %p107 = por %p105, %p106
    %p108 = scmp.ne.s32.totalorder %s97, %s98
    %p109 = scmp.eq.s32.totalorder %s25, 0
    %p110 = por %p108, %p109
    %p111 = scmp.ne.s32.totalorder %s97, %s98
    %p112 = scmp.eq.s32.totalorder %s26, 3
    %p113 = por %p111, %p112
    %p115 = scmp.ne.s32.totalorder %s98, %s114
    %p116 = scmp.eq.s32.totalorder %s26, 0
    %p117 = por %p115, %p116
    %s118 = ssub.s32 %s28, %s35
    %p119 = scmp.eq.s32.totalorder %s118, 0
    %s121 = sadd.s32 %s120, 1
    %s122 = scalar_select %p119, %s120, %s121
    %p125 = pneg %p119
    %p126 = scmp.eq.s32.totalorder %s20, 3
    %p127 = por %p125, %p126
    %p128 = scmp.ne.s32.totalorder %s120, %s123
    %p129 = scmp.eq.s32.totalorder %s20, 0
    %p130 = por %p128, %p129
    %p131 = scmp.ne.s32.totalorder %s120, %s123
    %p132 = scmp.eq.s32.totalorder %s25, 3
    %p133 = por %p131, %p132
    %p134 = scmp.ne.s32.totalorder %s123, %s124
    %p135 = scmp.eq.s32.totalorder %s25, 0
    %p136 = por %p134, %p135
    %p137 = scmp.ne.s32.totalorder %s123, %s124
    %p138 = scmp.eq.s32.totalorder %s26, 3
    %p139 = por %p137, %p138
    %p141 = scmp.ne.s32.totalorder %s124, %s140
    %p142 = scmp.eq.s32.totalorder %s26, 0
    %p143 = por %p141, %p142
    %s144 = ssub.s32 %s28, %s35
    %p145 = scmp.eq.s32.totalorder %s144, 0
    %s147 = sadd.s32 %s146, 1
    %s148 = scalar_select %p145, %s146, %s147
    %p151 = pneg %p145
    %p152 = scmp.eq.s32.totalorder %s20, 3
    %p153 = por %p151, %p152
    %p154 = scmp.ne.s32.totalorder %s146, %s149
    %p155 = scmp.eq.s32.totalorder %s20, 0
    %p156 = por %p154, %p155
    %p157 = scmp.ne.s32.totalorder %s146, %s149
    %p158 = scmp.eq.s32.totalorder %s25, 3
    %p159 = por %p157, %p158
    %p160 = scmp.ne.s32.totalorder %s149, %s150
    %p161 = scmp.eq.s32.totalorder %s25, 0
    %p162 = por %p160, %p161
    %p163 = scmp.ne.s32.totalorder %s149, %s150
    %p164 = scmp.eq.s32.totalorder %s26, 3
    %p165 = por %p163, %p164
    %p167 = scmp.ne.s32.totalorder %s150, %s166
    %p168 = scmp.eq.s32.totalorder %s26, 0
    %p169 = por %p167, %p168
    %s170 = ssub.s32 %s28, %s35
    %p171 = scmp.eq.s32.totalorder %s170, 0
    %s173 = sadd.s32 %s172, 1
    %s174 = scalar_select %p171, %s172, %s173
    %p177 = pneg %p171
    %p178 = scmp.eq.s32.totalorder %s20, 3
    %p179 = por %p177, %p178
    %p180 = scmp.ne.s32.totalorder %s172, %s175
    %p181 = scmp.eq.s32.totalorder %s20, 0
    %p182 = por %p180, %p181
    %p183 = scmp.ne.s32.totalorder %s172, %s175
    %p184 = scmp.eq.s32.totalorder %s25, 3
    %p185 = por %p183, %p184
    %p186 = scmp.ne.s32.totalorder %s175, %s176
    %p187 = scmp.eq.s32.totalorder %s25, 0
    %p188 = por %p186, %p187
    %p189 = scmp.ne.s32.totalorder %s175, %s176
    %p190 = scmp.eq.s32.totalorder %s26, 3
    %p191 = por %p189, %p190
    %p193 = scmp.ne.s32.totalorder %s176, %s192
    %p194 = scmp.eq.s32.totalorder %s26, 0
    %p195 = por %p193, %p194
    %s196 = ssub.s32 %s28, %s35
    %p197 = scmp.eq.s32.totalorder %s196, 0
    %s199 = sadd.s32 %s198, 1
    %s200 = scalar_select %p197, %s198, %s199
    %p203 = pneg %p197
    %p204 = scmp.eq.s32.totalorder %s20, 3
    %p205 = por %p203, %p204
    %p206 = scmp.ne.s32.totalorder %s198, %s201
    %p207 = scmp.eq.s32.totalorder %s20, 0
    %p208 = por %p206, %p207
    %p209 = scmp.ne.s32.totalorder %s198, %s201
    %p210 = scmp.eq.s32.totalorder %s25, 3
    %p211 = por %p209, %p210
    %p212 = scmp.ne.s32.totalorder %s201, %s202
    %p213 = scmp.eq.s32.totalorder %s25, 0
    %p214 = por %p212, %p213
    %p215 = scmp.ne.s32.totalorder %s201, %s202
    %p216 = scmp.eq.s32.totalorder %s26, 3
    %p217 = por %p215, %p216
    %p219 = scmp.ne.s32.totalorder %s202, %s218
    %p220 = scmp.eq.s32.totalorder %s26, 0
    %p221 = por %p219, %p220
    %s222 = ssub.s32 %s28, %s35
    %p223 = scmp.eq.s32.totalorder %s222, 0
    %s225 = sadd.s32 %s224, 1
    %s226 = scalar_select %p223, %s224, %s225
    %p229 = pneg %p223
    %p230 = scmp.eq.s32.totalorder %s20, 3
    %p231 = por %p229, %p230
    %p232 = scmp.ne.s32.totalorder %s224, %s227
    %p233 = scmp.eq.s32.totalorder %s20, 0
    %p234 = por %p232, %p233
    %p235 = scmp.ne.s32.totalorder %s224, %s227
    %p236 = scmp.eq.s32.totalorder %s25, 3
    %p237 = por %p235, %p236
    %p238 = scmp.ne.s32.totalorder %s227, %s228
    %p239 = scmp.eq.s32.totalorder %s25, 0
    %p240 = por %p238, %p239
    %p241 = scmp.ne.s32.totalorder %s227, %s228
    %p242 = scmp.eq.s32.totalorder %s26, 3
    %p243 = por %p241, %p242
    %p245 = scmp.ne.s32.totalorder %s228, %s244
    %p246 = scmp.eq.s32.totalorder %s26, 0
    %p247 = por %p245, %p246
    %s248 = ssub.s32 %s28, %s35
    %p249 = scmp.eq.s32.totalorder %s248, 0
    %s251 = sadd.s32 %s250, 1
    %s252 = scalar_select %p249, %s250, %s251
    %p255 = pneg %p249
    %p256 = scmp.eq.s32.totalorder %s20, 3
    %p257 = por %p255, %p256
    %p258 = scmp.ne.s32.totalorder %s250, %s253
    %p259 = scmp.eq.s32.totalorder %s20, 0
    %p260 = por %p258, %p259
    %p261 = scmp.ne.s32.totalorder %s250, %s253
    %p262 = scmp.eq.s32.totalorder %s25, 3
    %p263 = por %p261, %p262
    %p264 = scmp.ne.s32.totalorder %s253, %s254
    %p265 = scmp.eq.s32.totalorder %s25, 0
    %p266 = por %p264, %p265
    %p267 = scmp.ne.s32.totalorder %s253, %s254
    %p268 = scmp.eq.s32.totalorder %s26, 3
    %p269 = por %p267, %p268
    %p271 = scmp.ne.s32.totalorder %s254, %s270
    %p272 = scmp.eq.s32.totalorder %s26, 0
    %p273 = por %p271, %p272
    %s274 = ssub.s32 %s28, %s35
    %p275 = scmp.eq.s32.totalorder %s274, 0
    %s277 = sadd.s32 %s276, 1
    %s278 = scalar_select %p275, %s276, %s277
    %p281 = pneg %p275
    %p282 = scmp.eq.s32.totalorder %s20, 3
    %p283 = por %p281, %p282
    %p284 = scmp.ne.s32.totalorder %s276, %s279
    %p285 = scmp.eq.s32.totalorder %s20, 0
    %p286 = por %p284, %p285
    %p287 = scmp.ne.s32.totalorder %s276, %s279
    %p288 = scmp.eq.s32.totalorder %s25, 3
    %p289 = por %p287, %p288
    %p290 = scmp.ne.s32.totalorder %s279, %s280
    %p291 = scmp.eq.s32.totalorder %s25, 0
    %p292 = por %p290, %p291
    %p293 = scmp.ne.s32.totalorder %s279, %s280
    %p294 = scmp.eq.s32.totalorder %s26, 3
    %p295 = por %p293, %p294
    %p297 = scmp.ne.s32.totalorder %s280, %s296
    %p298 = scmp.eq.s32.totalorder %s26, 0
    %p299 = por %p297, %p298
    %s300 = ssub.s32 %s28, %s35
    %p301 = scmp.eq.s32.totalorder %s300, 0
    %s303 = sadd.s32 %s302, 1
    %s304 = scalar_select %p301, %s302, %s303
    %p307 = pneg %p301
    %p308 = scmp.eq.s32.totalorder %s20, 3
    %p309 = por %p307, %p308
    %p310 = scmp.ne.s32.totalorder %s302, %s305
    %p311 = scmp.eq.s32.totalorder %s20, 0
    %p312 = por %p310, %p311
    %p313 = scmp.ne.s32.totalorder %s302, %s305
    %p314 = scmp.eq.s32.totalorder %s25, 3
    %p315 = por %p313, %p314
    %p316 = scmp.ne.s32.totalorder %s305, %s306
    %p317 = scmp.eq.s32.totalorder %s25, 0
    %p318 = por %p316, %p317
    %p319 = scmp.ne.s32.totalorder %s305, %s306
    %p320 = scmp.eq.s32.totalorder %s26, 3
    %p321 = por %p319, %p320
    %p323 = scmp.ne.s32.totalorder %s306, %s322
    %p324 = scmp.eq.s32.totalorder %s26, 0
    %p325 = por %p323, %p324
    %s326 = ssub.s32 %s28, %s35
    %p327 = scmp.eq.s32.totalorder %s326, 0
    %s329 = sadd.s32 %s328, 1
    %s330 = scalar_select %p327, %s328, %s329
    %p333 = pneg %p327
    %p334 = scmp.eq.s32.totalorder %s20, 3
    %p335 = por %p333, %p334
    %p336 = scmp.ne.s32.totalorder %s328, %s331
    %p337 = scmp.eq.s32.totalorder %s20, 0
    %p338 = por %p336, %p337
    %p339 = scmp.ne.s32.totalorder %s328, %s331
    %p340 = scmp.eq.s32.totalorder %s25, 3
    %p341 = por %p339, %p340
    %p342 = scmp.ne.s32.totalorder %s331, %s332
    %p343 = scmp.eq.s32.totalorder %s25, 0
    %p344 = por %p342, %p343
    %p345 = scmp.ne.s32.totalorder %s331, %s332
    %p346 = scmp.eq.s32.totalorder %s26, 3
    %p347 = por %p345, %p346
    %p349 = scmp.ne.s32.totalorder %s332, %s348
    %p350 = scmp.eq.s32.totalorder %s26, 0
    %p351 = por %p349, %p350
    %s352 = ssub.s32 %s28, %s35
    %p353 = scmp.eq.s32.totalorder %s352, 0
    %s355 = sadd.s32 %s354, 1
    %s356 = scalar_select %p353, %s354, %s355
    %p359 = pneg %p353
    %p360 = scmp.eq.s32.totalorder %s20, 3
    %p361 = por %p359, %p360
    %p362 = scmp.ne.s32.totalorder %s354, %s357
    %p363 = scmp.eq.s32.totalorder %s20, 0
    %p364 = por %p362, %p363
    %p365 = scmp.ne.s32.totalorder %s354, %s357
    %p366 = scmp.eq.s32.totalorder %s25, 3
    %p367 = por %p365, %p366
    %p368 = scmp.ne.s32.totalorder %s357, %s358
    %p369 = scmp.eq.s32.totalorder %s25, 0
    %p370 = por %p368, %p369
    %p371 = scmp.ne.s32.totalorder %s357, %s358
    %p372 = scmp.eq.s32.totalorder %s26, 3
    %p373 = por %p371, %p372
    %p375 = scmp.ne.s32.totalorder %s358, %s374
    %p376 = scmp.eq.s32.totalorder %s26, 0
    %p377 = por %p375, %p376
    %s378 = ssub.s32 %s28, %s35
    %p379 = scmp.eq.s32.totalorder %s378, 0
    %s381 = sadd.s32 %s380, 1
    %s382 = scalar_select %p379, %s380, %s381
    %p385 = pneg %p379
    %p386 = scmp.eq.s32.totalorder %s20, 3
    %p387 = por %p385, %p386
    %p388 = scmp.ne.s32.totalorder %s380, %s383
    %p389 = scmp.eq.s32.totalorder %s20, 0
    %p390 = por %p388, %p389
    %p391 = scmp.ne.s32.totalorder %s380, %s383
    %p392 = scmp.eq.s32.totalorder %s25, 3
    %p393 = por %p391, %p392
    %p394 = scmp.ne.s32.totalorder %s383, %s384
    %p395 = scmp.eq.s32.totalorder %s25, 0
    %p396 = por %p394, %p395
    %p397 = scmp.ne.s32.totalorder %s383, %s384
    %p398 = scmp.eq.s32.totalorder %s26, 3
    %p399 = por %p397, %p398
    %p401 = scmp.ne.s32.totalorder %s384, %s400
    %p402 = scmp.eq.s32.totalorder %s26, 0
    %p403 = por %p401, %p402
    %s404 = ssub.s32 %s27, %s39
    %p405 = scmp.eq.s32.totalorder %s404, 0
    %s407 = sadd.s32 %s406, 1
    %s408 = scalar_select %p405, %s406, %s407
    %p411 = pneg %p405
    %p412 = scmp.eq.s32.totalorder %s20, 3
    %p413 = por %p411, %p412
    %p414 = scmp.ne.s32.totalorder %s406, %s409
    %p415 = scmp.eq.s32.totalorder %s20, 0
    %p416 = por %p414, %p415
    %p417 = scmp.ne.s32.totalorder %s406, %s409
    %p418 = scmp.eq.s32.totalorder %s25, 3
    %p419 = por %p417, %p418
    %p420 = scmp.ne.s32.totalorder %s409, %s410
    %p421 = scmp.eq.s32.totalorder %s25, 0
    %p422 = por %p420, %p421
    %p423 = scmp.ne.s32.totalorder %s409, %s410
    %p424 = scmp.eq.s32.totalorder %s26, 3
    %p425 = por %p423, %p424
    %p427 = scmp.ne.s32.totalorder %s410, %s426
    %p428 = scmp.eq.s32.totalorder %s26, 0
    %p429 = por %p427, %p428
    %p430 = scmp.le.s32.totalorder 1, %s20
    %p431 = scmp.lt.s32.totalorder %s20, 5
    %p432 = pnand %p430, %p431
    %p433 = pneg %p432
    // Predicated region
    $region9: #{trans_encoder_forward.1} parent=5 // pred_check
      _
    $region10: #{trans_encoder_forward.1} parent=5 // pred_check_branch
      %435 = sbr.rel (%p432) target = $region12
    $region11: #{trans_encoder_forward.1} parent=5 // pred_region
      %s436 = ssub.s32 %s20, 1
    $region12: #{trans_encoder_forward.1} parent=5 // pred_fallthru
      _
    %p437 = scmp.lt.s32.totalorder %s20, 4
    // Predicated region
    $region13: #{trans_encoder_forward.1} parent=5 // pred_check
      %p438 = pneg %p437
    $region14: #{trans_encoder_forward.1} parent=5 // pred_check_branch
      %440 = sbr.rel (%p438) target = $region16
    $region15: #{trans_encoder_forward.1} parent=5 // pred_region
      // Predicated region
      $region17: #{trans_encoder_forward.1} parent=15 // pred_check
        %p441 = pneg %p52
      $region18: #{trans_encoder_forward.1} parent=15 // pred_check_branch
        %443 = sbr.rel (%p441) target = $region20
      $region19: #{trans_encoder_forward.1} parent=15 // pred_region
        %p444 = scmp.lt.s32.totalorder %s27, 1
        %s445 = scalar_select %p444, %s27, 1
        %s446 = smul.addr %s445, 8
        %s447 = scalar_lea.vmem %s0, %s446
      $region20: #{trans_encoder_forward.1} parent=15 // pred_fallthru
        _
      // Predicated region
      $region21: #{trans_encoder_forward.1} parent=15 // pred_check
        %p448 = pneg %p78
      $region22: #{trans_encoder_forward.1} parent=15 // pred_check_branch
        %450 = sbr.rel (%p448) target = $region24
      $region23: #{trans_encoder_forward.1} parent=15 // pred_region
        %p451 = scmp.lt.s32.totalorder %s27, 1
        %s452 = scalar_select %p451, %s27, 1
        %s453 = scalar_lea.vmem %s1, %s452
      $region24: #{trans_encoder_forward.1} parent=15 // pred_fallthru
        _
      // Predicated region
      $region25: #{trans_encoder_forward.1} parent=15 // pred_check
        %p454 = pneg %p104
      $region26: #{trans_encoder_forward.1} parent=15 // pred_check_branch
        %456 = sbr.rel (%p454) target = $region28
      $region27: #{trans_encoder_forward.1} parent=15 // pred_region
        %p457 = scmp.lt.s32.totalorder %s28, 1
        %s458 = scalar_select %p457, %s28, 1
        %s459 = smul.addr %s458, 4
        %s460 = smul.addr %s459, 4
        %s461 = scalar_lea.vmem %s2, %s460
      $region28: #{trans_encoder_forward.1} parent=15 // pred_fallthru
        _
      // Predicated region
      $region29: #{trans_encoder_forward.1} parent=15 // pred_check
        %p462 = pneg %p130
      $region30: #{trans_encoder_forward.1} parent=15 // pred_check_branch
        %464 = sbr.rel (%p462) target = $region32
      $region31: #{trans_encoder_forward.1} parent=15 // pred_region
        %p465 = scmp.lt.s32.totalorder %s28, 1
        %s466 = scalar_select %p465, %s28, 1
        %s467 = scalar_lea.vmem %s3, %s466
      $region32: #{trans_encoder_forward.1} parent=15 // pred_fallthru
        _
      // Predicated region
      $region33: #{trans_encoder_forward.1} parent=15 // pred_check
        %p468 = pneg %p156
      $region34: #{trans_encoder_forward.1} parent=15 // pred_check_branch
        %470 = sbr.rel (%p468) target = $region36
      $region35: #{trans_encoder_forward.1} parent=15 // pred_region
        %p471 = scmp.lt.s32.totalorder %s28, 1
        %s472 = scalar_select %p471, %s28, 1
        %s473 = smul.addr %s472, 4
        %s474 = smul.addr %s473, 4
        %s475 = scalar_lea.vmem %s4, %s474
      $region36: #{trans_encoder_forward.1} parent=15 // pred_fallthru
        _
      // Predicated region
      $region37: #{trans_encoder_forward.1} parent=15 // pred_check
        %p476 = pneg %p182
      $region38: #{trans_encoder_forward.1} parent=15 // pred_check_branch
        %478 = sbr.rel (%p476) target = $region40
      $region39: #{trans_encoder_forward.1} parent=15 // pred_region
        %p479 = scmp.lt.s32.totalorder %s28, 1
        %s480 = scalar_select %p479, %s28, 1
        %s481 = scalar_lea.vmem %s5, %s480
      $region40: #{trans_encoder_forward.1} parent=15 // pred_fallthru
        _
      // Predicated region
      $region41: #{trans_encoder_forward.1} parent=15 // pred_check
        %p482 = pneg %p208
      $region42: #{trans_encoder_forward.1} parent=15 // pred_check_branch
        %484 = sbr.rel (%p482) target = $region44
      $region43: #{trans_encoder_forward.1} parent=15 // pred_region
        %p485 = scmp.lt.s32.totalorder %s28, 1
        %s486 = scalar_select %p485, %s28, 1
        %s487 = smul.addr %s486, 64
        %s488 = smul.addr %s487, 4
        %s489 = scalar_lea.vmem %s6, %s488
      $region44: #{trans_encoder_forward.1} parent=15 // pred_fallthru
        _
      // Predicated region
      $region45: #{trans_encoder_forward.1} parent=15 // pred_check
        %p490 = pneg %p234
      $region46: #{trans_encoder_forward.1} parent=15 // pred_check_branch
        %492 = sbr.rel (%p490) target = $region48
      $region47: #{trans_encoder_forward.1} parent=15 // pred_region
        %p493 = scmp.lt.s32.totalorder %s28, 1
        %s494 = scalar_select %p493, %s28, 1
        %s495 = smul.addr %s494, 16
        %s496 = scalar_lea.vmem %s7, %s495
      $region48: #{trans_encoder_forward.1} parent=15 // pred_fallthru
        _
      // Predicated region
      $region49: #{trans_encoder_forward.1} parent=15 // pred_check
        %p497 = pneg %p260
      $region50: #{trans_encoder_forward.1} parent=15 // pred_check_branch
        %499 = sbr.rel (%p497) target = $region52
      $region51: #{trans_encoder_forward.1} parent=15 // pred_region
        %p500 = scmp.lt.s32.totalorder %s28, 1
        %s501 = scalar_select %p500, %s28, 1
        %s502 = smul.addr %s501, 256
        %s503 = smul.addr %s502, 4
        %s504 = scalar_lea.vmem %s8, %s503
      $region52: #{trans_encoder_forward.1} parent=15 // pred_fallthru
        _
      // Predicated region
      $region53: #{trans_encoder_forward.1} parent=15 // pred_check
        %p505 = pneg %p286
      $region54: #{trans_encoder_forward.1} parent=15 // pred_check_branch
        %507 = sbr.rel (%p505) target = $region56
      $region55: #{trans_encoder_forward.1} parent=15 // pred_region
        %p508 = scmp.lt.s32.totalorder %s28, 1
        %s509 = scalar_select %p508, %s28, 1
        %s510 = scalar_lea.vmem %s9, %s509
      $region56: #{trans_encoder_forward.1} parent=15 // pred_fallthru
        _
      // Predicated region
      $region57: #{trans_encoder_forward.1} parent=15 // pred_check
        %p511 = pneg %p312
      $region58: #{trans_encoder_forward.1} parent=15 // pred_check_branch
        %513 = sbr.rel (%p511) target = $region60
      $region59: #{trans_encoder_forward.1} parent=15 // pred_region
        %p514 = scmp.lt.s32.totalorder %s28, 1
        %s515 = scalar_select %p514, %s28, 1
        %s516 = scalar_lea.vmem %s10, %s515
      $region60: #{trans_encoder_forward.1} parent=15 // pred_fallthru
        _
      // Predicated region
      $region61: #{trans_encoder_forward.1} parent=15 // pred_check
        %p517 = pneg %p338
      $region62: #{trans_encoder_forward.1} parent=15 // pred_check_branch
        %519 = sbr.rel (%p517) target = $region64
      $region63: #{trans_encoder_forward.1} parent=15 // pred_region
        %p520 = scmp.lt.s32.totalorder %s28, 1
        %s521 = scalar_select %p520, %s28, 1
        %s522 = scalar_lea.vmem %s11, %s521
      $region64: #{trans_encoder_forward.1} parent=15 // pred_fallthru
        _
      // Predicated region
      $region65: #{trans_encoder_forward.1} parent=15 // pred_check
        %p523 = pneg %p364
      $region66: #{trans_encoder_forward.1} parent=15 // pred_check_branch
        %525 = sbr.rel (%p523) target = $region68
      $region67: #{trans_encoder_forward.1} parent=15 // pred_region
        %p526 = scmp.lt.s32.totalorder %s28, 1
        %s527 = scalar_select %p526, %s28, 1
        %s528 = scalar_lea.vmem %s12, %s527
      $region68: #{trans_encoder_forward.1} parent=15 // pred_fallthru
        _
      // Predicated region
      $region69: #{trans_encoder_forward.1} parent=15 // pred_check
        %p529 = pneg %p390
      $region70: #{trans_encoder_forward.1} parent=15 // pred_check_branch
        %531 = sbr.rel (%p529) target = $region72
      $region71: #{trans_encoder_forward.1} parent=15 // pred_region
        %p532 = scmp.lt.s32.totalorder %s28, 1
        %s533 = scalar_select %p532, %s28, 1
        %s534 = scalar_lea.vmem %s13, %s533
      $region72: #{trans_encoder_forward.1} parent=15 // pred_fallthru
        _
    $region16: #{trans_encoder_forward.1} parent=5 // pred_fallthru
      _
    %p535 = scmp.le.s32.totalorder 1, %s20
    %p536 = scmp.lt.s32.totalorder %s20, 5
    %p537 = pnand %p535, %p536
    %p538 = pneg %p537
    // Predicated region
    $region73: #{trans_encoder_forward.1} parent=5 // pred_check
      _
    $region74: #{trans_encoder_forward.1} parent=5 // pred_check_branch
      %540 = sbr.rel (%p537) target = $region76
    $region75: #{trans_encoder_forward.1} parent=5 // pred_region
      %s541 = ssub.s32 %s20, 1
      %p542 = scmp.lt.s32.totalorder %s29, 1
      %s543 = scalar_select %p542, %s29, 1
      %s544 = smul.addr %s543, 8
      %s545 = scalar_lea.vmem %s0, %s544
      %p546 = pneg %p58
      %p547 = pneg %p55
      %p548 = scmp.lt.s32.totalorder %s29, 1
      %s549 = scalar_select %p548, %s29, 1
      %s550 = scalar_lea.vmem %s1, %s549
      %p551 = pneg %p84
      %p552 = pneg %p81
      %p553 = scmp.lt.s32.totalorder %s30, 1
      %s554 = scalar_select %p553, %s30, 1
      %s555 = smul.addr %s554, 4
      %s556 = smul.addr %s555, 4
      %s557 = scalar_lea.vmem %s2, %s556
      %p558 = pneg %p110
      %p559 = pneg %p107
      %p560 = scmp.lt.s32.totalorder %s30, 1
      %s561 = scalar_select %p560, %s30, 1
      %s562 = scalar_lea.vmem %s3, %s561
      %p563 = pneg %p136
      %p564 = pneg %p133
      %p565 = scmp.lt.s32.totalorder %s30, 1
      %s566 = scalar_select %p565, %s30, 1
      %s567 = smul.addr %s566, 4
      %s568 = smul.addr %s567, 4
      %s569 = scalar_lea.vmem %s4, %s568
      %p570 = pneg %p162
      %p571 = pneg %p159
      %p572 = scmp.lt.s32.totalorder %s30, 1
      %s573 = scalar_select %p572, %s30, 1
      %s574 = scalar_lea.vmem %s5, %s573
      %p575 = pneg %p188
      %p576 = pneg %p185
      %p577 = scmp.lt.s32.totalorder %s30, 1
      %s578 = scalar_select %p577, %s30, 1
      %s579 = smul.addr %s578, 64
      %s580 = smul.addr %s579, 4
      %s581 = scalar_lea.vmem %s6, %s580
      %p582 = pneg %p214
      %p583 = pneg %p211
      %p584 = scmp.lt.s32.totalorder %s30, 1
      %s585 = scalar_select %p584, %s30, 1
      %s586 = smul.addr %s585, 16
      %s587 = scalar_lea.vmem %s7, %s586
      %p588 = pneg %p240
      %p589 = pneg %p237
      %p590 = scmp.lt.s32.totalorder %s30, 1
      %s591 = scalar_select %p590, %s30, 1
      %s592 = smul.addr %s591, 256
      %s593 = smul.addr %s592, 4
      %s594 = scalar_lea.vmem %s8, %s593
      %p595 = pneg %p266
      %p596 = pneg %p263
      %p597 = scmp.lt.s32.totalorder %s30, 1
      %s598 = scalar_select %p597, %s30, 1
      %s599 = scalar_lea.vmem %s9, %s598
      %p600 = pneg %p292
      %p601 = pneg %p289
      %p602 = scmp.lt.s32.totalorder %s30, 1
      %s603 = scalar_select %p602, %s30, 1
      %s604 = scalar_lea.vmem %s10, %s603
      %p605 = pneg %p318
      %p606 = pneg %p315
      %p607 = scmp.lt.s32.totalorder %s30, 1
      %s608 = scalar_select %p607, %s30, 1
      %s609 = scalar_lea.vmem %s11, %s608
      %p610 = pneg %p344
      %p611 = pneg %p341
      %p612 = scmp.lt.s32.totalorder %s30, 1
      %s613 = scalar_select %p612, %s30, 1
      %s614 = scalar_lea.vmem %s12, %s613
      %p615 = pneg %p370
      %p616 = pneg %p367
      %p617 = scmp.lt.s32.totalorder %s30, 1
      %s618 = scalar_select %p617, %s30, 1
      %s619 = scalar_lea.vmem %s13, %s618
      %p620 = pneg %p396
      %p621 = pneg %p393
      %p622 = pneg %p422
      %p623 = pneg %p419
      %p624 = scmp.lt.s32.totalorder %s29, 1
      %s625 = scalar_select %p624, %s29, 1
      %s626 = smul.addr %s625, 8
      %s627 = scalar_lea.vmem %s14, %s626
      %p628 = scmp.lt.s32.totalorder %s29, 1
      %s629 = scalar_select %p628, %s29, 1
      %s630 = smul.addr %s629, 8
      %s631 = scalar_lea.vmem %s0, %s630
      %p632 = scmp.lt.s32.totalorder %s29, 1
      %s633 = scalar_select %p632, %s29, 1
      %s634 = scalar_lea.vmem %s1, %s633
      %p635 = scmp.lt.s32.totalorder %s30, 1
      %s636 = scalar_select %p635, %s30, 1
      %s637 = smul.addr %s636, 4
      %s638 = smul.addr %s637, 4
      %s639 = scalar_lea.vmem %s2, %s638
      %p640 = scmp.lt.s32.totalorder %s30, 1
      %s641 = scalar_select %p640, %s30, 1
      %s642 = scalar_lea.vmem %s3, %s641
      %p643 = scmp.lt.s32.totalorder %s30, 1
      %s644 = scalar_select %p643, %s30, 1
      %s645 = smul.addr %s644, 4
      %s646 = smul.addr %s645, 4
      %s647 = scalar_lea.vmem %s4, %s646
      %p648 = scmp.lt.s32.totalorder %s30, 1
      %s649 = scalar_select %p648, %s30, 1
      %s650 = scalar_lea.vmem %s5, %s649
      %p651 = scmp.lt.s32.totalorder %s30, 1
      %s652 = scalar_select %p651, %s30, 1
      %s653 = smul.addr %s652, 64
      %s654 = smul.addr %s653, 4
      %s655 = scalar_lea.vmem %s6, %s654
      %p656 = scmp.lt.s32.totalorder %s30, 1
      %s657 = scalar_select %p656, %s30, 1
      %s658 = smul.addr %s657, 16
      %s659 = scalar_lea.vmem %s7, %s658
      %p660 = scmp.lt.s32.totalorder %s30, 1
      %s661 = scalar_select %p660, %s30, 1
      %s662 = smul.addr %s661, 256
      %s663 = smul.addr %s662, 4
      %s664 = scalar_lea.vmem %s8, %s663
      %p665 = scmp.lt.s32.totalorder %s30, 1
      %s666 = scalar_select %p665, %s30, 1
      %s667 = scalar_lea.vmem %s9, %s666
      %p668 = scmp.lt.s32.totalorder %s30, 1
      %s669 = scalar_select %p668, %s30, 1
      %s670 = scalar_lea.vmem %s10, %s669
      %p671 = scmp.lt.s32.totalorder %s30, 1
      %s672 = scalar_select %p671, %s30, 1
      %s673 = scalar_lea.vmem %s11, %s672
      %p674 = scmp.lt.s32.totalorder %s30, 1
      %s675 = scalar_select %p674, %s30, 1
      %s676 = scalar_lea.vmem %s12, %s675
      %p677 = scmp.lt.s32.totalorder %s30, 1
      %s678 = scalar_select %p677, %s30, 1
      %s679 = scalar_lea.vmem %s13, %s678
      %p680 = scmp.lt.s32.totalorder %s29, 1
      %s681 = scalar_select %p680, %s29, 1
      %s682 = smul.addr %s681, 8
      %s683 = scalar_lea.vmem %s14, %s682
      %p685 = scmp.eq.s32.totalorder %s30, 0
      // Predicated region
      $region77: #{trans_encoder_forward.1} parent=75 // pred_check
        %p686 = pneg %p685
      $region78: #{trans_encoder_forward.1} parent=75 // pred_check_branch
        %688 = sbr.rel (%p686) target = $region80
      $region79: #{trans_encoder_forward.1} parent=75 // pred_region
        %v689 = vld [vmem:[%s631] sm:$0xff]
        %vm690 = vcmask 261120
        %691 = vst.msk [vmem:[%s683] sm:$0xff] %vm690, %v689
      $region80: #{trans_encoder_forward.1} parent=75 // pred_fallthru
        _
      %v692 = vld [vmem:[%s683] sm:$0xff]
      %v693 = vld [vmem:[%s634] sm:$0x1]
      %vm694 = vcmp.gt.f32.partialorder %v693, 0.0
      %v695 = vsel %vm694, 0.0, -1e+30
      %v696 = vpack.c.bf16 %v692, %v692
      %v697 = vld [vmem:[%s639] sm:$0xf]
      %v698 = vld [vmem:[%s639 + $0x4] sm:$0xf]
      %v699 = vld [vmem:[%s639 + $0x8] sm:$0xf]
      %v700 = vld [vmem:[%s639 + $0xc] sm:$0xf]
      %v701 = vld [vmem:[%s642] sm:$0x1]
      %v703 = vlaneseq
      %v704 = vshrl.u32 %v703, 7
      %v705 = vsub.s32 0, %v704
      %v706 = vrot.slane %v701, %v705
      %v712 = vunpack.c.l.b16 %v697
      %v713 = vunpack.c.l.b16 %v698
      %v714 = vunpack.c.l.b16 %v699
      %v715 = vunpack.c.l.b16 %v700
      %v716 = vpack.c.b16 %v713, %v712
      %v717 = vpack.c.b16 %v715, %v714
      %vm720 = vcmask 261120
      %v722 = vsel %vm720, %v696, 0
      %724 = vmatprep.subr.bf16.mxu0 0
      %725 = vmatpush1.bf16.msra.mxu0 0
      %726 = vmatprep.subr.bf16.mxu0 0
      %727 = vmatpush1.bf16.msra.mxu0 0
      %728 = vmatprep.subr.bf16.mxu0 0
      %729 = vmatpush1.bf16.msra.mxu0 0
      %730 = vmatprep.subr.bf16.mxu0 0
      %731 = vmatpush1.bf16.msra.mxu0 0
      %732 = vmatprep.subr.bf16.mxu0 0
      %733 = vmatpush1.bf16.msra.mxu0 0
      %734 = vmatprep.subr.bf16.mxu0 0
      %735 = vmatpush1.bf16.msra.mxu0 0
      %736 = vmatprep.subr.bf16.mxu0 0
      %737 = vmatpush1.bf16.msra.mxu0 %v717
      %738 = vmatprep.subr.bf16.mxu0 0
      %739 = vmatpush1.bf16.msra.mxu0 %v716
      %740 = vmatprep.subr.bf16.mxu0 0
      %741 = vmatpush2.bf16.msra.mxu0 0
      %742 = vmatprep.subr.bf16.mxu0 0
      %743 = vmatpush2.bf16.msra.mxu0 0
      %744 = vmatprep.subr.bf16.mxu0 0
      %745 = vmatpush2.bf16.msra.mxu0 0
      %746 = vmatprep.subr.bf16.mxu0 0
      %747 = vmatpush2.bf16.msra.mxu0 0
      %748 = vmatprep.subr.bf16.mxu0 0
      %749 = vmatpush2.bf16.msra.mxu0 0
      %750 = vmatprep.subr.bf16.mxu0 0
      %751 = vmatpush2.bf16.msra.mxu0 0
      %752 = vmatprep.subr.bf16.mxu0 0
      %753 = vmatpush2.bf16.msra.mxu0 0
      %754 = vmatprep.subr.bf16.mxu0 0
      %755 = vmatpush2.bf16.msra.mxu0 0
      %756 = vmatprep.mubr.bf16.mxu0 0
      %757 = vmatmul.mubr.bf16.gmra.mxu0 %v722
      %v758 = vpop.f32.mrf.mxu0
      %v759 = vadd.f32 %v706, %v758
      %v760 = vpop.f32.mrf.mxu0
      %v761 = vpop.f32.mrf.mxu0
      %v762 = vpop.f32.mrf.mxu0
      %763 = vdwg.mxu0
      %v764 = vpack.c.bf16 %v759, %v759
      %v766 = vlaneseq
      %v767 = vshrl.u32 %v766, 7
      %v768 = vsub.s32 0, %v767
      %v769 = vrot.slane %v695, %v768
      %772 = vrot.lane.b32.xlu0 %v764, 96
      %v773 = vpop.permute.xlu0 %772
      %vm774 = vcmask 31744
      %v776 = vsel %vm774, %v764, 0
      %v779 = vsel %vm774, %v773, 0
      %781 = vmatprep.subr.bf16.mxu0 0
      %782 = vmatpush1.bf16.xpose.msra.mxu0 0
      %783 = vmatprep.subr.bf16.mxu0 0
      %784 = vmatpush1.bf16.xpose.msra.mxu0 0
      %785 = vmatprep.subr.bf16.mxu0 0
      %786 = vmatpush1.bf16.xpose.msra.mxu0 0
      %787 = vmatprep.subr.bf16.mxu0 0
      %788 = vmatpush1.bf16.xpose.msra.mxu0 0
      %789 = vmatprep.subr.bf16.mxu0 0
      %790 = vmatpush1.bf16.xpose.msra.mxu0 0
      %791 = vmatprep.subr.bf16.mxu0 0
      %792 = vmatpush1.bf16.xpose.msra.mxu0 0
      %793 = vmatprep.subr.bf16.mxu0 0
      %794 = vmatpush1.bf16.xpose.msra.mxu0 0
      %795 = vmatprep.subr.bf16.mxu0 0
      %796 = vmatpush1.bf16.xpose.msra.mxu0 %v779
      %797 = vmatprep.subr.bf16.mxu0 0
      %798 = vmatpush2.bf16.xpose.msra.mxu0 0
      %799 = vmatprep.subr.bf16.mxu0 0
      %800 = vmatpush2.bf16.xpose.msra.mxu0 0
      %801 = vmatprep.subr.bf16.mxu0 0
      %802 = vmatpush2.bf16.xpose.msra.mxu0 0
      %803 = vmatprep.subr.bf16.mxu0 0
      %804 = vmatpush2.bf16.xpose.msra.mxu0 0
      %805 = vmatprep.subr.bf16.mxu0 0
      %806 = vmatpush2.bf16.xpose.msra.mxu0 0
      %807 = vmatprep.subr.bf16.mxu0 0
      %808 = vmatpush2.bf16.xpose.msra.mxu0 0
      %809 = vmatprep.subr.bf16.mxu0 0
      %810 = vmatpush2.bf16.xpose.msra.mxu0 0
      %811 = vmatprep.subr.bf16.mxu0 0
      %812 = vmatpush2.bf16.xpose.msra.mxu0 0
      %813 = vmatprep.mubr.bf16.mxu0 0
      %814 = vmatmul.mubr.bf16.gmra.mxu0 %v776
      %v815 = vpop.f32.mrf.mxu0
      %v816 = vadd.f32 %v769, %v815
      %v817 = vpop.f32.mrf.mxu0
      %v818 = vpop.f32.mrf.mxu0
      %v819 = vpop.f32.mrf.mxu0
      %820 = vdwg.mxu0
      %vm821 = vcmask 64512
      %v822 = vsel %vm821, %v816, -inf
      %823 = vmax.xlane.f32.xlu0 %v822
      %v824 = vpop.xlane.xlu0 %823
      %v825 = vsub.f32 %v816, %v824
      %v826 = vmul.f32 %v825, 1.442695
      %v827 = vpow.pop %v826
      %v828 = vsel %vm821, %v827, 0.0
      %829 = vadd.xlane.f32.xlu0 %v828
      %v830 = vpop.xlane.xlu0 %829
      %v831 = vrcp.pop %v830
      %v832 = vmul.f32 %v827, %v831
      %v833 = vpack.c.bf16 %v832, %v832
      %834 = vrot.lane.b32.xlu0 %v764, 64
      %v835 = vpop.permute.xlu0 %834
      %v837 = vsel %vm821, %v833, 0
      %vm839 = vcmask 1043456
      %v841 = vsel %vm839, %v835, 0
      %843 = vmatprep.subr.bf16.mxu0 0
      %844 = vmatpush1.bf16.msra.mxu0 0
      %845 = vmatprep.subr.bf16.mxu0 0
      %846 = vmatpush1.bf16.msra.mxu0 0
      %847 = vmatprep.subr.bf16.mxu0 0
      %848 = vmatpush1.bf16.msra.mxu0 0
      %849 = vmatprep.subr.bf16.mxu0 0
      %850 = vmatpush1.bf16.msra.mxu0 0
      %851 = vmatprep.subr.bf16.mxu0 0
      %852 = vmatpush1.bf16.msra.mxu0 0
      %853 = vmatprep.subr.bf16.mxu0 0
      %854 = vmatpush1.bf16.msra.mxu0 0
      %855 = vmatprep.subr.bf16.mxu0 0
      %856 = vmatpush1.bf16.msra.mxu0 0
      %857 = vmatprep.subr.bf16.mxu0 0
      %858 = vmatpush1.bf16.msra.mxu0 %v841
      %859 = vmatprep.subr.bf16.mxu0 0
      %860 = vmatpush2.bf16.msra.mxu0 0
      %861 = vmatprep.subr.bf16.mxu0 0
      %862 = vmatpush2.bf16.msra.mxu0 0
      %863 = vmatprep.subr.bf16.mxu0 0
      %864 = vmatpush2.bf16.msra.mxu0 0
      %865 = vmatprep.subr.bf16.mxu0 0
      %866 = vmatpush2.bf16.msra.mxu0 0
      %867 = vmatprep.subr.bf16.mxu0 0
      %868 = vmatpush2.bf16.msra.mxu0 0
      %869 = vmatprep.subr.bf16.mxu0 0
      %870 = vmatpush2.bf16.msra.mxu0 0
      %871 = vmatprep.subr.bf16.mxu0 0
      %872 = vmatpush2.bf16.msra.mxu0 0
      %873 = vmatprep.subr.bf16.mxu0 0
      %874 = vmatpush2.bf16.msra.mxu0 0
      %875 = vmatprep.mubr.bf16.mxu0 0
      %876 = vmatmul.mubr.bf16.gmra.mxu0 %v837
      %v877 = vpop.f32.mrf.mxu0
      %v878 = vadd.f32 0.0, %v877
      %v879 = vpop.f32.mrf.mxu0
      %v880 = vpop.f32.mrf.mxu0
      %v881 = vpop.f32.mrf.mxu0
      %882 = vdwg.mxu0
      %883 = vst.msk [vmem:[#allocation2] sm:$0xff] %vm774, %v878
      %884 = vrot.lane.b32.xlu0 %v764, 124
      %v885 = vpop.permute.xlu0 %884
      %886 = vrot.lane.b32.xlu0 %v764, 92
      %v887 = vpop.permute.xlu0 %886
      %v889 = vsel %vm774, %v885, 0
      %v892 = vsel %vm774, %v887, 0
      %894 = vmatprep.subr.bf16.mxu0 0
      %895 = vmatpush1.bf16.xpose.msra.mxu0 0
      %896 = vmatprep.subr.bf16.mxu0 0
      %897 = vmatpush1.bf16.xpose.msra.mxu0 0
      %898 = vmatprep.subr.bf16.mxu0 0
      %899 = vmatpush1.bf16.xpose.msra.mxu0 0
      %900 = vmatprep.subr.bf16.mxu0 0
      %901 = vmatpush1.bf16.xpose.msra.mxu0 0
      %902 = vmatprep.subr.bf16.mxu0 0
      %903 = vmatpush1.bf16.xpose.msra.mxu0 0
      %904 = vmatprep.subr.bf16.mxu0 0
      %905 = vmatpush1.bf16.xpose.msra.mxu0 0
      %906 = vmatprep.subr.bf16.mxu0 0
      %907 = vmatpush1.bf16.xpose.msra.mxu0 0
      %908 = vmatprep.subr.bf16.mxu0 0
      %909 = vmatpush1.bf16.xpose.msra.mxu0 %v892
      %910 = vmatprep.subr.bf16.mxu0 0
      %911 = vmatpush2.bf16.xpose.msra.mxu0 0
      %912 = vmatprep.subr.bf16.mxu0 0
      %913 = vmatpush2.bf16.xpose.msra.mxu0 0
      %914 = vmatprep.subr.bf16.mxu0 0
      %915 = vmatpush2.bf16.xpose.msra.mxu0 0
      %916 = vmatprep.subr.bf16.mxu0 0
      %917 = vmatpush2.bf16.xpose.msra.mxu0 0
      %918 = vmatprep.subr.bf16.mxu0 0
      %919 = vmatpush2.bf16.xpose.msra.mxu0 0
      %920 = vmatprep.subr.bf16.mxu0 0
      %921 = vmatpush2.bf16.xpose.msra.mxu0 0
      %922 = vmatprep.subr.bf16.mxu0 0
      %923 = vmatpush2.bf16.xpose.msra.mxu0 0
      %924 = vmatprep.subr.bf16.mxu0 0
      %925 = vmatpush2.bf16.xpose.msra.mxu0 0
      %926 = vmatprep.mubr.bf16.mxu0 0
      %927 = vmatmul.mubr.bf16.gmra.mxu0 %v889
      %v928 = vpop.f32.mrf.mxu0
      %v929 = vadd.f32 %v769, %v928
      %v930 = vpop.f32.mrf.mxu0
      %v931 = vpop.f32.mrf.mxu0
      %v932 = vpop.f32.mrf.mxu0
      %933 = vdwg.mxu0
      %v934 = vsel %vm821, %v929, -inf
      %935 = vmax.xlane.f32.xlu0 %v934
      %v936 = vpop.xlane.xlu0 %935
      %v937 = vsub.f32 %v929, %v936
      %v938 = vmul.f32 %v937, 1.442695
      %v939 = vpow.pop %v938
      %v940 = vsel %vm821, %v939, 0.0
      %941 = vadd.xlane.f32.xlu0 %v940
      %v942 = vpop.xlane.xlu0 %941
      %v943 = vrcp.pop %v942
      %v944 = vmul.f32 %v939, %v943
      %v945 = vpack.c.bf16 %v944, %v944
      %946 = vrot.lane.b32.xlu0 %v764, 60
      %v947 = vpop.permute.xlu0 %946
      %v949 = vsel %vm821, %v945, 0
      %v952 = vsel %vm839, %v947, 0
      %954 = vmatprep.subr.bf16.mxu0 0
      %955 = vmatpush1.bf16.msra.mxu0 0
      %956 = vmatprep.subr.bf16.mxu0 0
      %957 = vmatpush1.bf16.msra.mxu0 0
      %958 = vmatprep.subr.bf16.mxu0 0
      %959 = vmatpush1.bf16.msra.mxu0 0
      %960 = vmatprep.subr.bf16.mxu0 0
      %961 = vmatpush1.bf16.msra.mxu0 0
      %962 = vmatprep.subr.bf16.mxu0 0
      %963 = vmatpush1.bf16.msra.mxu0 0
      %964 = vmatprep.subr.bf16.mxu0 0
      %965 = vmatpush1.bf16.msra.mxu0 0
      %966 = vmatprep.subr.bf16.mxu0 0
      %967 = vmatpush1.bf16.msra.mxu0 0
      %968 = vmatprep.subr.bf16.mxu0 0
      %969 = vmatpush1.bf16.msra.mxu0 %v952
      %970 = vmatprep.subr.bf16.mxu0 0
      %971 = vmatpush2.bf16.msra.mxu0 0
      %972 = vmatprep.subr.bf16.mxu0 0
      %973 = vmatpush2.bf16.msra.mxu0 0
      %974 = vmatprep.subr.bf16.mxu0 0
      %975 = vmatpush2.bf16.msra.mxu0 0
      %976 = vmatprep.subr.bf16.mxu0 0
      %977 = vmatpush2.bf16.msra.mxu0 0
      %978 = vmatprep.subr.bf16.mxu0 0
      %979 = vmatpush2.bf16.msra.mxu0 0
      %980 = vmatprep.subr.bf16.mxu0 0
      %981 = vmatpush2.bf16.msra.mxu0 0
      %982 = vmatprep.subr.bf16.mxu0 0
      %983 = vmatpush2.bf16.msra.mxu0 0
      %984 = vmatprep.subr.bf16.mxu0 0
      %985 = vmatpush2.bf16.msra.mxu0 0
      %986 = vmatprep.mubr.bf16.mxu0 0
      %987 = vmatmul.mubr.bf16.gmra.mxu0 %v949
      %v988 = vpop.f32.mrf.mxu0
      %v989 = vadd.f32 0.0, %v988
      %v990 = vpop.f32.mrf.mxu0
      %v991 = vpop.f32.mrf.mxu0
      %v992 = vpop.f32.mrf.mxu0
      %993 = vdwg.mxu0
      %995 = vrot.lane.b32.xlu0 %v989, 4
      %v996 = vpop.permute.xlu0 %995
      %vm998 = vcmask 64544
      %999 = vst.msk [vmem:[#allocation2] sm:$0xff] %vm998, %v996
      %1000 = vrot.lane.b32.xlu0 %v764, 120
      %v1001 = vpop.permute.xlu0 %1000
      %1002 = vrot.lane.b32.xlu0 %v764, 88
      %v1003 = vpop.permute.xlu0 %1002
      %v1005 = vsel %vm774, %v1001, 0
      %v1008 = vsel %vm774, %v1003, 0
      %1010 = vmatprep.subr.bf16.mxu0 0
      %1011 = vmatpush1.bf16.xpose.msra.mxu0 0
      %1012 = vmatprep.subr.bf16.mxu0 0
      %1013 = vmatpush1.bf16.xpose.msra.mxu0 0
      %1014 = vmatprep.subr.bf16.mxu0 0
      %1015 = vmatpush1.bf16.xpose.msra.mxu0 0
      %1016 = vmatprep.subr.bf16.mxu0 0
      %1017 = vmatpush1.bf16.xpose.msra.mxu0 0
      %1018 = vmatprep.subr.bf16.mxu0 0
      %1019 = vmatpush1.bf16.xpose.msra.mxu0 0
      %1020 = vmatprep.subr.bf16.mxu0 0
      %1021 = vmatpush1.bf16.xpose.msra.mxu0 0
      %1022 = vmatprep.subr.bf16.mxu0 0
      %1023 = vmatpush1.bf16.xpose.msra.mxu0 0
      %1024 = vmatprep.subr.bf16.mxu0 0
      %1025 = vmatpush1.bf16.xpose.msra.mxu0 %v1008
      %1026 = vmatprep.subr.bf16.mxu0 0
      %1027 = vmatpush2.bf16.xpose.msra.mxu0 0
      %1028 = vmatprep.subr.bf16.mxu0 0
      %1029 = vmatpush2.bf16.xpose.msra.mxu0 0
      %1030 = vmatprep.subr.bf16.mxu0 0
      %1031 = vmatpush2.bf16.xpose.msra.mxu0 0
      %1032 = vmatprep.subr.bf16.mxu0 0
      %1033 = vmatpush2.bf16.xpose.msra.mxu0 0
      %1034 = vmatprep.subr.bf16.mxu0 0
      %1035 = vmatpush2.bf16.xpose.msra.mxu0 0
      %1036 = vmatprep.subr.bf16.mxu0 0
      %1037 = vmatpush2.bf16.xpose.msra.mxu0 0
      %1038 = vmatprep.subr.bf16.mxu0 0
      %1039 = vmatpush2.bf16.xpose.msra.mxu0 0
      %1040 = vmatprep.subr.bf16.mxu0 0
      %1041 = vmatpush2.bf16.xpose.msra.mxu0 0
      %1042 = vmatprep.mubr.bf16.mxu0 0
      %1043 = vmatmul.mubr.bf16.gmra.mxu0 %v1005
      %v1044 = vpop.f32.mrf.mxu0
      %v1045 = vadd.f32 %v769, %v1044
      %v1046 = vpop.f32.mrf.mxu0
      %v1047 = vpop.f32.mrf.mxu0
      %v1048 = vpop.f32.mrf.mxu0
      %1049 = vdwg.mxu0
      %v1050 = vsel %vm821, %v1045, -inf
      %1051 = vmax.xlane.f32.xlu0 %v1050
      %v1052 = vpop.xlane.xlu0 %1051
      %v1053 = vsub.f32 %v1045, %v1052
      %v1054 = vmul.f32 %v1053, 1.442695
      %v1055 = vpow.pop %v1054
      %v1056 = vsel %vm821, %v1055, 0.0
      %1057 = vadd.xlane.f32.xlu0 %v1056
      %v1058 = vpop.xlane.xlu0 %1057
      %v1059 = vrcp.pop %v1058
      %v1060 = vmul.f32 %v1055, %v1059
      %v1061 = vpack.c.bf16 %v1060, %v1060
      %1062 = vrot.lane.b32.xlu0 %v764, 56
      %v1063 = vpop.permute.xlu0 %1062
      %v1065 = vsel %vm821, %v1061, 0
      %v1068 = vsel %vm839, %v1063, 0
      %1070 = vmatprep.subr.bf16.mxu0 0
      %1071 = vmatpush1.bf16.msra.mxu0 0
      %1072 = vmatprep.subr.bf16.mxu0 0
      %1073 = vmatpush1.bf16.msra.mxu0 0
      %1074 = vmatprep.subr.bf16.mxu0 0
      %1075 = vmatpush1.bf16.msra.mxu0 0
      %1076 = vmatprep.subr.bf16.mxu0 0
      %1077 = vmatpush1.bf16.msra.mxu0 0
      %1078 = vmatprep.subr.bf16.mxu0 0
      %1079 = vmatpush1.bf16.msra.mxu0 0
      %1080 = vmatprep.subr.bf16.mxu0 0
      %1081 = vmatpush1.bf16.msra.mxu0 0
      %1082 = vmatprep.subr.bf16.mxu0 0
      %1083 = vmatpush1.bf16.msra.mxu0 0
      %1084 = vmatprep.subr.bf16.mxu0 0
      %1085 = vmatpush1.bf16.msra.mxu0 %v1068
      %1086 = vmatprep.subr.bf16.mxu0 0
      %1087 = vmatpush2.bf16.msra.mxu0 0
      %1088 = vmatprep.subr.bf16.mxu0 0
      %1089 = vmatpush2.bf16.msra.mxu0 0
      %1090 = vmatprep.subr.bf16.mxu0 0
      %1091 = vmatpush2.bf16.msra.mxu0 0
      %1092 = vmatprep.subr.bf16.mxu0 0
      %1093 = vmatpush2.bf16.msra.mxu0 0
      %1094 = vmatprep.subr.bf16.mxu0 0
      %1095 = vmatpush2.bf16.msra.mxu0 0
      %1096 = vmatprep.subr.bf16.mxu0 0
      %1097 = vmatpush2.bf16.msra.mxu0 0
      %1098 = vmatprep.subr.bf16.mxu0 0
      %1099 = vmatpush2.bf16.msra.mxu0 0
      %1100 = vmatprep.subr.bf16.mxu0 0
      %1101 = vmatpush2.bf16.msra.mxu0 0
      %1102 = vmatprep.mubr.bf16.mxu0 0
      %1103 = vmatmul.mubr.bf16.gmra.mxu0 %v1065
      %v1104 = vpop.f32.mrf.mxu0
      %v1105 = vadd.f32 0.0, %v1104
      %v1106 = vpop.f32.mrf.mxu0
      %v1107 = vpop.f32.mrf.mxu0
      %v1108 = vpop.f32.mrf.mxu0
      %1109 = vdwg.mxu0
      %1111 = vrot.lane.b32.xlu0 %v1105, 8
      %v1112 = vpop.permute.xlu0 %1111
      %vm1114 = vcmask 97344
      %1115 = vst.msk [vmem:[#allocation2] sm:$0xff] %vm1114, %v1112
      %1116 = vrot.lane.b32.xlu0 %v764, 116
      %v1117 = vpop.permute.xlu0 %1116
      %1118 = vrot.lane.b32.xlu0 %v764, 84
      %v1119 = vpop.permute.xlu0 %1118
      %v1121 = vsel %vm774, %v1117, 0
      %v1124 = vsel %vm774, %v1119, 0
      %1126 = vmatprep.subr.bf16.mxu0 0
      %1127 = vmatpush1.bf16.xpose.msra.mxu0 0
      %1128 = vmatprep.subr.bf16.mxu0 0
      %1129 = vmatpush1.bf16.xpose.msra.mxu0 0
      %1130 = vmatprep.subr.bf16.mxu0 0
      %1131 = vmatpush1.bf16.xpose.msra.mxu0 0
      %1132 = vmatprep.subr.bf16.mxu0 0
      %1133 = vmatpush1.bf16.xpose.msra.mxu0 0
      %1134 = vmatprep.subr.bf16.mxu0 0
      %1135 = vmatpush1.bf16.xpose.msra.mxu0 0
      %1136 = vmatprep.subr.bf16.mxu0 0
      %1137 = vmatpush1.bf16.xpose.msra.mxu0 0
      %1138 = vmatprep.subr.bf16.mxu0 0
      %1139 = vmatpush1.bf16.xpose.msra.mxu0 0
      %1140 = vmatprep.subr.bf16.mxu0 0
      %1141 = vmatpush1.bf16.xpose.msra.mxu0 %v1124
      %1142 = vmatprep.subr.bf16.mxu0 0
      %1143 = vmatpush2.bf16.xpose.msra.mxu0 0
      %1144 = vmatprep.subr.bf16.mxu0 0
      %1145 = vmatpush2.bf16.xpose.msra.mxu0 0
      %1146 = vmatprep.subr.bf16.mxu0 0
      %1147 = vmatpush2.bf16.xpose.msra.mxu0 0
      %1148 = vmatprep.subr.bf16.mxu0 0
      %1149 = vmatpush2.bf16.xpose.msra.mxu0 0
      %1150 = vmatprep.subr.bf16.mxu0 0
      %1151 = vmatpush2.bf16.xpose.msra.mxu0 0
      %1152 = vmatprep.subr.bf16.mxu0 0
      %1153 = vmatpush2.bf16.xpose.msra.mxu0 0
      %1154 = vmatprep.subr.bf16.mxu0 0
      %1155 = vmatpush2.bf16.xpose.msra.mxu0 0
      %1156 = vmatprep.subr.bf16.mxu0 0
      %1157 = vmatpush2.bf16.xpose.msra.mxu0 0
      %1158 = vmatprep.mubr.bf16.mxu0 0
      %1159 = vmatmul.mubr.bf16.gmra.mxu0 %v1121
      %v1160 = vpop.f32.mrf.mxu0
      %v1161 = vadd.f32 %v769, %v1160
      %v1162 = vpop.f32.mrf.mxu0
      %v1163 = vpop.f32.mrf.mxu0
      %v1164 = vpop.f32.mrf.mxu0
      %1165 = vdwg.mxu0
      %v1166 = vsel %vm821, %v1161, -inf
      %1167 = vmax.xlane.f32.xlu0 %v1166
      %v1168 = vpop.xlane.xlu0 %1167
      %v1169 = vsub.f32 %v1161, %v1168
      %v1170 = vmul.f32 %v1169, 1.442695
      %v1171 = vpow.pop %v1170
      %v1172 = vsel %vm821, %v1171, 0.0
      %1173 = vadd.xlane.f32.xlu0 %v1172
      %v1174 = vpop.xlane.xlu0 %1173
      %v1175 = vrcp.pop %v1174
      %v1176 = vmul.f32 %v1171, %v1175
      %v1177 = vpack.c.bf16 %v1176, %v1176
      %1178 = vrot.lane.b32.xlu0 %v764, 52
      %v1179 = vpop.permute.xlu0 %1178
      %v1181 = vsel %vm821, %v1177, 0
      %v1184 = vsel %vm839, %v1179, 0
      %1186 = vmatprep.subr.bf16.mxu0 0
      %1187 = vmatpush1.bf16.msra.mxu0 0
      %1188 = vmatprep.subr.bf16.mxu0 0
      %1189 = vmatpush1.bf16.msra.mxu0 0
      %1190 = vmatprep.subr.bf16.mxu0 0
      %1191 = vmatpush1.bf16.msra.mxu0 0
      %1192 = vmatprep.subr.bf16.mxu0 0
      %1193 = vmatpush1.bf16.msra.mxu0 0
      %1194 = vmatprep.subr.bf16.mxu0 0
      %1195 = vmatpush1.bf16.msra.mxu0 0
      %1196 = vmatprep.subr.bf16.mxu0 0
      %1197 = vmatpush1.bf16.msra.mxu0 0
      %1198 = vmatprep.subr.bf16.mxu0 0
      %1199 = vmatpush1.bf16.msra.mxu0 0
      %1200 = vmatprep.subr.bf16.mxu0 0
      %1201 = vmatpush1.bf16.msra.mxu0 %v1184
      %1202 = vmatprep.subr.bf16.mxu0 0
      %1203 = vmatpush2.bf16.msra.mxu0 0
      %1204 = vmatprep.subr.bf16.mxu0 0
      %1205 = vmatpush2.bf16.msra.mxu0 0
      %1206 = vmatprep.subr.bf16.mxu0 0
      %1207 = vmatpush2.bf16.msra.mxu0 0
      %1208 = vmatprep.subr.bf16.mxu0 0
      %1209 = vmatpush2.bf16.msra.mxu0 0
      %1210 = vmatprep.subr.bf16.mxu0 0
      %1211 = vmatpush2.bf16.msra.mxu0 0
      %1212 = vmatprep.subr.bf16.mxu0 0
      %1213 = vmatpush2.bf16.msra.mxu0 0
      %1214 = vmatprep.subr.bf16.mxu0 0
      %1215 = vmatpush2.bf16.msra.mxu0 0
      %1216 = vmatprep.subr.bf16.mxu0 0
      %1217 = vmatpush2.bf16.msra.mxu0 0
      %1218 = vmatprep.mubr.bf16.mxu0 0
      %1219 = vmatmul.mubr.bf16.gmra.mxu0 %v1181
      %v1220 = vpop.f32.mrf.mxu0
      %v1221 = vadd.f32 0.0, %v1220
      %v1222 = vpop.f32.mrf.mxu0
      %v1223 = vpop.f32.mrf.mxu0
      %v1224 = vpop.f32.mrf.mxu0
      %1225 = vdwg.mxu0
      %1227 = vrot.lane.b32.xlu0 %v1221, 12
      %v1228 = vpop.permute.xlu0 %1227
      %vm1230 = vcmask 130144
      %1231 = vst.msk [vmem:[#allocation2] sm:$0xff] %vm1230, %v1228
      %1232 = vrot.lane.b32.xlu0 %v764, 112
      %v1233 = vpop.permute.xlu0 %1232
      %1234 = vrot.lane.b32.xlu0 %v764, 80
      %v1235 = vpop.permute.xlu0 %1234
      %v1237 = vsel %vm774, %v1233, 0
      %v1240 = vsel %vm774, %v1235, 0
      %1242 = vmatprep.subr.bf16.mxu0 0
      %1243 = vmatpush1.bf16.xpose.msra.mxu0 0
      %1244 = vmatprep.subr.bf16.mxu0 0
      %1245 = vmatpush1.bf16.xpose.msra.mxu0 0
      %1246 = vmatprep.subr.bf16.mxu0 0
      %1247 = vmatpush1.bf16.xpose.msra.mxu0 0
      %1248 = vmatprep.subr.bf16.mxu0 0
      %1249 = vmatpush1.bf16.xpose.msra.mxu0 0
      %1250 = vmatprep.subr.bf16.mxu0 0
      %1251 = vmatpush1.bf16.xpose.msra.mxu0 0
      %1252 = vmatprep.subr.bf16.mxu0 0
      %1253 = vmatpush1.bf16.xpose.msra.mxu0 0
      %1254 = vmatprep.subr.bf16.mxu0 0
      %1255 = vmatpush1.bf16.xpose.msra.mxu0 0
      %1256 = vmatprep.subr.bf16.mxu0 0
      %1257 = vmatpush1.bf16.xpose.msra.mxu0 %v1240
      %1258 = vmatprep.subr.bf16.mxu0 0
      %1259 = vmatpush2.bf16.xpose.msra.mxu0 0
      %1260 = vmatprep.subr.bf16.mxu0 0
      %1261 = vmatpush2.bf16.xpose.msra.mxu0 0
      %1262 = vmatprep.subr.bf16.mxu0 0
      %1263 = vmatpush2.bf16.xpose.msra.mxu0 0
      %1264 = vmatprep.subr.bf16.mxu0 0
      %1265 = vmatpush2.bf16.xpose.msra.mxu0 0
      %1266 = vmatprep.subr.bf16.mxu0 0
      %1267 = vmatpush2.bf16.xpose.msra.mxu0 0
      %1268 = vmatprep.subr.bf16.mxu0 0
      %1269 = vmatpush2.bf16.xpose.msra.mxu0 0
      %1270 = vmatprep.subr.bf16.mxu0 0
      %1271 = vmatpush2.bf16.xpose.msra.mxu0 0
      %1272 = vmatprep.subr.bf16.mxu0 0
      %1273 = vmatpush2.bf16.xpose.msra.mxu0 0
      %1274 = vmatprep.mubr.bf16.mxu0 0
      %1275 = vmatmul.mubr.bf16.gmra.mxu0 %v1237
      %v1276 = vpop.f32.mrf.mxu0
      %v1277 = vadd.f32 %v769, %v1276
      %v1278 = vpop.f32.mrf.mxu0
      %v1279 = vpop.f32.mrf.mxu0
      %v1280 = vpop.f32.mrf.mxu0
      %1281 = vdwg.mxu0
      %v1282 = vsel %vm821, %v1277, -inf
      %1283 = vmax.xlane.f32.xlu0 %v1282
      %v1284 = vpop.xlane.xlu0 %1283
      %v1285 = vsub.f32 %v1277, %v1284
      %v1286 = vmul.f32 %v1285, 1.442695
      %v1287 = vpow.pop %v1286
      %v1288 = vsel %vm821, %v1287, 0.0
      %1289 = vadd.xlane.f32.xlu0 %v1288
      %v1290 = vpop.xlane.xlu0 %1289
      %v1291 = vrcp.pop %v1290
      %v1292 = vmul.f32 %v1287, %v1291
      %v1293 = vpack.c.bf16 %v1292, %v1292
      %1294 = vrot.lane.b32.xlu0 %v764, 48
      %v1295 = vpop.permute.xlu0 %1294
      %v1297 = vsel %vm821, %v1293, 0
      %v1300 = vsel %vm839, %v1295, 0
      %1302 = vmatprep.subr.bf16.mxu0 0
      %1303 = vmatpush1.bf16.msra.mxu0 0
      %1304 = vmatprep.subr.bf16.mxu0 0
      %1305 = vmatpush1.bf16.msra.mxu0 0
      %1306 = vmatprep.subr.bf16.mxu0 0
      %1307 = vmatpush1.bf16.msra.mxu0 0
      %1308 = vmatprep.subr.bf16.mxu0 0
      %1309 = vmatpush1.bf16.msra.mxu0 0
      %1310 = vmatprep.subr.bf16.mxu0 0
      %1311 = vmatpush1.bf16.msra.mxu0 0
      %1312 = vmatprep.subr.bf16.mxu0 0
      %1313 = vmatpush1.bf16.msra.mxu0 0
      %1314 = vmatprep.subr.bf16.mxu0 0
      %1315 = vmatpush1.bf16.msra.mxu0 0
      %1316 = vmatprep.subr.bf16.mxu0 0
      %1317 = vmatpush1.bf16.msra.mxu0 %v1300
      %1318 = vmatprep.subr.bf16.mxu0 0
      %1319 = vmatpush2.bf16.msra.mxu0 0
      %1320 = vmatprep.subr.bf16.mxu0 0
      %1321 = vmatpush2.bf16.msra.mxu0 0
      %1322 = vmatprep.subr.bf16.mxu0 0
      %1323 = vmatpush2.bf16.msra.mxu0 0
      %1324 = vmatprep.subr.bf16.mxu0 0
      %1325 = vmatpush2.bf16.msra.mxu0 0
      %1326 = vmatprep.subr.bf16.mxu0 0
      %1327 = vmatpush2.bf16.msra.mxu0 0
      %1328 = vmatprep.subr.bf16.mxu0 0
      %1329 = vmatpush2.bf16.msra.mxu0 0
      %1330 = vmatprep.subr.bf16.mxu0 0
      %1331 = vmatpush2.bf16.msra.mxu0 0
      %1332 = vmatprep.subr.bf16.mxu0 0
      %1333 = vmatpush2.bf16.msra.mxu0 0
      %1334 = vmatprep.mubr.bf16.mxu0 0
      %1335 = vmatmul.mubr.bf16.gmra.mxu0 %v1297
      %v1336 = vpop.f32.mrf.mxu0
      %v1337 = vadd.f32 0.0, %v1336
      %v1338 = vpop.f32.mrf.mxu0
      %v1339 = vpop.f32.mrf.mxu0
      %v1340 = vpop.f32.mrf.mxu0
      %1341 = vdwg.mxu0
      %1343 = vrot.lane.b32.xlu0 %v1337, 16
      %v1344 = vpop.permute.xlu0 %1343
      %vm1346 = vcmask 162944
      %1347 = vst.msk [vmem:[#allocation2] sm:$0xff] %vm1346, %v1344
      %1348 = vrot.lane.b32.xlu0 %v764, 108
      %v1349 = vpop.permute.xlu0 %1348
      %1350 = vrot.lane.b32.xlu0 %v764, 76
      %v1351 = vpop.permute.xlu0 %1350
      %v1353 = vsel %vm774, %v1349, 0
      %v1356 = vsel %vm774, %v1351, 0
      %1358 = vmatprep.subr.bf16.mxu0 0
      %1359 = vmatpush1.bf16.xpose.msra.mxu0 0
      %1360 = vmatprep.subr.bf16.mxu0 0
      %1361 = vmatpush1.bf16.xpose.msra.mxu0 0
      %1362 = vmatprep.subr.bf16.mxu0 0
      %1363 = vmatpush1.bf16.xpose.msra.mxu0 0
      %1364 = vmatprep.subr.bf16.mxu0 0
      %1365 = vmatpush1.bf16.xpose.msra.mxu0 0
      %1366 = vmatprep.subr.bf16.mxu0 0
      %1367 = vmatpush1.bf16.xpose.msra.mxu0 0
      %1368 = vmatprep.subr.bf16.mxu0 0
      %1369 = vmatpush1.bf16.xpose.msra.mxu0 0
      %1370 = vmatprep.subr.bf16.mxu0 0
      %1371 = vmatpush1.bf16.xpose.msra.mxu0 0
      %1372 = vmatprep.subr.bf16.mxu0 0
      %1373 = vmatpush1.bf16.xpose.msra.mxu0 %v1356
      %1374 = vmatprep.subr.bf16.mxu0 0
      %1375 = vmatpush2.bf16.xpose.msra.mxu0 0
      %1376 = vmatprep.subr.bf16.mxu0 0
      %1377 = vmatpush2.bf16.xpose.msra.mxu0 0
      %1378 = vmatprep.subr.bf16.mxu0 0
      %1379 = vmatpush2.bf16.xpose.msra.mxu0 0
      %1380 = vmatprep.subr.bf16.mxu0 0
      %1381 = vmatpush2.bf16.xpose.msra.mxu0 0
      %1382 = vmatprep.subr.bf16.mxu0 0
      %1383 = vmatpush2.bf16.xpose.msra.mxu0 0
      %1384 = vmatprep.subr.bf16.mxu0 0
      %1385 = vmatpush2.bf16.xpose.msra.mxu0 0
      %1386 = vmatprep.subr.bf16.mxu0 0
      %1387 = vmatpush2.bf16.xpose.msra.mxu0 0
      %1388 = vmatprep.subr.bf16.mxu0 0
      %1389 = vmatpush2.bf16.xpose.msra.mxu0 0
      %1390 = vmatprep.mubr.bf16.mxu0 0
      %1391 = vmatmul.mubr.bf16.gmra.mxu0 %v1353
      %v1392 = vpop.f32.mrf.mxu0
      %v1393 = vadd.f32 %v769, %v1392
      %v1394 = vpop.f32.mrf.mxu0
      %v1395 = vpop.f32.mrf.mxu0
      %v1396 = vpop.f32.mrf.mxu0
      %1397 = vdwg.mxu0
      %v1398 = vsel %vm821, %v1393, -inf
      %1399 = vmax.xlane.f32.xlu0 %v1398
      %v1400 = vpop.xlane.xlu0 %1399
      %v1401 = vsub.f32 %v1393, %v1400
      %v1402 = vmul.f32 %v1401, 1.442695
      %v1403 = vpow.pop %v1402
      %v1404 = vsel %vm821, %v1403, 0.0
      %1405 = vadd.xlane.f32.xlu0 %v1404
      %v1406 = vpop.xlane.xlu0 %1405
      %v1407 = vrcp.pop %v1406
      %v1408 = vmul.f32 %v1403, %v1407
      %v1409 = vpack.c.bf16 %v1408, %v1408
      %1410 = vrot.lane.b32.xlu0 %v764, 44
      %v1411 = vpop.permute.xlu0 %1410
      %v1413 = vsel %vm821, %v1409, 0
      %v1416 = vsel %vm839, %v1411, 0
      %1418 = vmatprep.subr.bf16.mxu0 0
      %1419 = vmatpush1.bf16.msra.mxu0 0
      %1420 = vmatprep.subr.bf16.mxu0 0
      %1421 = vmatpush1.bf16.msra.mxu0 0
      %1422 = vmatprep.subr.bf16.mxu0 0
      %1423 = vmatpush1.bf16.msra.mxu0 0
      %1424 = vmatprep.subr.bf16.mxu0 0
      %1425 = vmatpush1.bf16.msra.mxu0 0
      %1426 = vmatprep.subr.bf16.mxu0 0
      %1427 = vmatpush1.bf16.msra.mxu0 0
      %1428 = vmatprep.subr.bf16.mxu0 0
      %1429 = vmatpush1.bf16.msra.mxu0 0
      %1430 = vmatprep.subr.bf16.mxu0 0
      %1431 = vmatpush1.bf16.msra.mxu0 0
      %1432 = vmatprep.subr.bf16.mxu0 0
      %1433 = vmatpush1.bf16.msra.mxu0 %v1416
      %1434 = vmatprep.subr.bf16.mxu0 0
      %1435 = vmatpush2.bf16.msra.mxu0 0
      %1436 = vmatprep.subr.bf16.mxu0 0
      %1437 = vmatpush2.bf16.msra.mxu0 0
      %1438 = vmatprep.subr.bf16.mxu0 0
      %1439 = vmatpush2.bf16.msra.mxu0 0
      %1440 = vmatprep.subr.bf16.mxu0 0
      %1441 = vmatpush2.bf16.msra.mxu0 0
      %1442 = vmatprep.subr.bf16.mxu0 0
      %1443 = vmatpush2.bf16.msra.mxu0 0
      %1444 = vmatprep.subr.bf16.mxu0 0
      %1445 = vmatpush2.bf16.msra.mxu0 0
      %1446 = vmatprep.subr.bf16.mxu0 0
      %1447 = vmatpush2.bf16.msra.mxu0 0
      %1448 = vmatprep.subr.bf16.mxu0 0
      %1449 = vmatpush2.bf16.msra.mxu0 0
      %1450 = vmatprep.mubr.bf16.mxu0 0
      %1451 = vmatmul.mubr.bf16.gmra.mxu0 %v1413
      %v1452 = vpop.f32.mrf.mxu0
      %v1453 = vadd.f32 0.0, %v1452
      %v1454 = vpop.f32.mrf.mxu0
      %v1455 = vpop.f32.mrf.mxu0
      %v1456 = vpop.f32.mrf.mxu0
      %1457 = vdwg.mxu0
      %1459 = vrot.lane.b32.xlu0 %v1453, 20
      %v1460 = vpop.permute.xlu0 %1459
      %vm1462 = vcmask 195744
      %1463 = vst.msk [vmem:[#allocation2] sm:$0xff] %vm1462, %v1460
      %1464 = vrot.lane.b32.xlu0 %v764, 104
      %v1465 = vpop.permute.xlu0 %1464
      %1466 = vrot.lane.b32.xlu0 %v764, 72
      %v1467 = vpop.permute.xlu0 %1466
      %v1469 = vsel %vm774, %v1465, 0
      %v1472 = vsel %vm774, %v1467, 0
      %1474 = vmatprep.subr.bf16.mxu0 0
      %1475 = vmatpush1.bf16.xpose.msra.mxu0 0
      %1476 = vmatprep.subr.bf16.mxu0 0
      %1477 = vmatpush1.bf16.xpose.msra.mxu0 0
      %1478 = vmatprep.subr.bf16.mxu0 0
      %1479 = vmatpush1.bf16.xpose.msra.mxu0 0
      %1480 = vmatprep.subr.bf16.mxu0 0
      %1481 = vmatpush1.bf16.xpose.msra.mxu0 0
      %1482 = vmatprep.subr.bf16.mxu0 0
      %1483 = vmatpush1.bf16.xpose.msra.mxu0 0
      %1484 = vmatprep.subr.bf16.mxu0 0
      %1485 = vmatpush1.bf16.xpose.msra.mxu0 0
      %1486 = vmatprep.subr.bf16.mxu0 0
      %1487 = vmatpush1.bf16.xpose.msra.mxu0 0
      %1488 = vmatprep.subr.bf16.mxu0 0
      %1489 = vmatpush1.bf16.xpose.msra.mxu0 %v1472
      %1490 = vmatprep.subr.bf16.mxu0 0
      %1491 = vmatpush2.bf16.xpose.msra.mxu0 0
      %1492 = vmatprep.subr.bf16.mxu0 0
      %1493 = vmatpush2.bf16.xpose.msra.mxu0 0
      %1494 = vmatprep.subr.bf16.mxu0 0
      %1495 = vmatpush2.bf16.xpose.msra.mxu0 0
      %1496 = vmatprep.subr.bf16.mxu0 0
      %1497 = vmatpush2.bf16.xpose.msra.mxu0 0
      %1498 = vmatprep.subr.bf16.mxu0 0
      %1499 = vmatpush2.bf16.xpose.msra.mxu0 0
      %1500 = vmatprep.subr.bf16.mxu0 0
      %1501 = vmatpush2.bf16.xpose.msra.mxu0 0
      %1502 = vmatprep.subr.bf16.mxu0 0
      %1503 = vmatpush2.bf16.xpose.msra.mxu0 0
      %1504 = vmatprep.subr.bf16.mxu0 0
      %1505 = vmatpush2.bf16.xpose.msra.mxu0 0
      %1506 = vmatprep.mubr.bf16.mxu0 0
      %1507 = vmatmul.mubr.bf16.gmra.mxu0 %v1469
      %v1508 = vpop.f32.mrf.mxu0
      %v1509 = vadd.f32 %v769, %v1508
      %v1510 = vpop.f32.mrf.mxu0
      %v1511 = vpop.f32.mrf.mxu0
      %v1512 = vpop.f32.mrf.mxu0
      %1513 = vdwg.mxu0
      %v1514 = vsel %vm821, %v1509, -inf
      %1515 = vmax.xlane.f32.xlu0 %v1514
      %v1516 = vpop.xlane.xlu0 %1515
      %v1517 = vsub.f32 %v1509, %v1516
      %v1518 = vmul.f32 %v1517, 1.442695
      %v1519 = vpow.pop %v1518
      %v1520 = vsel %vm821, %v1519, 0.0
      %1521 = vadd.xlane.f32.xlu0 %v1520
      %v1522 = vpop.xlane.xlu0 %1521
      %v1523 = vrcp.pop %v1522
      %v1524 = vmul.f32 %v1519, %v1523
      %v1525 = vpack.c.bf16 %v1524, %v1524
      %1526 = vrot.lane.b32.xlu0 %v764, 40
      %v1527 = vpop.permute.xlu0 %1526
      %v1529 = vsel %vm821, %v1525, 0
      %v1532 = vsel %vm839, %v1527, 0
      %1534 = vmatprep.subr.bf16.mxu0 0
      %1535 = vmatpush1.bf16.msra.mxu0 0
      %1536 = vmatprep.subr.bf16.mxu0 0
      %1537 = vmatpush1.bf16.msra.mxu0 0
      %1538 = vmatprep.subr.bf16.mxu0 0
      %1539 = vmatpush1.bf16.msra.mxu0 0
      %1540 = vmatprep.subr.bf16.mxu0 0
      %1541 = vmatpush1.bf16.msra.mxu0 0
      %1542 = vmatprep.subr.bf16.mxu0 0
      %1543 = vmatpush1.bf16.msra.mxu0 0
      %1544 = vmatprep.subr.bf16.mxu0 0
      %1545 = vmatpush1.bf16.msra.mxu0 0
      %1546 = vmatprep.subr.bf16.mxu0 0
      %1547 = vmatpush1.bf16.msra.mxu0 0
      %1548 = vmatprep.subr.bf16.mxu0 0
      %1549 = vmatpush1.bf16.msra.mxu0 %v1532
      %1550 = vmatprep.subr.bf16.mxu0 0
      %1551 = vmatpush2.bf16.msra.mxu0 0
      %1552 = vmatprep.subr.bf16.mxu0 0
      %1553 = vmatpush2.bf16.msra.mxu0 0
      %1554 = vmatprep.subr.bf16.mxu0 0
      %1555 = vmatpush2.bf16.msra.mxu0 0
      %1556 = vmatprep.subr.bf16.mxu0 0
      %1557 = vmatpush2.bf16.msra.mxu0 0
      %1558 = vmatprep.subr.bf16.mxu0 0
      %1559 = vmatpush2.bf16.msra.mxu0 0
      %1560 = vmatprep.subr.bf16.mxu0 0
      %1561 = vmatpush2.bf16.msra.mxu0 0
      %1562 = vmatprep.subr.bf16.mxu0 0
      %1563 = vmatpush2.bf16.msra.mxu0 0
      %1564 = vmatprep.subr.bf16.mxu0 0
      %1565 = vmatpush2.bf16.msra.mxu0 0
      %1566 = vmatprep.mubr.bf16.mxu0 0
      %1567 = vmatmul.mubr.bf16.gmra.mxu0 %v1529
      %v1568 = vpop.f32.mrf.mxu0
      %v1569 = vadd.f32 0.0, %v1568
      %v1570 = vpop.f32.mrf.mxu0
      %v1571 = vpop.f32.mrf.mxu0
      %v1572 = vpop.f32.mrf.mxu0
      %1573 = vdwg.mxu0
      %1575 = vrot.lane.b32.xlu0 %v1569, 24
      %v1576 = vpop.permute.xlu0 %1575
      %vm1578 = vcmask 228544
      %1579 = vst.msk [vmem:[#allocation2] sm:$0xff] %vm1578, %v1576
      %1580 = vrot.lane.b32.xlu0 %v764, 100
      %v1581 = vpop.permute.xlu0 %1580
      %1582 = vrot.lane.b32.xlu0 %v764, 68
      %v1583 = vpop.permute.xlu0 %1582
      %v1585 = vsel %vm774, %v1581, 0
      %v1588 = vsel %vm774, %v1583, 0
      %1590 = vmatprep.subr.bf16.mxu0 0
      %1591 = vmatpush1.bf16.xpose.msra.mxu0 0
      %1592 = vmatprep.subr.bf16.mxu0 0
      %1593 = vmatpush1.bf16.xpose.msra.mxu0 0
      %1594 = vmatprep.subr.bf16.mxu0 0
      %1595 = vmatpush1.bf16.xpose.msra.mxu0 0
      %1596 = vmatprep.subr.bf16.mxu0 0
      %1597 = vmatpush1.bf16.xpose.msra.mxu0 0
      %1598 = vmatprep.subr.bf16.mxu0 0
      %1599 = vmatpush1.bf16.xpose.msra.mxu0 0
      %1600 = vmatprep.subr.bf16.mxu0 0
      %1601 = vmatpush1.bf16.xpose.msra.mxu0 0
      %1602 = vmatprep.subr.bf16.mxu0 0
      %1603 = vmatpush1.bf16.xpose.msra.mxu0 0
      %1604 = vmatprep.subr.bf16.mxu0 0
      %1605 = vmatpush1.bf16.xpose.msra.mxu0 %v1588
      %1606 = vmatprep.subr.bf16.mxu0 0
      %1607 = vmatpush2.bf16.xpose.msra.mxu0 0
      %1608 = vmatprep.subr.bf16.mxu0 0
      %1609 = vmatpush2.bf16.xpose.msra.mxu0 0
      %1610 = vmatprep.subr.bf16.mxu0 0
      %1611 = vmatpush2.bf16.xpose.msra.mxu0 0
      %1612 = vmatprep.subr.bf16.mxu0 0
      %1613 = vmatpush2.bf16.xpose.msra.mxu0 0
      %1614 = vmatprep.subr.bf16.mxu0 0
      %1615 = vmatpush2.bf16.xpose.msra.mxu0 0
      %1616 = vmatprep.subr.bf16.mxu0 0
      %1617 = vmatpush2.bf16.xpose.msra.mxu0 0
      %1618 = vmatprep.subr.bf16.mxu0 0
      %1619 = vmatpush2.bf16.xpose.msra.mxu0 0
      %1620 = vmatprep.subr.bf16.mxu0 0
      %1621 = vmatpush2.bf16.xpose.msra.mxu0 0
      %1622 = vmatprep.mubr.bf16.mxu0 0
      %1623 = vmatmul.mubr.bf16.gmra.mxu0 %v1585
      %v1624 = vpop.f32.mrf.mxu0
      %v1625 = vadd.f32 %v769, %v1624
      %v1626 = vpop.f32.mrf.mxu0
      %v1627 = vpop.f32.mrf.mxu0
      %v1628 = vpop.f32.mrf.mxu0
      %1629 = vdwg.mxu0
      %v1630 = vsel %vm821, %v1625, -inf
      %1631 = vmax.xlane.f32.xlu0 %v1630
      %v1632 = vpop.xlane.xlu0 %1631
      %v1633 = vsub.f32 %v1625, %v1632
      %v1634 = vmul.f32 %v1633, 1.442695
      %v1635 = vpow.pop %v1634
      %v1636 = vsel %vm821, %v1635, 0.0
      %1637 = vadd.xlane.f32.xlu0 %v1636
      %v1638 = vpop.xlane.xlu0 %1637
      %v1639 = vrcp.pop %v1638
      %v1640 = vmul.f32 %v1635, %v1639
      %v1641 = vpack.c.bf16 %v1640, %v1640
      %1642 = vrot.lane.b32.xlu0 %v764, 36
      %v1643 = vpop.permute.xlu0 %1642
      %v1645 = vsel %vm821, %v1641, 0
      %v1648 = vsel %vm839, %v1643, 0
      %1650 = vmatprep.subr.bf16.mxu0 0
      %1651 = vmatpush1.bf16.msra.mxu0 0
      %1652 = vmatprep.subr.bf16.mxu0 0
      %1653 = vmatpush1.bf16.msra.mxu0 0
      %1654 = vmatprep.subr.bf16.mxu0 0
      %1655 = vmatpush1.bf16.msra.mxu0 0
      %1656 = vmatprep.subr.bf16.mxu0 0
      %1657 = vmatpush1.bf16.msra.mxu0 0
      %1658 = vmatprep.subr.bf16.mxu0 0
      %1659 = vmatpush1.bf16.msra.mxu0 0
      %1660 = vmatprep.subr.bf16.mxu0 0
      %1661 = vmatpush1.bf16.msra.mxu0 0
      %1662 = vmatprep.subr.bf16.mxu0 0
      %1663 = vmatpush1.bf16.msra.mxu0 0
      %1664 = vmatprep.subr.bf16.mxu0 0
      %1665 = vmatpush1.bf16.msra.mxu0 %v1648
      %1666 = vmatprep.subr.bf16.mxu0 0
      %1667 = vmatpush2.bf16.msra.mxu0 0
      %1668 = vmatprep.subr.bf16.mxu0 0
      %1669 = vmatpush2.bf16.msra.mxu0 0
      %1670 = vmatprep.subr.bf16.mxu0 0
      %1671 = vmatpush2.bf16.msra.mxu0 0
      %1672 = vmatprep.subr.bf16.mxu0 0
      %1673 = vmatpush2.bf16.msra.mxu0 0
      %1674 = vmatprep.subr.bf16.mxu0 0
      %1675 = vmatpush2.bf16.msra.mxu0 0
      %1676 = vmatprep.subr.bf16.mxu0 0
      %1677 = vmatpush2.bf16.msra.mxu0 0
      %1678 = vmatprep.subr.bf16.mxu0 0
      %1679 = vmatpush2.bf16.msra.mxu0 0
      %1680 = vmatprep.subr.bf16.mxu0 0
      %1681 = vmatpush2.bf16.msra.mxu0 0
      %1682 = vmatprep.mubr.bf16.mxu0 0
      %1683 = vmatmul.mubr.bf16.gmra.mxu0 %v1645
      %v1684 = vpop.f32.mrf.mxu0
      %v1685 = vadd.f32 0.0, %v1684
      %v1686 = vpop.f32.mrf.mxu0
      %v1687 = vpop.f32.mrf.mxu0
      %v1688 = vpop.f32.mrf.mxu0
      %1689 = vdwg.mxu0
      %1691 = vrot.lane.b32.xlu0 %v1685, 28
      %v1692 = vpop.permute.xlu0 %1691
      %vm1694 = vcmask 261344
      %1695 = vst.msk [vmem:[#allocation2] sm:$0xff] %vm1694, %v1692
      %v1696 = vld [vmem:[#allocation2] sm:$0xff]
      %v1697 = vpack.c.bf16 %v1696, %v1696
      %v1698 = vld [vmem:[%s647] sm:$0xf]
      %v1699 = vld [vmem:[%s647 + $0x4] sm:$0xf]
      %v1700 = vld [vmem:[%s647 + $0x8] sm:$0xf]
      %v1701 = vld [vmem:[%s647 + $0xc] sm:$0xf]
      %v1702 = vld [vmem:[%s650] sm:$0x1]
      %v1704 = vlaneseq
      %v1705 = vshrl.u32 %v1704, 7
      %v1706 = vsub.s32 0, %v1705
      %v1707 = vrot.slane %v1702, %v1706
      %v1713 = vunpack.c.l.b16 %v1698
      %v1714 = vunpack.c.l.b16 %v1699
      %v1715 = vunpack.c.l.b16 %v1700
      %v1716 = vunpack.c.l.b16 %v1701
      %v1717 = vpack.c.b16 %v1714, %v1713
      %v1718 = vpack.c.b16 %v1716, %v1715
      %v1722 = vsel %vm720, %v1697, 0
      %1724 = vmatprep.subr.bf16.mxu0 0
      %1725 = vmatpush1.bf16.msra.mxu0 0
      %1726 = vmatprep.subr.bf16.mxu0 0
      %1727 = vmatpush1.bf16.msra.mxu0 0
      %1728 = vmatprep.subr.bf16.mxu0 0
      %1729 = vmatpush1.bf16.msra.mxu0 0
      %1730 = vmatprep.subr.bf16.mxu0 0
      %1731 = vmatpush1.bf16.msra.mxu0 0
      %1732 = vmatprep.subr.bf16.mxu0 0
      %1733 = vmatpush1.bf16.msra.mxu0 0
      %1734 = vmatprep.subr.bf16.mxu0 0
      %1735 = vmatpush1.bf16.msra.mxu0 0
      %1736 = vmatprep.subr.bf16.mxu0 0
      %1737 = vmatpush1.bf16.msra.mxu0 %v1718
      %1738 = vmatprep.subr.bf16.mxu0 0
      %1739 = vmatpush1.bf16.msra.mxu0 %v1717
      %1740 = vmatprep.subr.bf16.mxu0 0
      %1741 = vmatpush2.bf16.msra.mxu0 0
      %1742 = vmatprep.subr.bf16.mxu0 0
      %1743 = vmatpush2.bf16.msra.mxu0 0
      %1744 = vmatprep.subr.bf16.mxu0 0
      %1745 = vmatpush2.bf16.msra.mxu0 0
      %1746 = vmatprep.subr.bf16.mxu0 0
      %1747 = vmatpush2.bf16.msra.mxu0 0
      %1748 = vmatprep.subr.bf16.mxu0 0
      %1749 = vmatpush2.bf16.msra.mxu0 0
      %1750 = vmatprep.subr.bf16.mxu0 0
      %1751 = vmatpush2.bf16.msra.mxu0 0
      %1752 = vmatprep.subr.bf16.mxu0 0
      %1753 = vmatpush2.bf16.msra.mxu0 0
      %1754 = vmatprep.subr.bf16.mxu0 0
      %1755 = vmatpush2.bf16.msra.mxu0 0
      %1756 = vmatprep.mubr.bf16.mxu0 0
      %1757 = vmatmul.mubr.bf16.gmra.mxu0 %v1722
      %v1758 = vpop.f32.mrf.mxu0
      %v1759 = vadd.f32 %v1707, %v1758
      %v1760 = vpop.f32.mrf.mxu0
      %v1761 = vpop.f32.mrf.mxu0
      %v1762 = vpop.f32.mrf.mxu0
      %1763 = vdwg.mxu0
      %v1764 = vadd.f32 %v692, %v1759
      %v1765 = vld [vmem:[%s670] sm:$0x1]
      %v1766 = vld [vmem:[%s673] sm:$0x1]
      %v1767 = vsel %vm720, %v1764, 0.0
      %1768 = vadd.xlane.f32.xlu0 %v1767
      %v1769 = vpop.xlane.xlu0 %1768
      %v1770 = vrcp.pop 32.0
      %v1771 = vmul.f32 %v1769, %v1770
      %v1772 = vsub.f32 %v1764, %v1771
      %v1773 = vmul.f32 %v1772, %v1772
      %v1774 = vsel %vm720, %v1773, 0.0
      %1775 = vadd.xlane.f32.xlu0 %v1774
      %v1776 = vpop.xlane.xlu0 %1775
      %v1777 = vmul.f32 %v1776, %v1770
      %v1778 = vadd.f32 %v1777, 1e-05
      %v1779 = vrsqrt.pop %v1778
      %v1780 = vmul.f32 %v1772, %v1779
      %v1782 = vlaneseq
      %v1783 = vshrl.u32 %v1782, 7
      %v1784 = vsub.s32 0, %v1783
      %v1785 = vrot.slane %v1765, %v1784
      %v1787 = vmul.f32 %v1780, %v1785
      %v1789 = vlaneseq
      %v1790 = vshrl.u32 %v1789, 7
      %v1791 = vsub.s32 0, %v1790
      %v1792 = vrot.slane %v1766, %v1791
      %v1794 = vadd.f32 %v1787, %v1792
      %v1795 = vpack.c.bf16 %v1794, %v1794
      %v1796 = vld [vmem:[%s655] sm:$0xff]
      %v1797 = vld [vmem:[%s655 + $0x8] sm:$0xff]
      %v1798 = vld [vmem:[%s655 + $0x10] sm:$0xff]
      %v1799 = vld [vmem:[%s655 + $0x18] sm:$0xff]
      %v1800 = vld [vmem:[%s655 + $0x20] sm:$0xff]
      %v1801 = vld [vmem:[%s655 + $0x28] sm:$0xff]
      %v1802 = vld [vmem:[%s655 + $0x30] sm:$0xff]
      %v1803 = vld [vmem:[%s655 + $0x38] sm:$0xff]
      %v1804 = vld [vmem:[%s655 + $0x40] sm:$0xff]
      %v1805 = vld [vmem:[%s655 + $0x48] sm:$0xff]
      %v1806 = vld [vmem:[%s655 + $0x50] sm:$0xff]
      %v1807 = vld [vmem:[%s655 + $0x58] sm:$0xff]
      %v1808 = vld [vmem:[%s655 + $0x60] sm:$0xff]
      %v1809 = vld [vmem:[%s655 + $0x68] sm:$0xff]
      %v1810 = vld [vmem:[%s655 + $0x70] sm:$0xff]
      %v1811 = vld [vmem:[%s655 + $0x78] sm:$0xff]
      %v1812 = vld [vmem:[%s655 + $0x80] sm:$0xff]
      %v1813 = vld [vmem:[%s655 + $0x88] sm:$0xff]
      %v1814 = vld [vmem:[%s655 + $0x90] sm:$0xff]
      %v1815 = vld [vmem:[%s655 + $0x98] sm:$0xff]
      %v1816 = vld [vmem:[%s655 + $0xa0] sm:$0xff]
      %v1817 = vld [vmem:[%s655 + $0xa8] sm:$0xff]
      %v1818 = vld [vmem:[%s655 + $0xb0] sm:$0xff]
      %v1819 = vld [vmem:[%s655 + $0xb8] sm:$0xff]
      %v1820 = vld [vmem:[%s655 + $0xc0] sm:$0xff]
      %v1821 = vld [vmem:[%s655 + $0xc8] sm:$0xff]
      %v1822 = vld [vmem:[%s655 + $0xd0] sm:$0xff]
      %v1823 = vld [vmem:[%s655 + $0xd8] sm:$0xff]
      %v1824 = vld [vmem:[%s655 + $0xe0] sm:$0xff]
      %v1825 = vld [vmem:[%s655 + $0xe8] sm:$0xff]
      %v1826 = vld [vmem:[%s655 + $0xf0] sm:$0xff]
      %v1827 = vld [vmem:[%s655 + $0xf8] sm:$0xff]
      %v1828 = vld [vmem:[%s659] sm:$0xff]
      %v1829 = vld [vmem:[%s659 + $0x8] sm:$0xff]
      %v1832 = vlaneseq
      %v1833 = vshrl.u32 %v1832, 7
      %v1834 = vsub.s32 0, %v1833
      %v1835 = vrot.slane %v1828, %v1834
      %v1836 = vlaneseq
      %v1837 = vshrl.u32 %v1836, 7
      %v1838 = vsub.s32 1, %v1837
      %v1839 = vrot.slane %v1828, %v1838
      %v1840 = vlaneseq
      %v1841 = vshrl.u32 %v1840, 7
      %v1842 = vsub.s32 2, %v1841
      %v1843 = vrot.slane %v1828, %v1842
      %v1844 = vlaneseq
      %v1845 = vshrl.u32 %v1844, 7
      %v1846 = vsub.s32 3, %v1845
      %v1847 = vrot.slane %v1828, %v1846
      %v1848 = vlaneseq
      %v1849 = vshrl.u32 %v1848, 7
      %v1850 = vsub.s32 4, %v1849
      %v1851 = vrot.slane %v1828, %v1850
      %v1852 = vlaneseq
      %v1853 = vshrl.u32 %v1852, 7
      %v1854 = vsub.s32 5, %v1853
      %v1855 = vrot.slane %v1828, %v1854
      %v1856 = vlaneseq
      %v1857 = vshrl.u32 %v1856, 7
      %v1858 = vsub.s32 6, %v1857
      %v1859 = vrot.slane %v1828, %v1858
      %v1860 = vlaneseq
      %v1861 = vshrl.u32 %v1860, 7
      %v1862 = vsub.s32 7, %v1861
      %v1863 = vrot.slane %v1828, %v1862
      %v1864 = vlaneseq
      %v1865 = vshrl.u32 %v1864, 7
      %v1866 = vsub.s32 0, %v1865
      %v1867 = vrot.slane %v1829, %v1866
      %v1868 = vlaneseq
      %v1869 = vshrl.u32 %v1868, 7
      %v1870 = vsub.s32 1, %v1869
      %v1871 = vrot.slane %v1829, %v1870
      %v1872 = vlaneseq
      %v1873 = vshrl.u32 %v1872, 7
      %v1874 = vsub.s32 2, %v1873
      %v1875 = vrot.slane %v1829, %v1874
      %v1876 = vlaneseq
      %v1877 = vshrl.u32 %v1876, 7
      %v1878 = vsub.s32 3, %v1877
      %v1879 = vrot.slane %v1829, %v1878
      %v1880 = vlaneseq
      %v1881 = vshrl.u32 %v1880, 7
      %v1882 = vsub.s32 4, %v1881
      %v1883 = vrot.slane %v1829, %v1882
      %v1884 = vlaneseq
      %v1885 = vshrl.u32 %v1884, 7
      %v1886 = vsub.s32 5, %v1885
      %v1887 = vrot.slane %v1829, %v1886
      %v1888 = vlaneseq
      %v1889 = vshrl.u32 %v1888, 7
      %v1890 = vsub.s32 6, %v1889
      %v1891 = vrot.slane %v1829, %v1890
      %v1892 = vlaneseq
      %v1893 = vshrl.u32 %v1892, 7
      %v1894 = vsub.s32 7, %v1893
      %v1895 = vrot.slane %v1829, %v1894
      %v1944 = vunpack.c.l.b16 %v1796
      %v1945 = vunpack.c.h.b16 %v1796
      %v1946 = vunpack.c.l.b16 %v1797
      %v1947 = vunpack.c.h.b16 %v1797
      %v1948 = vunpack.c.l.b16 %v1798
      %v1949 = vunpack.c.h.b16 %v1798
      %v1950 = vunpack.c.l.b16 %v1799
      %v1951 = vunpack.c.h.b16 %v1799
      %v1952 = vunpack.c.l.b16 %v1800
      %v1953 = vunpack.c.h.b16 %v1800
      %v1954 = vunpack.c.l.b16 %v1801
      %v1955 = vunpack.c.h.b16 %v1801
      %v1956 = vunpack.c.l.b16 %v1802
      %v1957 = vunpack.c.h.b16 %v1802
      %v1958 = vunpack.c.l.b16 %v1803
      %v1959 = vunpack.c.h.b16 %v1803
      %v1960 = vunpack.c.l.b16 %v1804
      %v1961 = vunpack.c.h.b16 %v1804
      %v1962 = vunpack.c.l.b16 %v1805
      %v1963 = vunpack.c.h.b16 %v1805
      %v1964 = vunpack.c.l.b16 %v1806
      %v1965 = vunpack.c.h.b16 %v1806
      %v1966 = vunpack.c.l.b16 %v1807
      %v1967 = vunpack.c.h.b16 %v1807
      %v1968 = vunpack.c.l.b16 %v1808
      %v1969 = vunpack.c.h.b16 %v1808
      %v1970 = vunpack.c.l.b16 %v1809
      %v1971 = vunpack.c.h.b16 %v1809
      %v1972 = vunpack.c.l.b16 %v1810
      %v1973 = vunpack.c.h.b16 %v1810
      %v1974 = vunpack.c.l.b16 %v1811
      %v1975 = vunpack.c.h.b16 %v1811
      %v1976 = vunpack.c.l.b16 %v1812
      %v1977 = vunpack.c.h.b16 %v1812
      %v1978 = vunpack.c.l.b16 %v1813
      %v1979 = vunpack.c.h.b16 %v1813
      %v1980 = vunpack.c.l.b16 %v1814
      %v1981 = vunpack.c.h.b16 %v1814
      %v1982 = vunpack.c.l.b16 %v1815
      %v1983 = vunpack.c.h.b16 %v1815
      %v1984 = vunpack.c.l.b16 %v1816
      %v1985 = vunpack.c.h.b16 %v1816
      %v1986 = vunpack.c.l.b16 %v1817
      %v1987 = vunpack.c.h.b16 %v1817
      %v1988 = vunpack.c.l.b16 %v1818
      %v1989 = vunpack.c.h.b16 %v1818
      %v1990 = vunpack.c.l.b16 %v1819
      %v1991 = vunpack.c.h.b16 %v1819
      %v1992 = vunpack.c.l.b16 %v1820
      %v1993 = vunpack.c.h.b16 %v1820
      %v1994 = vunpack.c.l.b16 %v1821
      %v1995 = vunpack.c.h.b16 %v1821
      %v1996 = vunpack.c.l.b16 %v1822
      %v1997 = vunpack.c.h.b16 %v1822
      %v1998 = vunpack.c.l.b16 %v1823
      %v1999 = vunpack.c.h.b16 %v1823
      %v2000 = vunpack.c.l.b16 %v1824
      %v2001 = vunpack.c.h.b16 %v1824
      %v2002 = vunpack.c.l.b16 %v1825
      %v2003 = vunpack.c.h.b16 %v1825
      %v2004 = vunpack.c.l.b16 %v1826
      %v2005 = vunpack.c.h.b16 %v1826
      %v2006 = vunpack.c.l.b16 %v1827
      %v2007 = vunpack.c.h.b16 %v1827
      %v2008 = vpack.c.b16 %v1960, %v1944
      %v2009 = vpack.c.b16 %v1961, %v1945
      %v2010 = vpack.c.b16 %v1962, %v1946
      %v2011 = vpack.c.b16 %v1963, %v1947
      %v2012 = vpack.c.b16 %v1964, %v1948
      %v2013 = vpack.c.b16 %v1965, %v1949
      %v2014 = vpack.c.b16 %v1966, %v1950
      %v2015 = vpack.c.b16 %v1967, %v1951
      %v2016 = vpack.c.b16 %v1968, %v1952
      %v2017 = vpack.c.b16 %v1969, %v1953
      %v2018 = vpack.c.b16 %v1970, %v1954
      %v2019 = vpack.c.b16 %v1971, %v1955
      %v2020 = vpack.c.b16 %v1972, %v1956
      %v2021 = vpack.c.b16 %v1973, %v1957
      %v2022 = vpack.c.b16 %v1974, %v1958
      %v2023 = vpack.c.b16 %v1975, %v1959
      %v2024 = vpack.c.b16 %v1992, %v1976
      %v2025 = vpack.c.b16 %v1993, %v1977
      %v2026 = vpack.c.b16 %v1994, %v1978
      %v2027 = vpack.c.b16 %v1995, %v1979
      %v2028 = vpack.c.b16 %v1996, %v1980
      %v2029 = vpack.c.b16 %v1997, %v1981
      %v2030 = vpack.c.b16 %v1998, %v1982
      %v2031 = vpack.c.b16 %v1999, %v1983
      %v2032 = vpack.c.b16 %v2000, %v1984
      %v2033 = vpack.c.b16 %v2001, %v1985
      %v2034 = vpack.c.b16 %v2002, %v1986
      %v2035 = vpack.c.b16 %v2003, %v1987
      %v2036 = vpack.c.b16 %v2004, %v1988
      %v2037 = vpack.c.b16 %v2005, %v1989
      %v2038 = vpack.c.b16 %v2006, %v1990
      %v2039 = vpack.c.b16 %v2007, %v1991
      %v2073 = vsel %vm720, %v1795, 0
      %2075 = vmatprep.subr.bf16.mxu0 0
      %2076 = vmatpush1.bf16.msra.mxu0 0
      %2077 = vmatprep.subr.bf16.mxu0 0
      %2078 = vmatpush1.bf16.msra.mxu0 0
      %2079 = vmatprep.subr.bf16.mxu0 0
      %2080 = vmatpush1.bf16.msra.mxu0 0
      %2081 = vmatprep.subr.bf16.mxu0 0
      %2082 = vmatpush1.bf16.msra.mxu0 0
      %2083 = vmatprep.subr.bf16.mxu0 0
      %2084 = vmatpush1.bf16.msra.mxu0 0
      %2085 = vmatprep.subr.bf16.mxu0 0
      %2086 = vmatpush1.bf16.msra.mxu0 0
      %2087 = vmatprep.subr.bf16.mxu0 %v2025
      %2088 = vmatpush1.bf16.msra.mxu0 %v2024
      %2089 = vmatprep.subr.bf16.mxu0 %v2009
      %2090 = vmatpush1.bf16.msra.mxu0 %v2008
      %2091 = vmatprep.subr.bf16.mxu0 0
      %2092 = vmatpush2.bf16.msra.mxu0 0
      %2093 = vmatprep.subr.bf16.mxu0 0
      %2094 = vmatpush2.bf16.msra.mxu0 0
      %2095 = vmatprep.subr.bf16.mxu0 0
      %2096 = vmatpush2.bf16.msra.mxu0 0
      %2097 = vmatprep.subr.bf16.mxu0 0
      %2098 = vmatpush2.bf16.msra.mxu0 0
      %2099 = vmatprep.subr.bf16.mxu0 0
      %2100 = vmatpush2.bf16.msra.mxu0 0
      %2101 = vmatprep.subr.bf16.mxu0 0
      %2102 = vmatpush2.bf16.msra.mxu0 0
      %2103 = vmatprep.subr.bf16.mxu0 0
      %2104 = vmatpush2.bf16.msra.mxu0 0
      %2105 = vmatprep.subr.bf16.mxu0 0
      %2106 = vmatpush2.bf16.msra.mxu0 0
      %2107 = vmatprep.mubr.bf16.mxu0 0
      %2108 = vmatmul.mubr.bf16.gmra.mxu0 %v2073
      %v2109 = vpop.f32.mrf.mxu0
      %v2110 = vadd.f32 %v1835, %v2109
      %v2111 = vpop.f32.mrf.mxu0
      %v2112 = vadd.f32 %v1839, %v2111
      %v2113 = vpop.f32.mrf.mxu0
      %v2114 = vpop.f32.mrf.mxu0
      %2115 = vdwg.mxu0
      %2116 = vmatprep.subr.bf16.mxu0 0
      %2117 = vmatpush1.bf16.msra.mxu0 0
      %2118 = vmatprep.subr.bf16.mxu0 0
      %2119 = vmatpush1.bf16.msra.mxu0 0
      %2120 = vmatprep.subr.bf16.mxu0 0
      %2121 = vmatpush1.bf16.msra.mxu0 0
      %2122 = vmatprep.subr.bf16.mxu0 0
      %2123 = vmatpush1.bf16.msra.mxu0 0
      %2124 = vmatprep.subr.bf16.mxu0 0
      %2125 = vmatpush1.bf16.msra.mxu0 0
      %2126 = vmatprep.subr.bf16.mxu0 0
      %2127 = vmatpush1.bf16.msra.mxu0 0
      %2128 = vmatprep.subr.bf16.mxu0 %v2027
      %2129 = vmatpush1.bf16.msra.mxu0 %v2026
      %2130 = vmatprep.subr.bf16.mxu0 %v2011
      %2131 = vmatpush1.bf16.msra.mxu0 %v2010
      %2132 = vmatprep.subr.bf16.mxu0 0
      %2133 = vmatpush2.bf16.msra.mxu0 0
      %2134 = vmatprep.subr.bf16.mxu0 0
      %2135 = vmatpush2.bf16.msra.mxu0 0
      %2136 = vmatprep.subr.bf16.mxu0 0
      %2137 = vmatpush2.bf16.msra.mxu0 0
      %2138 = vmatprep.subr.bf16.mxu0 0
      %2139 = vmatpush2.bf16.msra.mxu0 0
      %2140 = vmatprep.subr.bf16.mxu0 0
      %2141 = vmatpush2.bf16.msra.mxu0 0
      %2142 = vmatprep.subr.bf16.mxu0 0
      %2143 = vmatpush2.bf16.msra.mxu0 0
      %2144 = vmatprep.subr.bf16.mxu0 0
      %2145 = vmatpush2.bf16.msra.mxu0 0
      %2146 = vmatprep.subr.bf16.mxu0 0
      %2147 = vmatpush2.bf16.msra.mxu0 0
      %2148 = vmatprep.mubr.bf16.mxu0 0
      %2149 = vmatmul.mubr.bf16.gmra.mxu0 %v2073
      %v2150 = vpop.f32.mrf.mxu0
      %v2151 = vadd.f32 %v1843, %v2150
      %v2152 = vpop.f32.mrf.mxu0
      %v2153 = vadd.f32 %v1847, %v2152
      %v2154 = vpop.f32.mrf.mxu0
      %v2155 = vpop.f32.mrf.mxu0
      %2156 = vdwg.mxu0
      %2157 = vmatprep.subr.bf16.mxu0 0
      %2158 = vmatpush1.bf16.msra.mxu0 0
      %2159 = vmatprep.subr.bf16.mxu0 0
      %2160 = vmatpush1.bf16.msra.mxu0 0
      %2161 = vmatprep.subr.bf16.mxu0 0
      %2162 = vmatpush1.bf16.msra.mxu0 0
      %2163 = vmatprep.subr.bf16.mxu0 0
      %2164 = vmatpush1.bf16.msra.mxu0 0
      %2165 = vmatprep.subr.bf16.mxu0 0
      %2166 = vmatpush1.bf16.msra.mxu0 0
      %2167 = vmatprep.subr.bf16.mxu0 0
      %2168 = vmatpush1.bf16.msra.mxu0 0
      %2169 = vmatprep.subr.bf16.mxu0 %v2029
      %2170 = vmatpush1.bf16.msra.mxu0 %v2028
      %2171 = vmatprep.subr.bf16.mxu0 %v2013
      %2172 = vmatpush1.bf16.msra.mxu0 %v2012
      %2173 = vmatprep.subr.bf16.mxu0 0
      %2174 = vmatpush2.bf16.msra.mxu0 0
      %2175 = vmatprep.subr.bf16.mxu0 0
      %2176 = vmatpush2.bf16.msra.mxu0 0
      %2177 = vmatprep.subr.bf16.mxu0 0
      %2178 = vmatpush2.bf16.msra.mxu0 0
      %2179 = vmatprep.subr.bf16.mxu0 0
      %2180 = vmatpush2.bf16.msra.mxu0 0
      %2181 = vmatprep.subr.bf16.mxu0 0
      %2182 = vmatpush2.bf16.msra.mxu0 0
      %2183 = vmatprep.subr.bf16.mxu0 0
      %2184 = vmatpush2.bf16.msra.mxu0 0
      %2185 = vmatprep.subr.bf16.mxu0 0
      %2186 = vmatpush2.bf16.msra.mxu0 0
      %2187 = vmatprep.subr.bf16.mxu0 0
      %2188 = vmatpush2.bf16.msra.mxu0 0
      %2189 = vmatprep.mubr.bf16.mxu0 0
      %2190 = vmatmul.mubr.bf16.gmra.mxu0 %v2073
      %v2191 = vpop.f32.mrf.mxu0
      %v2192 = vadd.f32 %v1851, %v2191
      %v2193 = vpop.f32.mrf.mxu0
      %v2194 = vadd.f32 %v1855, %v2193
      %v2195 = vpop.f32.mrf.mxu0
      %v2196 = vpop.f32.mrf.mxu0
      %2197 = vdwg.mxu0
      %2198 = vmatprep.subr.bf16.mxu0 0
      %2199 = vmatpush1.bf16.msra.mxu0 0
      %2200 = vmatprep.subr.bf16.mxu0 0
      %2201 = vmatpush1.bf16.msra.mxu0 0
      %2202 = vmatprep.subr.bf16.mxu0 0
      %2203 = vmatpush1.bf16.msra.mxu0 0
      %2204 = vmatprep.subr.bf16.mxu0 0
      %2205 = vmatpush1.bf16.msra.mxu0 0
      %2206 = vmatprep.subr.bf16.mxu0 0
      %2207 = vmatpush1.bf16.msra.mxu0 0
      %2208 = vmatprep.subr.bf16.mxu0 0
      %2209 = vmatpush1.bf16.msra.mxu0 0
      %2210 = vmatprep.subr.bf16.mxu0 %v2031
      %2211 = vmatpush1.bf16.msra.mxu0 %v2030
      %2212 = vmatprep.subr.bf16.mxu0 %v2015
      %2213 = vmatpush1.bf16.msra.mxu0 %v2014
      %2214 = vmatprep.subr.bf16.mxu0 0
      %2215 = vmatpush2.bf16.msra.mxu0 0
      %2216 = vmatprep.subr.bf16.mxu0 0
      %2217 = vmatpush2.bf16.msra.mxu0 0
      %2218 = vmatprep.subr.bf16.mxu0 0
      %2219 = vmatpush2.bf16.msra.mxu0 0
      %2220 = vmatprep.subr.bf16.mxu0 0
      %2221 = vmatpush2.bf16.msra.mxu0 0
      %2222 = vmatprep.subr.bf16.mxu0 0
      %2223 = vmatpush2.bf16.msra.mxu0 0
      %2224 = vmatprep.subr.bf16.mxu0 0
      %2225 = vmatpush2.bf16.msra.mxu0 0
      %2226 = vmatprep.subr.bf16.mxu0 0
      %2227 = vmatpush2.bf16.msra.mxu0 0
      %2228 = vmatprep.subr.bf16.mxu0 0
      %2229 = vmatpush2.bf16.msra.mxu0 0
      %2230 = vmatprep.mubr.bf16.mxu0 0
      %2231 = vmatmul.mubr.bf16.gmra.mxu0 %v2073
      %v2232 = vpop.f32.mrf.mxu0
      %v2233 = vadd.f32 %v1859, %v2232
      %v2234 = vpop.f32.mrf.mxu0
      %v2235 = vadd.f32 %v1863, %v2234
      %v2236 = vpop.f32.mrf.mxu0
      %v2237 = vpop.f32.mrf.mxu0
      %2238 = vdwg.mxu0
      %2239 = vmatprep.subr.bf16.mxu0 0
      %2240 = vmatpush1.bf16.msra.mxu0 0
      %2241 = vmatprep.subr.bf16.mxu0 0
      %2242 = vmatpush1.bf16.msra.mxu0 0
      %2243 = vmatprep.subr.bf16.mxu0 0
      %2244 = vmatpush1.bf16.msra.mxu0 0
      %2245 = vmatprep.subr.bf16.mxu0 0
      %2246 = vmatpush1.bf16.msra.mxu0 0
      %2247 = vmatprep.subr.bf16.mxu0 0
      %2248 = vmatpush1.bf16.msra.mxu0 0
      %2249 = vmatprep.subr.bf16.mxu0 0
      %2250 = vmatpush1.bf16.msra.mxu0 0
      %2251 = vmatprep.subr.bf16.mxu0 %v2033
      %2252 = vmatpush1.bf16.msra.mxu0 %v2032
      %2253 = vmatprep.subr.bf16.mxu0 %v2017
      %2254 = vmatpush1.bf16.msra.mxu0 %v2016
      %2255 = vmatprep.subr.bf16.mxu0 0
      %2256 = vmatpush2.bf16.msra.mxu0 0
      %2257 = vmatprep.subr.bf16.mxu0 0
      %2258 = vmatpush2.bf16.msra.mxu0 0
      %2259 = vmatprep.subr.bf16.mxu0 0
      %2260 = vmatpush2.bf16.msra.mxu0 0
      %2261 = vmatprep.subr.bf16.mxu0 0
      %2262 = vmatpush2.bf16.msra.mxu0 0
      %2263 = vmatprep.subr.bf16.mxu0 0
      %2264 = vmatpush2.bf16.msra.mxu0 0
      %2265 = vmatprep.subr.bf16.mxu0 0
      %2266 = vmatpush2.bf16.msra.mxu0 0
      %2267 = vmatprep.subr.bf16.mxu0 0
      %2268 = vmatpush2.bf16.msra.mxu0 0
      %2269 = vmatprep.subr.bf16.mxu0 0
      %2270 = vmatpush2.bf16.msra.mxu0 0
      %2271 = vmatprep.mubr.bf16.mxu0 0
      %2272 = vmatmul.mubr.bf16.gmra.mxu0 %v2073
      %v2273 = vpop.f32.mrf.mxu0
      %v2274 = vadd.f32 %v1867, %v2273
      %v2275 = vpop.f32.mrf.mxu0
      %v2276 = vadd.f32 %v1871, %v2275
      %v2277 = vpop.f32.mrf.mxu0
      %v2278 = vpop.f32.mrf.mxu0
      %2279 = vdwg.mxu0
      %2280 = vmatprep.subr.bf16.mxu0 0
      %2281 = vmatpush1.bf16.msra.mxu0 0
      %2282 = vmatprep.subr.bf16.mxu0 0
      %2283 = vmatpush1.bf16.msra.mxu0 0
      %2284 = vmatprep.subr.bf16.mxu0 0
      %2285 = vmatpush1.bf16.msra.mxu0 0
      %2286 = vmatprep.subr.bf16.mxu0 0
      %2287 = vmatpush1.bf16.msra.mxu0 0
      %2288 = vmatprep.subr.bf16.mxu0 0
      %2289 = vmatpush1.bf16.msra.mxu0 0
      %2290 = vmatprep.subr.bf16.mxu0 0
      %2291 = vmatpush1.bf16.msra.mxu0 0
      %2292 = vmatprep.subr.bf16.mxu0 %v2035
      %2293 = vmatpush1.bf16.msra.mxu0 %v2034
      %2294 = vmatprep.subr.bf16.mxu0 %v2019
      %2295 = vmatpush1.bf16.msra.mxu0 %v2018
      %2296 = vmatprep.subr.bf16.mxu0 0
      %2297 = vmatpush2.bf16.msra.mxu0 0
      %2298 = vmatprep.subr.bf16.mxu0 0
      %2299 = vmatpush2.bf16.msra.mxu0 0
      %2300 = vmatprep.subr.bf16.mxu0 0
      %2301 = vmatpush2.bf16.msra.mxu0 0
      %2302 = vmatprep.subr.bf16.mxu0 0
      %2303 = vmatpush2.bf16.msra.mxu0 0
      %2304 = vmatprep.subr.bf16.mxu0 0
      %2305 = vmatpush2.bf16.msra.mxu0 0
      %2306 = vmatprep.subr.bf16.mxu0 0
      %2307 = vmatpush2.bf16.msra.mxu0 0
      %2308 = vmatprep.subr.bf16.mxu0 0
      %2309 = vmatpush2.bf16.msra.mxu0 0
      %2310 = vmatprep.subr.bf16.mxu0 0
      %2311 = vmatpush2.bf16.msra.mxu0 0
      %2312 = vmatprep.mubr.bf16.mxu0 0
      %2313 = vmatmul.mubr.bf16.gmra.mxu0 %v2073
      %v2314 = vpop.f32.mrf.mxu0
      %v2315 = vadd.f32 %v1875, %v2314
      %v2316 = vpop.f32.mrf.mxu0
      %v2317 = vadd.f32 %v1879, %v2316
      %v2318 = vpop.f32.mrf.mxu0
      %v2319 = vpop.f32.mrf.mxu0
      %2320 = vdwg.mxu0
      %2321 = vmatprep.subr.bf16.mxu0 0
      %2322 = vmatpush1.bf16.msra.mxu0 0
      %2323 = vmatprep.subr.bf16.mxu0 0
      %2324 = vmatpush1.bf16.msra.mxu0 0
      %2325 = vmatprep.subr.bf16.mxu0 0
      %2326 = vmatpush1.bf16.msra.mxu0 0
      %2327 = vmatprep.subr.bf16.mxu0 0
      %2328 = vmatpush1.bf16.msra.mxu0 0
      %2329 = vmatprep.subr.bf16.mxu0 0
      %2330 = vmatpush1.bf16.msra.mxu0 0
      %2331 = vmatprep.subr.bf16.mxu0 0
      %2332 = vmatpush1.bf16.msra.mxu0 0
      %2333 = vmatprep.subr.bf16.mxu0 %v2037
      %2334 = vmatpush1.bf16.msra.mxu0 %v2036
      %2335 = vmatprep.subr.bf16.mxu0 %v2021
      %2336 = vmatpush1.bf16.msra.mxu0 %v2020
      %2337 = vmatprep.subr.bf16.mxu0 0
      %2338 = vmatpush2.bf16.msra.mxu0 0
      %2339 = vmatprep.subr.bf16.mxu0 0
      %2340 = vmatpush2.bf16.msra.mxu0 0
      %2341 = vmatprep.subr.bf16.mxu0 0
      %2342 = vmatpush2.bf16.msra.mxu0 0
      %2343 = vmatprep.subr.bf16.mxu0 0
      %2344 = vmatpush2.bf16.msra.mxu0 0
      %2345 = vmatprep.subr.bf16.mxu0 0
      %2346 = vmatpush2.bf16.msra.mxu0 0
      %2347 = vmatprep.subr.bf16.mxu0 0
      %2348 = vmatpush2.bf16.msra.mxu0 0
      %2349 = vmatprep.subr.bf16.mxu0 0
      %2350 = vmatpush2.bf16.msra.mxu0 0
      %2351 = vmatprep.subr.bf16.mxu0 0
      %2352 = vmatpush2.bf16.msra.mxu0 0
      %2353 = vmatprep.mubr.bf16.mxu0 0
      %2354 = vmatmul.mubr.bf16.gmra.mxu0 %v2073
      %v2355 = vpop.f32.mrf.mxu0
      %v2356 = vadd.f32 %v1883, %v2355
      %v2357 = vpop.f32.mrf.mxu0
      %v2358 = vadd.f32 %v1887, %v2357
      %v2359 = vpop.f32.mrf.mxu0
      %v2360 = vpop.f32.mrf.mxu0
      %2361 = vdwg.mxu0
      %2362 = vmatprep.subr.bf16.mxu0 0
      %2363 = vmatpush1.bf16.msra.mxu0 0
      %2364 = vmatprep.subr.bf16.mxu0 0
      %2365 = vmatpush1.bf16.msra.mxu0 0
      %2366 = vmatprep.subr.bf16.mxu0 0
      %2367 = vmatpush1.bf16.msra.mxu0 0
      %2368 = vmatprep.subr.bf16.mxu0 0
      %2369 = vmatpush1.bf16.msra.mxu0 0
      %2370 = vmatprep.subr.bf16.mxu0 0
      %2371 = vmatpush1.bf16.msra.mxu0 0
      %2372 = vmatprep.subr.bf16.mxu0 0
      %2373 = vmatpush1.bf16.msra.mxu0 0
      %2374 = vmatprep.subr.bf16.mxu0 %v2039
      %2375 = vmatpush1.bf16.msra.mxu0 %v2038
      %2376 = vmatprep.subr.bf16.mxu0 %v2023
      %2377 = vmatpush1.bf16.msra.mxu0 %v2022
      %2378 = vmatprep.subr.bf16.mxu0 0
      %2379 = vmatpush2.bf16.msra.mxu0 0
      %2380 = vmatprep.subr.bf16.mxu0 0
      %2381 = vmatpush2.bf16.msra.mxu0 0
      %2382 = vmatprep.subr.bf16.mxu0 0
      %2383 = vmatpush2.bf16.msra.mxu0 0
      %2384 = vmatprep.subr.bf16.mxu0 0
      %2385 = vmatpush2.bf16.msra.mxu0 0
      %2386 = vmatprep.subr.bf16.mxu0 0
      %2387 = vmatpush2.bf16.msra.mxu0 0
      %2388 = vmatprep.subr.bf16.mxu0 0
      %2389 = vmatpush2.bf16.msra.mxu0 0
      %2390 = vmatprep.subr.bf16.mxu0 0
      %2391 = vmatpush2.bf16.msra.mxu0 0
      %2392 = vmatprep.subr.bf16.mxu0 0
      %2393 = vmatpush2.bf16.msra.mxu0 0
      %2394 = vmatprep.mubr.bf16.mxu0 0
      %2395 = vmatmul.mubr.bf16.gmra.mxu0 %v2073
      %v2396 = vpop.f32.mrf.mxu0
      %v2397 = vadd.f32 %v1891, %v2396
      %v2398 = vpop.f32.mrf.mxu0
      %v2399 = vadd.f32 %v1895, %v2398
      %v2400 = vpop.f32.mrf.mxu0
      %v2401 = vpop.f32.mrf.mxu0
      %2402 = vdwg.mxu0
      %v2403 = vmax.f32 %v2110, 0.0
      %v2404 = vmax.f32 %v2112, 0.0
      %v2405 = vmax.f32 %v2151, 0.0
      %v2406 = vmax.f32 %v2153, 0.0
      %v2407 = vmax.f32 %v2192, 0.0
      %v2408 = vmax.f32 %v2194, 0.0
      %v2409 = vmax.f32 %v2233, 0.0
      %v2410 = vmax.f32 %v2235, 0.0
      %v2411 = vmax.f32 %v2274, 0.0
      %v2412 = vmax.f32 %v2276, 0.0
      %v2413 = vmax.f32 %v2315, 0.0
      %v2414 = vmax.f32 %v2317, 0.0
      %v2415 = vmax.f32 %v2356, 0.0
      %v2416 = vmax.f32 %v2358, 0.0
      %v2417 = vmax.f32 %v2397, 0.0
      %v2418 = vmax.f32 %v2399, 0.0
      %v2419 = vpack.c.bf16 %v2403, %v2403
      %v2420 = vpack.c.bf16 %v2404, %v2404
      %v2421 = vpack.c.bf16 %v2405, %v2405
      %v2422 = vpack.c.bf16 %v2406, %v2406
      %v2423 = vpack.c.bf16 %v2407, %v2407
      %v2424 = vpack.c.bf16 %v2408, %v2408
      %v2425 = vpack.c.bf16 %v2409, %v2409
      %v2426 = vpack.c.bf16 %v2410, %v2410
      %v2427 = vpack.c.bf16 %v2411, %v2411
      %v2428 = vpack.c.bf16 %v2412, %v2412
      %v2429 = vpack.c.bf16 %v2413, %v2413
      %v2430 = vpack.c.bf16 %v2414, %v2414
      %v2431 = vpack.c.bf16 %v2415, %v2415
      %v2432 = vpack.c.bf16 %v2416, %v2416
      %v2433 = vpack.c.bf16 %v2417, %v2417
      %v2434 = vpack.c.bf16 %v2418, %v2418
      %v2435 = vld [vmem:[%s664] sm:$0xf]
      %v2436 = vld [vmem:[%s664 + $0x4] sm:$0xf]
      %v2437 = vld [vmem:[%s664 + $0x8] sm:$0xf]
      %v2438 = vld [vmem:[%s664 + $0xc] sm:$0xf]
      %v2439 = vld [vmem:[%s664 + $0x10] sm:$0xf]
      %v2440 = vld [vmem:[%s664 + $0x14] sm:$0xf]
      %v2441 = vld [vmem:[%s664 + $0x18] sm:$0xf]
      %v2442 = vld [vmem:[%s664 + $0x1c] sm:$0xf]
      %v2443 = vld [vmem:[%s664 + $0x20] sm:$0xf]
      %v2444 = vld [vmem:[%s664 + $0x24] sm:$0xf]
      %v2445 = vld [vmem:[%s664 + $0x28] sm:$0xf]
      %v2446 = vld [vmem:[%s664 + $0x2c] sm:$0xf]
      %v2447 = vld [vmem:[%s664 + $0x30] sm:$0xf]
      %v2448 = vld [vmem:[%s664 + $0x34] sm:$0xf]
      %v2449 = vld [vmem:[%s664 + $0x38] sm:$0xf]
      %v2450 = vld [vmem:[%s664 + $0x3c] sm:$0xf]
      %v2451 = vld [vmem:[%s664 + $0x40] sm:$0xf]
      %v2452 = vld [vmem:[%s664 + $0x44] sm:$0xf]
      %v2453 = vld [vmem:[%s664 + $0x48] sm:$0xf]
      %v2454 = vld [vmem:[%s664 + $0x4c] sm:$0xf]
      %v2455 = vld [vmem:[%s664 + $0x50] sm:$0xf]
      %v2456 = vld [vmem:[%s664 + $0x54] sm:$0xf]
      %v2457 = vld [vmem:[%s664 + $0x58] sm:$0xf]
      %v2458 = vld [vmem:[%s664 + $0x5c] sm:$0xf]
      %v2459 = vld [vmem:[%s664 + $0x60] sm:$0xf]
      %v2460 = vld [vmem:[%s664 + $0x64] sm:$0xf]
      %v2461 = vld [vmem:[%s664 + $0x68] sm:$0xf]
      %v2462 = vld [vmem:[%s664 + $0x6c] sm:$0xf]
      %v2463 = vld [vmem:[%s664 + $0x70] sm:$0xf]
      %v2464 = vld [vmem:[%s664 + $0x74] sm:$0xf]
      %v2465 = vld [vmem:[%s664 + $0x78] sm:$0xf]
      %v2466 = vld [vmem:[%s664 + $0x7c] sm:$0xf]
      %v2467 = vld [vmem:[%s664 + $0x80] sm:$0xf]
      %v2468 = vld [vmem:[%s664 + $0x84] sm:$0xf]
      %v2469 = vld [vmem:[%s664 + $0x88] sm:$0xf]
      %v2470 = vld [vmem:[%s664 + $0x8c] sm:$0xf]
      %v2471 = vld [vmem:[%s664 + $0x90] sm:$0xf]
      %v2472 = vld [vmem:[%s664 + $0x94] sm:$0xf]
      %v2473 = vld [vmem:[%s664 + $0x98] sm:$0xf]
      %v2474 = vld [vmem:[%s664 + $0x9c] sm:$0xf]
      %v2475 = vld [vmem:[%s664 + $0xa0] sm:$0xf]
      %v2476 = vld [vmem:[%s664 + $0xa4] sm:$0xf]
      %v2477 = vld [vmem:[%s664 + $0xa8] sm:$0xf]
      %v2478 = vld [vmem:[%s664 + $0xac] sm:$0xf]
      %v2479 = vld [vmem:[%s664 + $0xb0] sm:$0xf]
      %v2480 = vld [vmem:[%s664 + $0xb4] sm:$0xf]
      %v2481 = vld [vmem:[%s664 + $0xb8] sm:$0xf]
      %v2482 = vld [vmem:[%s664 + $0xbc] sm:$0xf]
      %v2483 = vld [vmem:[%s664 + $0xc0] sm:$0xf]
      %v2484 = vld [vmem:[%s664 + $0xc4] sm:$0xf]
      %v2485 = vld [vmem:[%s664 + $0xc8] sm:$0xf]
      %v2486 = vld [vmem:[%s664 + $0xcc] sm:$0xf]
      %v2487 = vld [vmem:[%s664 + $0xd0] sm:$0xf]
      %v2488 = vld [vmem:[%s664 + $0xd4] sm:$0xf]
      %v2489 = vld [vmem:[%s664 + $0xd8] sm:$0xf]
      %v2490 = vld [vmem:[%s664 + $0xdc] sm:$0xf]
      %v2491 = vld [vmem:[%s664 + $0xe0] sm:$0xf]
      %v2492 = vld [vmem:[%s664 + $0xe4] sm:$0xf]
      %v2493 = vld [vmem:[%s664 + $0xe8] sm:$0xf]
      %v2494 = vld [vmem:[%s664 + $0xec] sm:$0xf]
      %v2495 = vld [vmem:[%s664 + $0xf0] sm:$0xf]
      %v2496 = vld [vmem:[%s664 + $0xf4] sm:$0xf]
      %v2497 = vld [vmem:[%s664 + $0xf8] sm:$0xf]
      %v2498 = vld [vmem:[%s664 + $0xfc] sm:$0xf]
      %v2499 = vld [vmem:[%s664 + $0x100] sm:$0xf]
      %v2500 = vld [vmem:[%s664 + $0x104] sm:$0xf]
      %v2501 = vld [vmem:[%s664 + $0x108] sm:$0xf]
      %v2502 = vld [vmem:[%s664 + $0x10c] sm:$0xf]
      %v2503 = vld [vmem:[%s664 + $0x110] sm:$0xf]
      %v2504 = vld [vmem:[%s664 + $0x114] sm:$0xf]
      %v2505 = vld [vmem:[%s664 + $0x118] sm:$0xf]
      %v2506 = vld [vmem:[%s664 + $0x11c] sm:$0xf]
      %v2507 = vld [vmem:[%s664 + $0x120] sm:$0xf]
      %v2508 = vld [vmem:[%s664 + $0x124] sm:$0xf]
      %v2509 = vld [vmem:[%s664 + $0x128] sm:$0xf]
      %v2510 = vld [vmem:[%s664 + $0x12c] sm:$0xf]
      %v2511 = vld [vmem:[%s664 + $0x130] sm:$0xf]
      %v2512 = vld [vmem:[%s664 + $0x134] sm:$0xf]
      %v2513 = vld [vmem:[%s664 + $0x138] sm:$0xf]
      %v2514 = vld [vmem:[%s664 + $0x13c] sm:$0xf]
      %v2515 = vld [vmem:[%s664 + $0x140] sm:$0xf]
      %v2516 = vld [vmem:[%s664 + $0x144] sm:$0xf]
      %v2517 = vld [vmem:[%s664 + $0x148] sm:$0xf]
      %v2518 = vld [vmem:[%s664 + $0x14c] sm:$0xf]
      %v2519 = vld [vmem:[%s664 + $0x150] sm:$0xf]
      %v2520 = vld [vmem:[%s664 + $0x154] sm:$0xf]
      %v2521 = vld [vmem:[%s664 + $0x158] sm:$0xf]
      %v2522 = vld [vmem:[%s664 + $0x15c] sm:$0xf]
      %v2523 = vld [vmem:[%s664 + $0x160] sm:$0xf]
      %v2524 = vld [vmem:[%s664 + $0x164] sm:$0xf]
      %v2525 = vld [vmem:[%s664 + $0x168] sm:$0xf]
      %v2526 = vld [vmem:[%s664 + $0x16c] sm:$0xf]
      %v2527 = vld [vmem:[%s664 + $0x170] sm:$0xf]
      %v2528 = vld [vmem:[%s664 + $0x174] sm:$0xf]
      %v2529 = vld [vmem:[%s664 + $0x178] sm:$0xf]
      %v2530 = vld [vmem:[%s664 + $0x17c] sm:$0xf]
      %v2531 = vld [vmem:[%s664 + $0x180] sm:$0xf]
      %v2532 = vld [vmem:[%s664 + $0x184] sm:$0xf]
      %v2533 = vld [vmem:[%s664 + $0x188] sm:$0xf]
      %v2534 = vld [vmem:[%s664 + $0x18c] sm:$0xf]
      %v2535 = vld [vmem:[%s664 + $0x190] sm:$0xf]
      %v2536 = vld [vmem:[%s664 + $0x194] sm:$0xf]
      %v2537 = vld [vmem:[%s664 + $0x198] sm:$0xf]
      %v2538 = vld [vmem:[%s664 + $0x19c] sm:$0xf]
      %v2539 = vld [vmem:[%s664 + $0x1a0] sm:$0xf]
      %v2540 = vld [vmem:[%s664 + $0x1a4] sm:$0xf]
      %v2541 = vld [vmem:[%s664 + $0x1a8] sm:$0xf]
      %v2542 = vld [vmem:[%s664 + $0x1ac] sm:$0xf]
      %v2543 = vld [vmem:[%s664 + $0x1b0] sm:$0xf]
      %v2544 = vld [vmem:[%s664 + $0x1b4] sm:$0xf]
      %v2545 = vld [vmem:[%s664 + $0x1b8] sm:$0xf]
      %v2546 = vld [vmem:[%s664 + $0x1bc] sm:$0xf]
      %v2547 = vld [vmem:[%s664 + $0x1c0] sm:$0xf]
      %v2548 = vld [vmem:[%s664 + $0x1c4] sm:$0xf]
      %v2549 = vld [vmem:[%s664 + $0x1c8] sm:$0xf]
      %v2550 = vld [vmem:[%s664 + $0x1cc] sm:$0xf]
      %v2551 = vld [vmem:[%s664 + $0x1d0] sm:$0xf]
      %v2552 = vld [vmem:[%s664 + $0x1d4] sm:$0xf]
      %v2553 = vld [vmem:[%s664 + $0x1d8] sm:$0xf]
      %v2554 = vld [vmem:[%s664 + $0x1dc] sm:$0xf]
      %v2555 = vld [vmem:[%s664 + $0x1e0] sm:$0xf]
      %v2556 = vld [vmem:[%s664 + $0x1e4] sm:$0xf]
      %v2557 = vld [vmem:[%s664 + $0x1e8] sm:$0xf]
      %v2558 = vld [vmem:[%s664 + $0x1ec] sm:$0xf]
      %v2559 = vld [vmem:[%s664 + $0x1f0] sm:$0xf]
      %v2560 = vld [vmem:[%s664 + $0x1f4] sm:$0xf]
      %v2561 = vld [vmem:[%s664 + $0x1f8] sm:$0xf]
      %v2562 = vld [vmem:[%s664 + $0x1fc] sm:$0xf]
      %v2563 = vld [vmem:[%s664 + $0x200] sm:$0xf]
      %v2564 = vld [vmem:[%s664 + $0x204] sm:$0xf]
      %v2565 = vld [vmem:[%s664 + $0x208] sm:$0xf]
      %v2566 = vld [vmem:[%s664 + $0x20c] sm:$0xf]
      %v2567 = vld [vmem:[%s664 + $0x210] sm:$0xf]
      %v2568 = vld [vmem:[%s664 + $0x214] sm:$0xf]
      %v2569 = vld [vmem:[%s664 + $0x218] sm:$0xf]
      %v2570 = vld [vmem:[%s664 + $0x21c] sm:$0xf]
      %v2571 = vld [vmem:[%s664 + $0x220] sm:$0xf]
      %v2572 = vld [vmem:[%s664 + $0x224] sm:$0xf]
      %v2573 = vld [vmem:[%s664 + $0x228] sm:$0xf]
      %v2574 = vld [vmem:[%s664 + $0x22c] sm:$0xf]
      %v2575 = vld [vmem:[%s664 + $0x230] sm:$0xf]
      %v2576 = vld [vmem:[%s664 + $0x234] sm:$0xf]
      %v2577 = vld [vmem:[%s664 + $0x238] sm:$0xf]
      %v2578 = vld [vmem:[%s664 + $0x23c] sm:$0xf]
      %v2579 = vld [vmem:[%s664 + $0x240] sm:$0xf]
      %v2580 = vld [vmem:[%s664 + $0x244] sm:$0xf]
      %v2581 = vld [vmem:[%s664 + $0x248] sm:$0xf]
      %v2582 = vld [vmem:[%s664 + $0x24c] sm:$0xf]
      %v2583 = vld [vmem:[%s664 + $0x250] sm:$0xf]
      %v2584 = vld [vmem:[%s664 + $0x254] sm:$0xf]
      %v2585 = vld [vmem:[%s664 + $0x258] sm:$0xf]
      %v2586 = vld [vmem:[%s664 + $0x25c] sm:$0xf]
      %v2587 = vld [vmem:[%s664 + $0x260] sm:$0xf]
      %v2588 = vld [vmem:[%s664 + $0x264] sm:$0xf]
      %v2589 = vld [vmem:[%s664 + $0x268] sm:$0xf]
      %v2590 = vld [vmem:[%s664 + $0x26c] sm:$0xf]
      %v2591 = vld [vmem:[%s664 + $0x270] sm:$0xf]
      %v2592 = vld [vmem:[%s664 + $0x274] sm:$0xf]
      %v2593 = vld [vmem:[%s664 + $0x278] sm:$0xf]
      %v2594 = vld [vmem:[%s664 + $0x27c] sm:$0xf]
      %v2595 = vld [vmem:[%s664 + $0x280] sm:$0xf]
      %v2596 = vld [vmem:[%s664 + $0x284] sm:$0xf]
      %v2597 = vld [vmem:[%s664 + $0x288] sm:$0xf]
      %v2598 = vld [vmem:[%s664 + $0x28c] sm:$0xf]
      %v2599 = vld [vmem:[%s664 + $0x290] sm:$0xf]
      %v2600 = vld [vmem:[%s664 + $0x294] sm:$0xf]
      %v2601 = vld [vmem:[%s664 + $0x298] sm:$0xf]
      %v2602 = vld [vmem:[%s664 + $0x29c] sm:$0xf]
      %v2603 = vld [vmem:[%s664 + $0x2a0] sm:$0xf]
      %v2604 = vld [vmem:[%s664 + $0x2a4] sm:$0xf]
      %v2605 = vld [vmem:[%s664 + $0x2a8] sm:$0xf]
      %v2606 = vld [vmem:[%s664 + $0x2ac] sm:$0xf]
      %v2607 = vld [vmem:[%s664 + $0x2b0] sm:$0xf]
      %v2608 = vld [vmem:[%s664 + $0x2b4] sm:$0xf]
      %v2609 = vld [vmem:[%s664 + $0x2b8] sm:$0xf]
      %v2610 = vld [vmem:[%s664 + $0x2bc] sm:$0xf]
      %v2611 = vld [vmem:[%s664 + $0x2c0] sm:$0xf]
      %v2612 = vld [vmem:[%s664 + $0x2c4] sm:$0xf]
      %v2613 = vld [vmem:[%s664 + $0x2c8] sm:$0xf]
      %v2614 = vld [vmem:[%s664 + $0x2cc] sm:$0xf]
      %v2615 = vld [vmem:[%s664 + $0x2d0] sm:$0xf]
      %v2616 = vld [vmem:[%s664 + $0x2d4] sm:$0xf]
      %v2617 = vld [vmem:[%s664 + $0x2d8] sm:$0xf]
      %v2618 = vld [vmem:[%s664 + $0x2dc] sm:$0xf]
      %v2619 = vld [vmem:[%s664 + $0x2e0] sm:$0xf]
      %v2620 = vld [vmem:[%s664 + $0x2e4] sm:$0xf]
      %v2621 = vld [vmem:[%s664 + $0x2e8] sm:$0xf]
      %v2622 = vld [vmem:[%s664 + $0x2ec] sm:$0xf]
      %v2623 = vld [vmem:[%s664 + $0x2f0] sm:$0xf]
      %v2624 = vld [vmem:[%s664 + $0x2f4] sm:$0xf]
      %v2625 = vld [vmem:[%s664 + $0x2f8] sm:$0xf]
      %v2626 = vld [vmem:[%s664 + $0x2fc] sm:$0xf]
      %v2627 = vld [vmem:[%s664 + $0x300] sm:$0xf]
      %v2628 = vld [vmem:[%s664 + $0x304] sm:$0xf]
      %v2629 = vld [vmem:[%s664 + $0x308] sm:$0xf]
      %v2630 = vld [vmem:[%s664 + $0x30c] sm:$0xf]
      %v2631 = vld [vmem:[%s664 + $0x310] sm:$0xf]
      %v2632 = vld [vmem:[%s664 + $0x314] sm:$0xf]
      %v2633 = vld [vmem:[%s664 + $0x318] sm:$0xf]
      %v2634 = vld [vmem:[%s664 + $0x31c] sm:$0xf]
      %v2635 = vld [vmem:[%s664 + $0x320] sm:$0xf]
      %v2636 = vld [vmem:[%s664 + $0x324] sm:$0xf]
      %v2637 = vld [vmem:[%s664 + $0x328] sm:$0xf]
      %v2638 = vld [vmem:[%s664 + $0x32c] sm:$0xf]
      %v2639 = vld [vmem:[%s664 + $0x330] sm:$0xf]
      %v2640 = vld [vmem:[%s664 + $0x334] sm:$0xf]
      %v2641 = vld [vmem:[%s664 + $0x338] sm:$0xf]
      %v2642 = vld [vmem:[%s664 + $0x33c] sm:$0xf]
      %v2643 = vld [vmem:[%s664 + $0x340] sm:$0xf]
      %v2644 = vld [vmem:[%s664 + $0x344] sm:$0xf]
      %v2645 = vld [vmem:[%s664 + $0x348] sm:$0xf]
      %v2646 = vld [vmem:[%s664 + $0x34c] sm:$0xf]
      %v2647 = vld [vmem:[%s664 + $0x350] sm:$0xf]
      %v2648 = vld [vmem:[%s664 + $0x354] sm:$0xf]
      %v2649 = vld [vmem:[%s664 + $0x358] sm:$0xf]
      %v2650 = vld [vmem:[%s664 + $0x35c] sm:$0xf]
      %v2651 = vld [vmem:[%s664 + $0x360] sm:$0xf]
      %v2652 = vld [vmem:[%s664 + $0x364] sm:$0xf]
      %v2653 = vld [vmem:[%s664 + $0x368] sm:$0xf]
      %v2654 = vld [vmem:[%s664 + $0x36c] sm:$0xf]
      %v2655 = vld [vmem:[%s664 + $0x370] sm:$0xf]
      %v2656 = vld [vmem:[%s664 + $0x374] sm:$0xf]
      %v2657 = vld [vmem:[%s664 + $0x378] sm:$0xf]
      %v2658 = vld [vmem:[%s664 + $0x37c] sm:$0xf]
      %v2659 = vld [vmem:[%s664 + $0x380] sm:$0xf]
      %v2660 = vld [vmem:[%s664 + $0x384] sm:$0xf]
      %v2661 = vld [vmem:[%s664 + $0x388] sm:$0xf]
      %v2662 = vld [vmem:[%s664 + $0x38c] sm:$0xf]
      %v2663 = vld [vmem:[%s664 + $0x390] sm:$0xf]
      %v2664 = vld [vmem:[%s664 + $0x394] sm:$0xf]
      %v2665 = vld [vmem:[%s664 + $0x398] sm:$0xf]
      %v2666 = vld [vmem:[%s664 + $0x39c] sm:$0xf]
      %v2667 = vld [vmem:[%s664 + $0x3a0] sm:$0xf]
      %v2668 = vld [vmem:[%s664 + $0x3a4] sm:$0xf]
      %v2669 = vld [vmem:[%s664 + $0x3a8] sm:$0xf]
      %v2670 = vld [vmem:[%s664 + $0x3ac] sm:$0xf]
      %v2671 = vld [vmem:[%s664 + $0x3b0] sm:$0xf]
      %v2672 = vld [vmem:[%s664 + $0x3b4] sm:$0xf]
      %v2673 = vld [vmem:[%s664 + $0x3b8] sm:$0xf]
      %v2674 = vld [vmem:[%s664 + $0x3bc] sm:$0xf]
      %v2675 = vld [vmem:[%s664 + $0x3c0] sm:$0xf]
      %v2676 = vld [vmem:[%s664 + $0x3c4] sm:$0xf]
      %v2677 = vld [vmem:[%s664 + $0x3c8] sm:$0xf]
      %v2678 = vld [vmem:[%s664 + $0x3cc] sm:$0xf]
      %v2679 = vld [vmem:[%s664 + $0x3d0] sm:$0xf]
      %v2680 = vld [vmem:[%s664 + $0x3d4] sm:$0xf]
      %v2681 = vld [vmem:[%s664 + $0x3d8] sm:$0xf]
      %v2682 = vld [vmem:[%s664 + $0x3dc] sm:$0xf]
      %v2683 = vld [vmem:[%s664 + $0x3e0] sm:$0xf]
      %v2684 = vld [vmem:[%s664 + $0x3e4] sm:$0xf]
      %v2685 = vld [vmem:[%s664 + $0x3e8] sm:$0xf]
      %v2686 = vld [vmem:[%s664 + $0x3ec] sm:$0xf]
      %v2687 = vld [vmem:[%s664 + $0x3f0] sm:$0xf]
      %v2688 = vld [vmem:[%s664 + $0x3f4] sm:$0xf]
      %v2689 = vld [vmem:[%s664 + $0x3f8] sm:$0xf]
      %v2690 = vld [vmem:[%s664 + $0x3fc] sm:$0xf]
      %v2691 = vld [vmem:[%s667] sm:$0x1]
      %v2693 = vlaneseq
      %v2694 = vshrl.u32 %v2693, 7
      %v2695 = vsub.s32 0, %v2694
      %v2696 = vrot.slane %v2691, %v2695
      %v2954 = vunpack.c.l.b16 %v2435
      %v2955 = vunpack.c.l.b16 %v2436
      %v2956 = vunpack.c.l.b16 %v2437
      %v2957 = vunpack.c.l.b16 %v2438
      %v2958 = vunpack.c.l.b16 %v2439
      %v2959 = vunpack.c.l.b16 %v2440
      %v2960 = vunpack.c.l.b16 %v2441
      %v2961 = vunpack.c.l.b16 %v2442
      %v2962 = vunpack.c.l.b16 %v2443
      %v2963 = vunpack.c.l.b16 %v2444
      %v2964 = vunpack.c.l.b16 %v2445
      %v2965 = vunpack.c.l.b16 %v2446
      %v2966 = vunpack.c.l.b16 %v2447
      %v2967 = vunpack.c.l.b16 %v2448
      %v2968 = vunpack.c.l.b16 %v2449
      %v2969 = vunpack.c.l.b16 %v2450
      %v2970 = vunpack.c.l.b16 %v2451
      %v2971 = vunpack.c.l.b16 %v2452
      %v2972 = vunpack.c.l.b16 %v2453
      %v2973 = vunpack.c.l.b16 %v2454
      %v2974 = vunpack.c.l.b16 %v2455
      %v2975 = vunpack.c.l.b16 %v2456
      %v2976 = vunpack.c.l.b16 %v2457
      %v2977 = vunpack.c.l.b16 %v2458
      %v2978 = vunpack.c.l.b16 %v2459
      %v2979 = vunpack.c.l.b16 %v2460
      %v2980 = vunpack.c.l.b16 %v2461
      %v2981 = vunpack.c.l.b16 %v2462
      %v2982 = vunpack.c.l.b16 %v2463
      %v2983 = vunpack.c.l.b16 %v2464
      %v2984 = vunpack.c.l.b16 %v2465
      %v2985 = vunpack.c.l.b16 %v2466
      %v2986 = vunpack.c.l.b16 %v2467
      %v2987 = vunpack.c.l.b16 %v2468
      %v2988 = vunpack.c.l.b16 %v2469
      %v2989 = vunpack.c.l.b16 %v2470
      %v2990 = vunpack.c.l.b16 %v2471
      %v2991 = vunpack.c.l.b16 %v2472
      %v2992 = vunpack.c.l.b16 %v2473
      %v2993 = vunpack.c.l.b16 %v2474
      %v2994 = vunpack.c.l.b16 %v2475
      %v2995 = vunpack.c.l.b16 %v2476
      %v2996 = vunpack.c.l.b16 %v2477
      %v2997 = vunpack.c.l.b16 %v2478
      %v2998 = vunpack.c.l.b16 %v2479
      %v2999 = vunpack.c.l.b16 %v2480
      %v3000 = vunpack.c.l.b16 %v2481
      %v3001 = vunpack.c.l.b16 %v2482
      %v3002 = vunpack.c.l.b16 %v2483
      %v3003 = vunpack.c.l.b16 %v2484
      %v3004 = vunpack.c.l.b16 %v2485
      %v3005 = vunpack.c.l.b16 %v2486
      %v3006 = vunpack.c.l.b16 %v2487
      %v3007 = vunpack.c.l.b16 %v2488
      %v3008 = vunpack.c.l.b16 %v2489
      %v3009 = vunpack.c.l.b16 %v2490
      %v3010 = vunpack.c.l.b16 %v2491
      %v3011 = vunpack.c.l.b16 %v2492
      %v3012 = vunpack.c.l.b16 %v2493
      %v3013 = vunpack.c.l.b16 %v2494
      %v3014 = vunpack.c.l.b16 %v2495
      %v3015 = vunpack.c.l.b16 %v2496
      %v3016 = vunpack.c.l.b16 %v2497
      %v3017 = vunpack.c.l.b16 %v2498
      %v3018 = vunpack.c.l.b16 %v2499
      %v3019 = vunpack.c.l.b16 %v2500
      %v3020 = vunpack.c.l.b16 %v2501
      %v3021 = vunpack.c.l.b16 %v2502
      %v3022 = vunpack.c.l.b16 %v2503
      %v3023 = vunpack.c.l.b16 %v2504
      %v3024 = vunpack.c.l.b16 %v2505
      %v3025 = vunpack.c.l.b16 %v2506
      %v3026 = vunpack.c.l.b16 %v2507
      %v3027 = vunpack.c.l.b16 %v2508
      %v3028 = vunpack.c.l.b16 %v2509
      %v3029 = vunpack.c.l.b16 %v2510
      %v3030 = vunpack.c.l.b16 %v2511
      %v3031 = vunpack.c.l.b16 %v2512
      %v3032 = vunpack.c.l.b16 %v2513
      %v3033 = vunpack.c.l.b16 %v2514
      %v3034 = vunpack.c.l.b16 %v2515
      %v3035 = vunpack.c.l.b16 %v2516
      %v3036 = vunpack.c.l.b16 %v2517
      %v3037 = vunpack.c.l.b16 %v2518
      %v3038 = vunpack.c.l.b16 %v2519
      %v3039 = vunpack.c.l.b16 %v2520
      %v3040 = vunpack.c.l.b16 %v2521
      %v3041 = vunpack.c.l.b16 %v2522
      %v3042 = vunpack.c.l.b16 %v2523
      %v3043 = vunpack.c.l.b16 %v2524
      %v3044 = vunpack.c.l.b16 %v2525
      %v3045 = vunpack.c.l.b16 %v2526
      %v3046 = vunpack.c.l.b16 %v2527
      %v3047 = vunpack.c.l.b16 %v2528
      %v3048 = vunpack.c.l.b16 %v2529
      %v3049 = vunpack.c.l.b16 %v2530
      %v3050 = vunpack.c.l.b16 %v2531
      %v3051 = vunpack.c.l.b16 %v2532
      %v3052 = vunpack.c.l.b16 %v2533
      %v3053 = vunpack.c.l.b16 %v2534
      %v3054 = vunpack.c.l.b16 %v2535
      %v3055 = vunpack.c.l.b16 %v2536
      %v3056 = vunpack.c.l.b16 %v2537
      %v3057 = vunpack.c.l.b16 %v2538
      %v3058 = vunpack.c.l.b16 %v2539
      %v3059 = vunpack.c.l.b16 %v2540
      %v3060 = vunpack.c.l.b16 %v2541
      %v3061 = vunpack.c.l.b16 %v2542
      %v3062 = vunpack.c.l.b16 %v2543
      %v3063 = vunpack.c.l.b16 %v2544
      %v3064 = vunpack.c.l.b16 %v2545
      %v3065 = vunpack.c.l.b16 %v2546
      %v3066 = vunpack.c.l.b16 %v2547
      %v3067 = vunpack.c.l.b16 %v2548
      %v3068 = vunpack.c.l.b16 %v2549
      %v3069 = vunpack.c.l.b16 %v2550
      %v3070 = vunpack.c.l.b16 %v2551
      %v3071 = vunpack.c.l.b16 %v2552
      %v3072 = vunpack.c.l.b16 %v2553
      %v3073 = vunpack.c.l.b16 %v2554
      %v3074 = vunpack.c.l.b16 %v2555
      %v3075 = vunpack.c.l.b16 %v2556
      %v3076 = vunpack.c.l.b16 %v2557
      %v3077 = vunpack.c.l.b16 %v2558
      %v3078 = vunpack.c.l.b16 %v2559
      %v3079 = vunpack.c.l.b16 %v2560
      %v3080 = vunpack.c.l.b16 %v2561
      %v3081 = vunpack.c.l.b16 %v2562
      %v3082 = vunpack.c.l.b16 %v2563
      %v3083 = vunpack.c.l.b16 %v2564
      %v3084 = vunpack.c.l.b16 %v2565
      %v3085 = vunpack.c.l.b16 %v2566
      %v3086 = vunpack.c.l.b16 %v2567
      %v3087 = vunpack.c.l.b16 %v2568
      %v3088 = vunpack.c.l.b16 %v2569
      %v3089 = vunpack.c.l.b16 %v2570
      %v3090 = vunpack.c.l.b16 %v2571
      %v3091 = vunpack.c.l.b16 %v2572
      %v3092 = vunpack.c.l.b16 %v2573
      %v3093 = vunpack.c.l.b16 %v2574
      %v3094 = vunpack.c.l.b16 %v2575
      %v3095 = vunpack.c.l.b16 %v2576
      %v3096 = vunpack.c.l.b16 %v2577
      %v3097 = vunpack.c.l.b16 %v2578
      %v3098 = vunpack.c.l.b16 %v2579
      %v3099 = vunpack.c.l.b16 %v2580
      %v3100 = vunpack.c.l.b16 %v2581
      %v3101 = vunpack.c.l.b16 %v2582
      %v3102 = vunpack.c.l.b16 %v2583
      %v3103 = vunpack.c.l.b16 %v2584
      %v3104 = vunpack.c.l.b16 %v2585
      %v3105 = vunpack.c.l.b16 %v2586
      %v3106 = vunpack.c.l.b16 %v2587
      %v3107 = vunpack.c.l.b16 %v2588
      %v3108 = vunpack.c.l.b16 %v2589
      %v3109 = vunpack.c.l.b16 %v2590
      %v3110 = vunpack.c.l.b16 %v2591
      %v3111 = vunpack.c.l.b16 %v2592
      %v3112 = vunpack.c.l.b16 %v2593
      %v3113 = vunpack.c.l.b16 %v2594
      %v3114 = vunpack.c.l.b16 %v2595
      %v3115 = vunpack.c.l.b16 %v2596
      %v3116 = vunpack.c.l.b16 %v2597
      %v3117 = vunpack.c.l.b16 %v2598
      %v3118 = vunpack.c.l.b16 %v2599
      %v3119 = vunpack.c.l.b16 %v2600
      %v3120 = vunpack.c.l.b16 %v2601
      %v3121 = vunpack.c.l.b16 %v2602
      %v3122 = vunpack.c.l.b16 %v2603
      %v3123 = vunpack.c.l.b16 %v2604
      %v3124 = vunpack.c.l.b16 %v2605
      %v3125 = vunpack.c.l.b16 %v2606
      %v3126 = vunpack.c.l.b16 %v2607
      %v3127 = vunpack.c.l.b16 %v2608
      %v3128 = vunpack.c.l.b16 %v2609
      %v3129 = vunpack.c.l.b16 %v2610
      %v3130 = vunpack.c.l.b16 %v2611
      %v3131 = vunpack.c.l.b16 %v2612
      %v3132 = vunpack.c.l.b16 %v2613
      %v3133 = vunpack.c.l.b16 %v2614
      %v3134 = vunpack.c.l.b16 %v2615
      %v3135 = vunpack.c.l.b16 %v2616
      %v3136 = vunpack.c.l.b16 %v2617
      %v3137 = vunpack.c.l.b16 %v2618
      %v3138 = vunpack.c.l.b16 %v2619
      %v3139 = vunpack.c.l.b16 %v2620
      %v3140 = vunpack.c.l.b16 %v2621
      %v3141 = vunpack.c.l.b16 %v2622
      %v3142 = vunpack.c.l.b16 %v2623
      %v3143 = vunpack.c.l.b16 %v2624
      %v3144 = vunpack.c.l.b16 %v2625
      %v3145 = vunpack.c.l.b16 %v2626
      %v3146 = vunpack.c.l.b16 %v2627
      %v3147 = vunpack.c.l.b16 %v2628
      %v3148 = vunpack.c.l.b16 %v2629
      %v3149 = vunpack.c.l.b16 %v2630
      %v3150 = vunpack.c.l.b16 %v2631
      %v3151 = vunpack.c.l.b16 %v2632
      %v3152 = vunpack.c.l.b16 %v2633
      %v3153 = vunpack.c.l.b16 %v2634
      %v3154 = vunpack.c.l.b16 %v2635
      %v3155 = vunpack.c.l.b16 %v2636
      %v3156 = vunpack.c.l.b16 %v2637
      %v3157 = vunpack.c.l.b16 %v2638
      %v3158 = vunpack.c.l.b16 %v2639
      %v3159 = vunpack.c.l.b16 %v2640
      %v3160 = vunpack.c.l.b16 %v2641
      %v3161 = vunpack.c.l.b16 %v2642
      %v3162 = vunpack.c.l.b16 %v2643
      %v3163 = vunpack.c.l.b16 %v2644
      %v3164 = vunpack.c.l.b16 %v2645
      %v3165 = vunpack.c.l.b16 %v2646
      %v3166 = vunpack.c.l.b16 %v2647
      %v3167 = vunpack.c.l.b16 %v2648
      %v3168 = vunpack.c.l.b16 %v2649
      %v3169 = vunpack.c.l.b16 %v2650
      %v3170 = vunpack.c.l.b16 %v2651
      %v3171 = vunpack.c.l.b16 %v2652
      %v3172 = vunpack.c.l.b16 %v2653
      %v3173 = vunpack.c.l.b16 %v2654
      %v3174 = vunpack.c.l.b16 %v2655
      %v3175 = vunpack.c.l.b16 %v2656
      %v3176 = vunpack.c.l.b16 %v2657
      %v3177 = vunpack.c.l.b16 %v2658
      %v3178 = vunpack.c.l.b16 %v2659
      %v3179 = vunpack.c.l.b16 %v2660
      %v3180 = vunpack.c.l.b16 %v2661
      %v3181 = vunpack.c.l.b16 %v2662
      %v3182 = vunpack.c.l.b16 %v2663
      %v3183 = vunpack.c.l.b16 %v2664
      %v3184 = vunpack.c.l.b16 %v2665
      %v3185 = vunpack.c.l.b16 %v2666
      %v3186 = vunpack.c.l.b16 %v2667
      %v3187 = vunpack.c.l.b16 %v2668
      %v3188 = vunpack.c.l.b16 %v2669
      %v3189 = vunpack.c.l.b16 %v2670
      %v3190 = vunpack.c.l.b16 %v2671
      %v3191 = vunpack.c.l.b16 %v2672
      %v3192 = vunpack.c.l.b16 %v2673
      %v3193 = vunpack.c.l.b16 %v2674
      %v3194 = vunpack.c.l.b16 %v2675
      %v3195 = vunpack.c.l.b16 %v2676
      %v3196 = vunpack.c.l.b16 %v2677
      %v3197 = vunpack.c.l.b16 %v2678
      %v3198 = vunpack.c.l.b16 %v2679
      %v3199 = vunpack.c.l.b16 %v2680
      %v3200 = vunpack.c.l.b16 %v2681
      %v3201 = vunpack.c.l.b16 %v2682
      %v3202 = vunpack.c.l.b16 %v2683
      %v3203 = vunpack.c.l.b16 %v2684
      %v3204 = vunpack.c.l.b16 %v2685
      %v3205 = vunpack.c.l.b16 %v2686
      %v3206 = vunpack.c.l.b16 %v2687
      %v3207 = vunpack.c.l.b16 %v2688
      %v3208 = vunpack.c.l.b16 %v2689
      %v3209 = vunpack.c.l.b16 %v2690
      %v3210 = vpack.c.b16 %v2955, %v2954
      %v3211 = vpack.c.b16 %v2957, %v2956
      %v3212 = vpack.c.b16 %v2959, %v2958
      %v3213 = vpack.c.b16 %v2961, %v2960
      %v3214 = vpack.c.b16 %v2963, %v2962
      %v3215 = vpack.c.b16 %v2965, %v2964
      %v3216 = vpack.c.b16 %v2967, %v2966
      %v3217 = vpack.c.b16 %v2969, %v2968
      %v3218 = vpack.c.b16 %v2971, %v2970
      %v3219 = vpack.c.b16 %v2973, %v2972
      %v3220 = vpack.c.b16 %v2975, %v2974
      %v3221 = vpack.c.b16 %v2977, %v2976
      %v3222 = vpack.c.b16 %v2979, %v2978
      %v3223 = vpack.c.b16 %v2981, %v2980
      %v3224 = vpack.c.b16 %v2983, %v2982
      %v3225 = vpack.c.b16 %v2985, %v2984
      %v3226 = vpack.c.b16 %v2987, %v2986
      %v3227 = vpack.c.b16 %v2989, %v2988
      %v3228 = vpack.c.b16 %v2991, %v2990
      %v3229 = vpack.c.b16 %v2993, %v2992
      %v3230 = vpack.c.b16 %v2995, %v2994
      %v3231 = vpack.c.b16 %v2997, %v2996
      %v3232 = vpack.c.b16 %v2999, %v2998
      %v3233 = vpack.c.b16 %v3001, %v3000
      %v3234 = vpack.c.b16 %v3003, %v3002
      %v3235 = vpack.c.b16 %v3005, %v3004
      %v3236 = vpack.c.b16 %v3007, %v3006
      %v3237 = vpack.c.b16 %v3009, %v3008
      %v3238 = vpack.c.b16 %v3011, %v3010
      %v3239 = vpack.c.b16 %v3013, %v3012
      %v3240 = vpack.c.b16 %v3015, %v3014
      %v3241 = vpack.c.b16 %v3017, %v3016
      %v3242 = vpack.c.b16 %v3019, %v3018
      %v3243 = vpack.c.b16 %v3021, %v3020
      %v3244 = vpack.c.b16 %v3023, %v3022
      %v3245 = vpack.c.b16 %v3025, %v3024
      %v3246 = vpack.c.b16 %v3027, %v3026
      %v3247 = vpack.c.b16 %v3029, %v3028
      %v3248 = vpack.c.b16 %v3031, %v3030
      %v3249 = vpack.c.b16 %v3033, %v3032
      %v3250 = vpack.c.b16 %v3035, %v3034
      %v3251 = vpack.c.b16 %v3037, %v3036
      %v3252 = vpack.c.b16 %v3039, %v3038
      %v3253 = vpack.c.b16 %v3041, %v3040
      %v3254 = vpack.c.b16 %v3043, %v3042
      %v3255 = vpack.c.b16 %v3045, %v3044
      %v3256 = vpack.c.b16 %v3047, %v3046
      %v3257 = vpack.c.b16 %v3049, %v3048
      %v3258 = vpack.c.b16 %v3051, %v3050
      %v3259 = vpack.c.b16 %v3053, %v3052
      %v3260 = vpack.c.b16 %v3055, %v3054
      %v3261 = vpack.c.b16 %v3057, %v3056
      %v3262 = vpack.c.b16 %v3059, %v3058
      %v3263 = vpack.c.b16 %v3061, %v3060
      %v3264 = vpack.c.b16 %v3063, %v3062
      %v3265 = vpack.c.b16 %v3065, %v3064
      %v3266 = vpack.c.b16 %v3067, %v3066
      %v3267 = vpack.c.b16 %v3069, %v3068
      %v3268 = vpack.c.b16 %v3071, %v3070
      %v3269 = vpack.c.b16 %v3073, %v3072
      %v3270 = vpack.c.b16 %v3075, %v3074
      %v3271 = vpack.c.b16 %v3077, %v3076
      %v3272 = vpack.c.b16 %v3079, %v3078
      %v3273 = vpack.c.b16 %v3081, %v3080
      %v3274 = vpack.c.b16 %v3083, %v3082
      %v3275 = vpack.c.b16 %v3085, %v3084
      %v3276 = vpack.c.b16 %v3087, %v3086
      %v3277 = vpack.c.b16 %v3089, %v3088
      %v3278 = vpack.c.b16 %v3091, %v3090
      %v3279 = vpack.c.b16 %v3093, %v3092
      %v3280 = vpack.c.b16 %v3095, %v3094
      %v3281 = vpack.c.b16 %v3097, %v3096
      %v3282 = vpack.c.b16 %v3099, %v3098
      %v3283 = vpack.c.b16 %v3101, %v3100
      %v3284 = vpack.c.b16 %v3103, %v3102
      %v3285 = vpack.c.b16 %v3105, %v3104
      %v3286 = vpack.c.b16 %v3107, %v3106
      %v3287 = vpack.c.b16 %v3109, %v3108
      %v3288 = vpack.c.b16 %v3111, %v3110
      %v3289 = vpack.c.b16 %v3113, %v3112
      %v3290 = vpack.c.b16 %v3115, %v3114
      %v3291 = vpack.c.b16 %v3117, %v3116
      %v3292 = vpack.c.b16 %v3119, %v3118
      %v3293 = vpack.c.b16 %v3121, %v3120
      %v3294 = vpack.c.b16 %v3123, %v3122
      %v3295 = vpack.c.b16 %v3125, %v3124
      %v3296 = vpack.c.b16 %v3127, %v3126
      %v3297 = vpack.c.b16 %v3129, %v3128
      %v3298 = vpack.c.b16 %v3131, %v3130
      %v3299 = vpack.c.b16 %v3133, %v3132
      %v3300 = vpack.c.b16 %v3135, %v3134
      %v3301 = vpack.c.b16 %v3137, %v3136
      %v3302 = vpack.c.b16 %v3139, %v3138
      %v3303 = vpack.c.b16 %v3141, %v3140
      %v3304 = vpack.c.b16 %v3143, %v3142
      %v3305 = vpack.c.b16 %v3145, %v3144
      %v3306 = vpack.c.b16 %v3147, %v3146
      %v3307 = vpack.c.b16 %v3149, %v3148
      %v3308 = vpack.c.b16 %v3151, %v3150
      %v3309 = vpack.c.b16 %v3153, %v3152
      %v3310 = vpack.c.b16 %v3155, %v3154
      %v3311 = vpack.c.b16 %v3157, %v3156
      %v3312 = vpack.c.b16 %v3159, %v3158
      %v3313 = vpack.c.b16 %v3161, %v3160
      %v3314 = vpack.c.b16 %v3163, %v3162
      %v3315 = vpack.c.b16 %v3165, %v3164
      %v3316 = vpack.c.b16 %v3167, %v3166
      %v3317 = vpack.c.b16 %v3169, %v3168
      %v3318 = vpack.c.b16 %v3171, %v3170
      %v3319 = vpack.c.b16 %v3173, %v3172
      %v3320 = vpack.c.b16 %v3175, %v3174
      %v3321 = vpack.c.b16 %v3177, %v3176
      %v3322 = vpack.c.b16 %v3179, %v3178
      %v3323 = vpack.c.b16 %v3181, %v3180
      %v3324 = vpack.c.b16 %v3183, %v3182
      %v3325 = vpack.c.b16 %v3185, %v3184
      %v3326 = vpack.c.b16 %v3187, %v3186
      %v3327 = vpack.c.b16 %v3189, %v3188
      %v3328 = vpack.c.b16 %v3191, %v3190
      %v3329 = vpack.c.b16 %v3193, %v3192
      %v3330 = vpack.c.b16 %v3195, %v3194
      %v3331 = vpack.c.b16 %v3197, %v3196
      %v3332 = vpack.c.b16 %v3199, %v3198
      %v3333 = vpack.c.b16 %v3201, %v3200
      %v3334 = vpack.c.b16 %v3203, %v3202
      %v3335 = vpack.c.b16 %v3205, %v3204
      %v3336 = vpack.c.b16 %v3207, %v3206
      %v3337 = vpack.c.b16 %v3209, %v3208
      %3466 = vmatprep.subr.bf16.mxu0 0
      %3467 = vmatpush1.bf16.msra.mxu0 %v3217
      %3468 = vmatprep.subr.bf16.mxu0 0
      %3469 = vmatpush1.bf16.msra.mxu0 %v3216
      %3470 = vmatprep.subr.bf16.mxu0 0
      %3471 = vmatpush1.bf16.msra.mxu0 %v3215
      %3472 = vmatprep.subr.bf16.mxu0 0
      %3473 = vmatpush1.bf16.msra.mxu0 %v3214
      %3474 = vmatprep.subr.bf16.mxu0 0
      %3475 = vmatpush1.bf16.msra.mxu0 %v3213
      %3476 = vmatprep.subr.bf16.mxu0 0
      %3477 = vmatpush1.bf16.msra.mxu0 %v3212
      %3478 = vmatprep.subr.bf16.mxu0 0
      %3479 = vmatpush1.bf16.msra.mxu0 %v3211
      %3480 = vmatprep.subr.bf16.mxu0 0
      %3481 = vmatpush1.bf16.msra.mxu0 %v3210
      %3482 = vmatprep.subr.bf16.mxu0 0
      %3483 = vmatpush2.bf16.msra.mxu0 %v3225
      %3484 = vmatprep.subr.bf16.mxu0 0
      %3485 = vmatpush2.bf16.msra.mxu0 %v3224
      %3486 = vmatprep.subr.bf16.mxu0 0
      %3487 = vmatpush2.bf16.msra.mxu0 %v3223
      %3488 = vmatprep.subr.bf16.mxu0 0
      %3489 = vmatpush2.bf16.msra.mxu0 %v3222
      %3490 = vmatprep.subr.bf16.mxu0 0
      %3491 = vmatpush2.bf16.msra.mxu0 %v3221
      %3492 = vmatprep.subr.bf16.mxu0 0
      %3493 = vmatpush2.bf16.msra.mxu0 %v3220
      %3494 = vmatprep.subr.bf16.mxu0 0
      %3495 = vmatpush2.bf16.msra.mxu0 %v3219
      %3496 = vmatprep.subr.bf16.mxu0 0
      %3497 = vmatpush2.bf16.msra.mxu0 %v3218
      %3498 = vmatprep.mubr.bf16.mxu0 %v2420
      %3499 = vmatmul.mubr.bf16.gmra.mxu0 %v2419
      %v3500 = vpop.f32.mrf.mxu0
      %v3501 = vadd.f32 %v2696, %v3500
      %v3502 = vpop.f32.mrf.mxu0
      %v3503 = vpop.f32.mrf.mxu0
      %v3504 = vpop.f32.mrf.mxu0
      %3505 = vdwg.mxu0
      %3506 = vmatprep.subr.bf16.mxu0 0
      %3507 = vmatpush1.bf16.msra.mxu0 %v3233
      %3508 = vmatprep.subr.bf16.mxu0 0
      %3509 = vmatpush1.bf16.msra.mxu0 %v3232
      %3510 = vmatprep.subr.bf16.mxu0 0
      %3511 = vmatpush1.bf16.msra.mxu0 %v3231
      %3512 = vmatprep.subr.bf16.mxu0 0
      %3513 = vmatpush1.bf16.msra.mxu0 %v3230
      %3514 = vmatprep.subr.bf16.mxu0 0
      %3515 = vmatpush1.bf16.msra.mxu0 %v3229
      %3516 = vmatprep.subr.bf16.mxu0 0
      %3517 = vmatpush1.bf16.msra.mxu0 %v3228
      %3518 = vmatprep.subr.bf16.mxu0 0
      %3519 = vmatpush1.bf16.msra.mxu0 %v3227
      %3520 = vmatprep.subr.bf16.mxu0 0
      %3521 = vmatpush1.bf16.msra.mxu0 %v3226
      %3522 = vmatprep.subr.bf16.mxu0 0
      %3523 = vmatpush2.bf16.msra.mxu0 %v3241
      %3524 = vmatprep.subr.bf16.mxu0 0
      %3525 = vmatpush2.bf16.msra.mxu0 %v3240
      %3526 = vmatprep.subr.bf16.mxu0 0
      %3527 = vmatpush2.bf16.msra.mxu0 %v3239
      %3528 = vmatprep.subr.bf16.mxu0 0
      %3529 = vmatpush2.bf16.msra.mxu0 %v3238
      %3530 = vmatprep.subr.bf16.mxu0 0
      %3531 = vmatpush2.bf16.msra.mxu0 %v3237
      %3532 = vmatprep.subr.bf16.mxu0 0
      %3533 = vmatpush2.bf16.msra.mxu0 %v3236
      %3534 = vmatprep.subr.bf16.mxu0 0
      %3535 = vmatpush2.bf16.msra.mxu0 %v3235
      %3536 = vmatprep.subr.bf16.mxu0 0
      %3537 = vmatpush2.bf16.msra.mxu0 %v3234
      %3538 = vmatprep.mubr.bf16.mxu0 %v2422
      %3539 = vmatmul.mubr.bf16.gmra.mxu0 %v2421
      %v3540 = vpop.f32.mrf.mxu0
      %v3541 = vadd.f32 %v3501, %v3540
      %v3542 = vpop.f32.mrf.mxu0
      %v3543 = vpop.f32.mrf.mxu0
      %v3544 = vpop.f32.mrf.mxu0
      %3545 = vdwg.mxu0
      %3546 = vmatprep.subr.bf16.mxu0 0
      %3547 = vmatpush1.bf16.msra.mxu0 %v3249
      %3548 = vmatprep.subr.bf16.mxu0 0
      %3549 = vmatpush1.bf16.msra.mxu0 %v3248
      %3550 = vmatprep.subr.bf16.mxu0 0
      %3551 = vmatpush1.bf16.msra.mxu0 %v3247
      %3552 = vmatprep.subr.bf16.mxu0 0
      %3553 = vmatpush1.bf16.msra.mxu0 %v3246
      %3554 = vmatprep.subr.bf16.mxu0 0
      %3555 = vmatpush1.bf16.msra.mxu0 %v3245
      %3556 = vmatprep.subr.bf16.mxu0 0
      %3557 = vmatpush1.bf16.msra.mxu0 %v3244
      %3558 = vmatprep.subr.bf16.mxu0 0
      %3559 = vmatpush1.bf16.msra.mxu0 %v3243
      %3560 = vmatprep.subr.bf16.mxu0 0
      %3561 = vmatpush1.bf16.msra.mxu0 %v3242
      %3562 = vmatprep.subr.bf16.mxu0 0
      %3563 = vmatpush2.bf16.msra.mxu0 %v3257
      %3564 = vmatprep.subr.bf16.mxu0 0
      %3565 = vmatpush2.bf16.msra.mxu0 %v3256
      %3566 = vmatprep.subr.bf16.mxu0 0
      %3567 = vmatpush2.bf16.msra.mxu0 %v3255
      %3568 = vmatprep.subr.bf16.mxu0 0
      %3569 = vmatpush2.bf16.msra.mxu0 %v3254
      %3570 = vmatprep.subr.bf16.mxu0 0
      %3571 = vmatpush2.bf16.msra.mxu0 %v3253
      %3572 = vmatprep.subr.bf16.mxu0 0
      %3573 = vmatpush2.bf16.msra.mxu0 %v3252
      %3574 = vmatprep.subr.bf16.mxu0 0
      %3575 = vmatpush2.bf16.msra.mxu0 %v3251
      %3576 = vmatprep.subr.bf16.mxu0 0
      %3577 = vmatpush2.bf16.msra.mxu0 %v3250
      %3578 = vmatprep.mubr.bf16.mxu0 %v2424
      %3579 = vmatmul.mubr.bf16.gmra.mxu0 %v2423
      %v3580 = vpop.f32.mrf.mxu0
      %v3581 = vadd.f32 %v3541, %v3580
      %v3582 = vpop.f32.mrf.mxu0
      %v3583 = vpop.f32.mrf.mxu0
      %v3584 = vpop.f32.mrf.mxu0
      %3585 = vdwg.mxu0
      %3586 = vmatprep.subr.bf16.mxu0 0
      %3587 = vmatpush1.bf16.msra.mxu0 %v3265
      %3588 = vmatprep.subr.bf16.mxu0 0
      %3589 = vmatpush1.bf16.msra.mxu0 %v3264
      %3590 = vmatprep.subr.bf16.mxu0 0
      %3591 = vmatpush1.bf16.msra.mxu0 %v3263
      %3592 = vmatprep.subr.bf16.mxu0 0
      %3593 = vmatpush1.bf16.msra.mxu0 %v3262
      %3594 = vmatprep.subr.bf16.mxu0 0
      %3595 = vmatpush1.bf16.msra.mxu0 %v3261
      %3596 = vmatprep.subr.bf16.mxu0 0
      %3597 = vmatpush1.bf16.msra.mxu0 %v3260
      %3598 = vmatprep.subr.bf16.mxu0 0
      %3599 = vmatpush1.bf16.msra.mxu0 %v3259
      %3600 = vmatprep.subr.bf16.mxu0 0
      %3601 = vmatpush1.bf16.msra.mxu0 %v3258
      %3602 = vmatprep.subr.bf16.mxu0 0
      %3603 = vmatpush2.bf16.msra.mxu0 %v3273
      %3604 = vmatprep.subr.bf16.mxu0 0
      %3605 = vmatpush2.bf16.msra.mxu0 %v3272
      %3606 = vmatprep.subr.bf16.mxu0 0
      %3607 = vmatpush2.bf16.msra.mxu0 %v3271
      %3608 = vmatprep.subr.bf16.mxu0 0
      %3609 = vmatpush2.bf16.msra.mxu0 %v3270
      %3610 = vmatprep.subr.bf16.mxu0 0
      %3611 = vmatpush2.bf16.msra.mxu0 %v3269
      %3612 = vmatprep.subr.bf16.mxu0 0
      %3613 = vmatpush2.bf16.msra.mxu0 %v3268
      %3614 = vmatprep.subr.bf16.mxu0 0
      %3615 = vmatpush2.bf16.msra.mxu0 %v3267
      %3616 = vmatprep.subr.bf16.mxu0 0
      %3617 = vmatpush2.bf16.msra.mxu0 %v3266
      %3618 = vmatprep.mubr.bf16.mxu0 %v2426
      %3619 = vmatmul.mubr.bf16.gmra.mxu0 %v2425
      %v3620 = vpop.f32.mrf.mxu0
      %v3621 = vadd.f32 %v3581, %v3620
      %v3622 = vpop.f32.mrf.mxu0
      %v3623 = vpop.f32.mrf.mxu0
      %v3624 = vpop.f32.mrf.mxu0
      %3625 = vdwg.mxu0
      %3626 = vmatprep.subr.bf16.mxu0 0
      %3627 = vmatpush1.bf16.msra.mxu0 %v3281
      %3628 = vmatprep.subr.bf16.mxu0 0
      %3629 = vmatpush1.bf16.msra.mxu0 %v3280
      %3630 = vmatprep.subr.bf16.mxu0 0
      %3631 = vmatpush1.bf16.msra.mxu0 %v3279
      %3632 = vmatprep.subr.bf16.mxu0 0
      %3633 = vmatpush1.bf16.msra.mxu0 %v3278
      %3634 = vmatprep.subr.bf16.mxu0 0
      %3635 = vmatpush1.bf16.msra.mxu0 %v3277
      %3636 = vmatprep.subr.bf16.mxu0 0
      %3637 = vmatpush1.bf16.msra.mxu0 %v3276
      %3638 = vmatprep.subr.bf16.mxu0 0
      %3639 = vmatpush1.bf16.msra.mxu0 %v3275
      %3640 = vmatprep.subr.bf16.mxu0 0
      %3641 = vmatpush1.bf16.msra.mxu0 %v3274
      %3642 = vmatprep.subr.bf16.mxu0 0
      %3643 = vmatpush2.bf16.msra.mxu0 %v3289
      %3644 = vmatprep.subr.bf16.mxu0 0
      %3645 = vmatpush2.bf16.msra.mxu0 %v3288
      %3646 = vmatprep.subr.bf16.mxu0 0
      %3647 = vmatpush2.bf16.msra.mxu0 %v3287
      %3648 = vmatprep.subr.bf16.mxu0 0
      %3649 = vmatpush2.bf16.msra.mxu0 %v3286
      %3650 = vmatprep.subr.bf16.mxu0 0
      %3651 = vmatpush2.bf16.msra.mxu0 %v3285
      %3652 = vmatprep.subr.bf16.mxu0 0
      %3653 = vmatpush2.bf16.msra.mxu0 %v3284
      %3654 = vmatprep.subr.bf16.mxu0 0
      %3655 = vmatpush2.bf16.msra.mxu0 %v3283
      %3656 = vmatprep.subr.bf16.mxu0 0
      %3657 = vmatpush2.bf16.msra.mxu0 %v3282
      %3658 = vmatprep.mubr.bf16.mxu0 %v2428
      %3659 = vmatmul.mubr.bf16.gmra.mxu0 %v2427
      %v3660 = vpop.f32.mrf.mxu0
      %v3661 = vadd.f32 %v3621, %v3660
      %v3662 = vpop.f32.mrf.mxu0
      %v3663 = vpop.f32.mrf.mxu0
      %v3664 = vpop.f32.mrf.mxu0
      %3665 = vdwg.mxu0
      %3666 = vmatprep.subr.bf16.mxu0 0
      %3667 = vmatpush1.bf16.msra.mxu0 %v3297
      %3668 = vmatprep.subr.bf16.mxu0 0
      %3669 = vmatpush1.bf16.msra.mxu0 %v3296
      %3670 = vmatprep.subr.bf16.mxu0 0
      %3671 = vmatpush1.bf16.msra.mxu0 %v3295
      %3672 = vmatprep.subr.bf16.mxu0 0
      %3673 = vmatpush1.bf16.msra.mxu0 %v3294
      %3674 = vmatprep.subr.bf16.mxu0 0
      %3675 = vmatpush1.bf16.msra.mxu0 %v3293
      %3676 = vmatprep.subr.bf16.mxu0 0
      %3677 = vmatpush1.bf16.msra.mxu0 %v3292
      %3678 = vmatprep.subr.bf16.mxu0 0
      %3679 = vmatpush1.bf16.msra.mxu0 %v3291
      %3680 = vmatprep.subr.bf16.mxu0 0
      %3681 = vmatpush1.bf16.msra.mxu0 %v3290
      %3682 = vmatprep.subr.bf16.mxu0 0
      %3683 = vmatpush2.bf16.msra.mxu0 %v3305
      %3684 = vmatprep.subr.bf16.mxu0 0
      %3685 = vmatpush2.bf16.msra.mxu0 %v3304
      %3686 = vmatprep.subr.bf16.mxu0 0
      %3687 = vmatpush2.bf16.msra.mxu0 %v3303
      %3688 = vmatprep.subr.bf16.mxu0 0
      %3689 = vmatpush2.bf16.msra.mxu0 %v3302
      %3690 = vmatprep.subr.bf16.mxu0 0
      %3691 = vmatpush2.bf16.msra.mxu0 %v3301
      %3692 = vmatprep.subr.bf16.mxu0 0
      %3693 = vmatpush2.bf16.msra.mxu0 %v3300
      %3694 = vmatprep.subr.bf16.mxu0 0
      %3695 = vmatpush2.bf16.msra.mxu0 %v3299
      %3696 = vmatprep.subr.bf16.mxu0 0
      %3697 = vmatpush2.bf16.msra.mxu0 %v3298
      %3698 = vmatprep.mubr.bf16.mxu0 %v2430
      %3699 = vmatmul.mubr.bf16.gmra.mxu0 %v2429
      %v3700 = vpop.f32.mrf.mxu0
      %v3701 = vadd.f32 %v3661, %v3700
      %v3702 = vpop.f32.mrf.mxu0
      %v3703 = vpop.f32.mrf.mxu0
      %v3704 = vpop.f32.mrf.mxu0
      %3705 = vdwg.mxu0
      %3706 = vmatprep.subr.bf16.mxu0 0
      %3707 = vmatpush1.bf16.msra.mxu0 %v3313
      %3708 = vmatprep.subr.bf16.mxu0 0
      %3709 = vmatpush1.bf16.msra.mxu0 %v3312
      %3710 = vmatprep.subr.bf16.mxu0 0
      %3711 = vmatpush1.bf16.msra.mxu0 %v3311
      %3712 = vmatprep.subr.bf16.mxu0 0
      %3713 = vmatpush1.bf16.msra.mxu0 %v3310
      %3714 = vmatprep.subr.bf16.mxu0 0
      %3715 = vmatpush1.bf16.msra.mxu0 %v3309
      %3716 = vmatprep.subr.bf16.mxu0 0
      %3717 = vmatpush1.bf16.msra.mxu0 %v3308
      %3718 = vmatprep.subr.bf16.mxu0 0
      %3719 = vmatpush1.bf16.msra.mxu0 %v3307
      %3720 = vmatprep.subr.bf16.mxu0 0
      %3721 = vmatpush1.bf16.msra.mxu0 %v3306
      %3722 = vmatprep.subr.bf16.mxu0 0
      %3723 = vmatpush2.bf16.msra.mxu0 %v3321
      %3724 = vmatprep.subr.bf16.mxu0 0
      %3725 = vmatpush2.bf16.msra.mxu0 %v3320
      %3726 = vmatprep.subr.bf16.mxu0 0
      %3727 = vmatpush2.bf16.msra.mxu0 %v3319
      %3728 = vmatprep.subr.bf16.mxu0 0
      %3729 = vmatpush2.bf16.msra.mxu0 %v3318
      %3730 = vmatprep.subr.bf16.mxu0 0
      %3731 = vmatpush2.bf16.msra.mxu0 %v3317
      %3732 = vmatprep.subr.bf16.mxu0 0
      %3733 = vmatpush2.bf16.msra.mxu0 %v3316
      %3734 = vmatprep.subr.bf16.mxu0 0
      %3735 = vmatpush2.bf16.msra.mxu0 %v3315
      %3736 = vmatprep.subr.bf16.mxu0 0
      %3737 = vmatpush2.bf16.msra.mxu0 %v3314
      %3738 = vmatprep.mubr.bf16.mxu0 %v2432
      %3739 = vmatmul.mubr.bf16.gmra.mxu0 %v2431
      %v3740 = vpop.f32.mrf.mxu0
      %v3741 = vadd.f32 %v3701, %v3740
      %v3742 = vpop.f32.mrf.mxu0
      %v3743 = vpop.f32.mrf.mxu0
      %v3744 = vpop.f32.mrf.mxu0
      %3745 = vdwg.mxu0
      %3746 = vmatprep.subr.bf16.mxu0 0
      %3747 = vmatpush1.bf16.msra.mxu0 %v3329
      %3748 = vmatprep.subr.bf16.mxu0 0
      %3749 = vmatpush1.bf16.msra.mxu0 %v3328
      %3750 = vmatprep.subr.bf16.mxu0 0
      %3751 = vmatpush1.bf16.msra.mxu0 %v3327
      %3752 = vmatprep.subr.bf16.mxu0 0
      %3753 = vmatpush1.bf16.msra.mxu0 %v3326
      %3754 = vmatprep.subr.bf16.mxu0 0
      %3755 = vmatpush1.bf16.msra.mxu0 %v3325
      %3756 = vmatprep.subr.bf16.mxu0 0
      %3757 = vmatpush1.bf16.msra.mxu0 %v3324
      %3758 = vmatprep.subr.bf16.mxu0 0
      %3759 = vmatpush1.bf16.msra.mxu0 %v3323
      %3760 = vmatprep.subr.bf16.mxu0 0
      %3761 = vmatpush1.bf16.msra.mxu0 %v3322
      %3762 = vmatprep.subr.bf16.mxu0 0
      %3763 = vmatpush2.bf16.msra.mxu0 %v3337
      %3764 = vmatprep.subr.bf16.mxu0 0
      %3765 = vmatpush2.bf16.msra.mxu0 %v3336
      %3766 = vmatprep.subr.bf16.mxu0 0
      %3767 = vmatpush2.bf16.msra.mxu0 %v3335
      %3768 = vmatprep.subr.bf16.mxu0 0
      %3769 = vmatpush2.bf16.msra.mxu0 %v3334
      %3770 = vmatprep.subr.bf16.mxu0 0
      %3771 = vmatpush2.bf16.msra.mxu0 %v3333
      %3772 = vmatprep.subr.bf16.mxu0 0
      %3773 = vmatpush2.bf16.msra.mxu0 %v3332
      %3774 = vmatprep.subr.bf16.mxu0 0
      %3775 = vmatpush2.bf16.msra.mxu0 %v3331
      %3776 = vmatprep.subr.bf16.mxu0 0
      %3777 = vmatpush2.bf16.msra.mxu0 %v3330
      %3778 = vmatprep.mubr.bf16.mxu0 %v2434
      %3779 = vmatmul.mubr.bf16.gmra.mxu0 %v2433
      %v3780 = vpop.f32.mrf.mxu0
      %v3781 = vadd.f32 %v3741, %v3780
      %v3782 = vpop.f32.mrf.mxu0
      %v3783 = vpop.f32.mrf.mxu0
      %v3784 = vpop.f32.mrf.mxu0
      %3785 = vdwg.mxu0
      %v3786 = vadd.f32 %v1794, %v3781
      %v3787 = vld [vmem:[%s676] sm:$0x1]
      %v3788 = vld [vmem:[%s679] sm:$0x1]
      %v3789 = vsel %vm720, %v3786, 0.0
      %3790 = vadd.xlane.f32.xlu0 %v3789
      %v3791 = vpop.xlane.xlu0 %3790
      %v3792 = vmul.f32 %v3791, %v1770
      %v3793 = vsub.f32 %v3786, %v3792
      %v3794 = vmul.f32 %v3793, %v3793
      %v3795 = vsel %vm720, %v3794, 0.0
      %3796 = vadd.xlane.f32.xlu0 %v3795
      %v3797 = vpop.xlane.xlu0 %3796
      %v3798 = vmul.f32 %v3797, %v1770
      %v3799 = vadd.f32 %v3798, 1e-05
      %v3800 = vrsqrt.pop %v3799
      %v3801 = vmul.f32 %v3793, %v3800
      %v3803 = vlaneseq
      %v3804 = vshrl.u32 %v3803, 7
      %v3805 = vsub.s32 0, %v3804
      %v3806 = vrot.slane %v3787, %v3805
      %v3808 = vmul.f32 %v3801, %v3806
      %v3810 = vlaneseq
      %v3811 = vshrl.u32 %v3810, 7
      %v3812 = vsub.s32 0, %v3811
      %v3813 = vrot.slane %v3788, %v3812
      %v3815 = vadd.f32 %v3808, %v3813
      %3816 = vst.msk [vmem:[%s683] sm:$0xff] %vm720, %v3815
      %p3817 = scmp.lt.s32.totalorder %s29, 1
      %s3818 = scalar_select %p3817, %s29, 1
      %s3819 = smul.addr %s3818, 8
      %s3820 = scalar_lea.vmem %s14, %s3819
      // Predicated region
      $region81: #{trans_encoder_forward.1} parent=75 // pred_check
        %p3821 = pneg %p419
      $region82: #{trans_encoder_forward.1} parent=75 // pred_check_branch
        %3823 = sbr.rel (%p3821) target = $region84
      $region83: #{trans_encoder_forward.1} parent=75 // pred_region
        _
      $region84: #{trans_encoder_forward.1} parent=75 // pred_fallthru
        _
    $region76: #{trans_encoder_forward.1} parent=5 // pred_fallthru
      _
    %p3824 = scmp.le.s32.totalorder 2, %s20
    // Predicated region
    $region85: #{trans_encoder_forward.1} parent=5 // pred_check
      %p3825 = pneg %p3824
    $region86: #{trans_encoder_forward.1} parent=5 // pred_check_branch
      %3827 = sbr.rel (%p3825) target = $region88
    $region87: #{trans_encoder_forward.1} parent=5 // pred_region
      %s3828 = ssub.s32 %s20, 2
      // Predicated region
      $region89: #{trans_encoder_forward.1} parent=87 // pred_check
        %p3829 = pneg %p425
      $region90: #{trans_encoder_forward.1} parent=87 // pred_check_branch
        %3831 = sbr.rel (%p3829) target = $region92
      $region91: #{trans_encoder_forward.1} parent=87 // pred_region
        %p3832 = scmp.lt.s32.totalorder %s31, 1
        %s3833 = scalar_select %p3832, %s31, 1
        %s3834 = smul.addr %s3833, 8
        %s3835 = scalar_lea.vmem %s14, %s3834
      $region92: #{trans_encoder_forward.1} parent=87 // pred_fallthru
        _
    $region88: #{trans_encoder_forward.1} parent=5 // pred_fallthru
      _
  $region6: #{trans_encoder_forward.1} parent=0 // loop_footer
    %s24 = sadd.s32 1, %s20
  $region7: #{trans_encoder_forward.1} parent=0 // loop_footer_branch
    %19 = sbr.rel target = $region3
  $region8: #{trans_encoder_forward.1} parent=0 // loop_exit
    _

</llo_original>
